<compile_context>
chip_gen: v7x
topology: tpu7x:2x2x1
jax: 0.10.0
libtpu: 0.0.40
codegen_flags: <defaults>
</compile_context>

<pallas_src>
import functools
import math

import jax
import jax.numpy as jnp
from jax.experimental import pallas as pl
from jax.experimental.pallas import tpu as pltpu


# ---------------------------------------------------------------------------
# Fused forward kernel
# ---------------------------------------------------------------------------

def _fused_forward_kernel(
    eeg_ref, lab_ref,
    eeg_w_ref, eeg_b_ref, wpe_ref, wte_ref, lnf_g_ref, lnf_b_ref,
    ln1_g_ref, ln1_b_ref, attn_w_ref, attn_b_ref, proj_w_ref, proj_b_ref,
    ln2_g_ref, ln2_b_ref, fc_w_ref, fc_b_ref, fcp_w_ref, fcp_b_ref,
    logits_ref, loss_ref,
    *, B, S, E, n_head, n_layer, vocab):
    f32 = jnp.float32
    bf16 = jnp.bfloat16
    Dh = E // n_head
    scale = 1.0 / math.sqrt(Dh)

    def mm(x, w, b=None):
        # bf16 MXU operands, f32 accumulation.
        y = jnp.dot(x.astype(bf16), w.astype(bf16), preferred_element_type=f32)
        if b is not None:
            y = y + b
        return y

    def layernorm(x, g, b, eps=1e-5):
        mu = jnp.mean(x, axis=-1, keepdims=True)
        xc = x - mu
        var = jnp.mean(xc * xc, axis=-1, keepdims=True)
        return xc * jax.lax.rsqrt(var + eps) * g + b

    def gelu_new(y):
        c = math.sqrt(2.0 / math.pi)
        return 0.5 * y * (1.0 + jnp.tanh(c * (y + 0.044715 * y * y * y)))

    # --- EEG encoder (nn.Linear) + position embeddings (inputs_embeds path) ---
    h = mm(eeg_ref[...], eeg_w_ref[...], eeg_b_ref[...])               # (B*S, E)
    h = (h.reshape(B, S, E) + wpe_ref[...]).reshape(B * S, E)

    # Causal mask built once for the whole kernel.
    row = jax.lax.broadcasted_iota(jnp.int32, (S, S), 0)
    col = jax.lax.broadcasted_iota(jnp.int32, (S, S), 1)
    causal = col <= row                                                # (S, S)

    # --- transformer blocks (pre-LN GPT-2), statically unrolled ---
    for l in range(n_layer):
        # attention sub-block
        xa = layernorm(h, ln1_g_ref[l], ln1_b_ref[l])
        qkv = mm(xa, attn_w_ref[l], attn_b_ref[l])                     # (B*S, 3E)
        head_outs = []
        for hd in range(n_head):
            q = qkv[:, hd * Dh:(hd + 1) * Dh].reshape(B, S, Dh)
            k = qkv[:, E + hd * Dh:E + (hd + 1) * Dh].reshape(B, S, Dh)
            v = qkv[:, 2 * E + hd * Dh:2 * E + (hd + 1) * Dh].reshape(B, S, Dh)
            s = jnp.einsum('bqd,bkd->bqk', q, k,
                           preferred_element_type=f32) * scale         # (B,S,S)
            s = jnp.where(causal, s, -1e30)
            m = jnp.max(s, axis=-1, keepdims=True)
            e = jnp.exp(s - m)
            p = e * pl.reciprocal(jnp.sum(e, axis=-1, keepdims=True),
                                  approx=True)
            head_outs.append(jnp.einsum('bqk,bkd->bqd', p, v,
                                        preferred_element_type=f32))   # (B,S,Dh)
        attn = jnp.concatenate(head_outs, axis=-1).reshape(B * S, E)
        h = h + mm(attn, proj_w_ref[l], proj_b_ref[l])

        # MLP sub-block (gelu_new)
        xm = layernorm(h, ln2_g_ref[l], ln2_b_ref[l])
        xm = gelu_new(mm(xm, fc_w_ref[l], fc_b_ref[l]))
        h = h + mm(xm, fcp_w_ref[l], fcp_b_ref[l])

    # --- final LN + tied lm_head (contract on the E axis of wte; no bias) ---
    h = layernorm(h, lnf_g_ref[...], lnf_b_ref[...])
    logits2d = jax.lax.dot_general(
        h.astype(bf16), wte_ref[...].astype(bf16),
        dimension_numbers=(((1,), (1,)), ((), ())),
        preferred_element_type=f32)                                    # (B*S, V)
    logits3 = logits2d.reshape(B, S, vocab)
    logits_ref[...] = logits3

    # --- shifted-token mean cross-entropy, fused on the in-VMEM logits ---
    shift_logits = logits3[:, :-1, :]                                  # (B,S-1,V)
    shift_labels = lab_ref[...][:, 1:, :]                              # (B,S-1,1)
    m = jnp.max(shift_logits, axis=-1, keepdims=True)
    lse = jnp.log(jnp.sum(jnp.exp(shift_logits - m), axis=-1, keepdims=True)) + m
    col3 = jax.lax.broadcasted_iota(jnp.int32, shift_logits.shape, 2)
    picked = jnp.sum(jnp.where(col3 == shift_labels, shift_logits, 0.0),
                     axis=-1, keepdims=True)
    nll = lse - picked                                                 # (B,S-1,1)
    tot = jnp.sum(nll, axis=1, keepdims=True)                          # (B,1,1)
    tot = jnp.sum(tot, axis=0, keepdims=True)                          # (1,1,1)
    loss_ref[...] = tot.reshape(1, 1) * (1.0 / float(B * (S - 1)))


# ---------------------------------------------------------------------------
# Parameters (deterministic synthetic init, stacked per-layer for the kernel)
# ---------------------------------------------------------------------------

def init_params(key, *, hidden_dim, n_embd, n_head, n_layer, vocab, max_pos):
    del n_head
    keys = iter(jax.random.split(key, 32))

    def normal(shape, std=0.02):
        return (std * jax.random.normal(next(keys), shape)).astype(jnp.float32)

    inner = 4 * n_embd
    L = n_layer
    return {
        # EEG encoder nn.Linear(hidden_dim, n_embd): stored as (in, out) for x @ W
        "eeg_w": normal((hidden_dim, n_embd)),
        "eeg_b": normal((1, n_embd)),
        "wte": normal((vocab, n_embd)),
        "wpe": normal((max_pos, n_embd), std=0.01),
        "lnf_g": jnp.ones((1, n_embd), jnp.float32),
        "lnf_b": jnp.zeros((1, n_embd), jnp.float32),
        # per-layer weights stacked on a leading n_layer axis
        "ln1_g": jnp.ones((L, 1, n_embd), jnp.float32),
        "ln1_b": jnp.zeros((L, 1, n_embd), jnp.float32),
        "attn_w": normal((L, n_embd, 3 * n_embd)),   # GPT-2 Conv1D: x @ W + b
        "attn_b": normal((L, 1, 3 * n_embd)),
        "proj_w": normal((L, n_embd, n_embd)),
        "proj_b": normal((L, 1, n_embd)),
        "ln2_g": jnp.ones((L, 1, n_embd), jnp.float32),
        "ln2_b": jnp.zeros((L, 1, n_embd), jnp.float32),
        "fc_w": normal((L, n_embd, inner)),
        "fc_b": normal((L, 1, inner)),
        "fcp_w": normal((L, inner, n_embd)),
        "fcp_b": normal((L, 1, n_embd)),
    }


# ---------------------------------------------------------------------------
# Model glue: one pallas_call for the whole forward
# ---------------------------------------------------------------------------

def eeg2text_forward(params, eeg_input, labels, *, n_head, n_layer):
    """Mirrors EEG2TextModel.forward -> (loss, logits)."""
    B, S, H = eeg_input.shape
    E = params["eeg_w"].shape[1]
    V = params["wte"].shape[0]

    x2d = eeg_input.reshape(B * S, H)
    lab3 = labels.astype(jnp.int32).reshape(B, S, 1)

    kernel = functools.partial(_fused_forward_kernel, B=B, S=S, E=E,
                               n_head=n_head, n_layer=n_layer, vocab=V)

    def full(shape):
        return pl.BlockSpec(shape, lambda i, _s=shape: (0,) * len(_s))

    in_specs = [
        full((B * S, H)),                       # eeg
        full((B, S, 1)),                        # labels
        full(params["eeg_w"].shape),
        full(params["eeg_b"].shape),
        pl.BlockSpec((S, E), lambda i: (0, 0)),  # first S rows of wpe, no tile()
        full(params["wte"].shape),
        full(params["lnf_g"].shape),
        full(params["lnf_b"].shape),
        full(params["ln1_g"].shape),
        full(params["ln1_b"].shape),
        full(params["attn_w"].shape),
        full(params["attn_b"].shape),
        full(params["proj_w"].shape),
        full(params["proj_b"].shape),
        full(params["ln2_g"].shape),
        full(params["ln2_b"].shape),
        full(params["fc_w"].shape),
        full(params["fc_b"].shape),
        full(params["fcp_w"].shape),
        full(params["fcp_b"].shape),
    ]

    logits, loss = pl.pallas_call(
        kernel,
        out_shape=(jax.ShapeDtypeStruct((B, S, V), jnp.float32),
                   jax.ShapeDtypeStruct((1, 1), jnp.float32)),
        grid=(1,),
        in_specs=in_specs,
        out_specs=(full((B, S, V)), full((1, 1))),
        compiler_params=pltpu.CompilerParams(
            dimension_semantics=("arbitrary",)),
    )(x2d, lab3,
      params["eeg_w"], params["eeg_b"], params["wpe"], params["wte"],
      params["lnf_g"], params["lnf_b"],
      params["ln1_g"], params["ln1_b"], params["attn_w"], params["attn_b"],
      params["proj_w"], params["proj_b"], params["ln2_g"], params["ln2_b"],
      params["fc_w"], params["fc_b"], params["fcp_w"], params["fcp_b"])

    return loss[0, 0], logits


# ---------------------------------------------------------------------------
# Demo
# ---------------------------------------------------------------------------

if __name__ == "__main__":
    # small config consistent with the module's forward
    B, S = 2, 8
    HIDDEN_DIM = 16     # EEG feature dim (eeg_encoder input)
    N_EMBD = 32         # output_dim == GPT-2 hidden size
    N_HEAD = 4
    N_LAYER = 2
    VOCAB = 64
    MAX_POS = 32

    key = jax.random.PRNGKey(0)
    k_params, k_eeg, k_lab = jax.random.split(key, 3)

    params = init_params(k_params, hidden_dim=HIDDEN_DIM, n_embd=N_EMBD,
                         n_head=N_HEAD, n_layer=N_LAYER, vocab=VOCAB,
                         max_pos=MAX_POS)

    eeg_input = jax.random.normal(k_eeg, (B, S, HIDDEN_DIM), dtype=jnp.float32)
    labels = jax.random.randint(k_lab, (B, S), 0, VOCAB, dtype=jnp.int32)

    fwd = jax.jit(functools.partial(eeg2text_forward,
                                    n_head=N_HEAD, n_layer=N_LAYER))
    loss, logits = fwd(params, eeg_input, labels)
    jax.block_until_ready((loss, logits))

    assert logits.shape == (B, S, VOCAB)
    assert loss.shape == ()
    assert bool(jnp.isfinite(loss))
    assert bool(jnp.all(jnp.isfinite(logits)))

    print("KERNEL_OK")
</pallas_src>

<mosaic_0001>
module attributes {stable_mosaic.version = 11 : i64} {
  func.func @_fused_forward_kernel(%arg0: i32, %arg1: memref<16x16xf32, #tpu.memory_space<vmem>>, %arg2: memref<2x8x1xi32, #tpu.memory_space<vmem>>, %arg3: memref<16x32xf32, #tpu.memory_space<vmem>>, %arg4: memref<1x32xf32, #tpu.memory_space<vmem>>, %arg5: memref<8x32xf32, #tpu.memory_space<vmem>>, %arg6: memref<64x32xf32, #tpu.memory_space<vmem>>, %arg7: memref<1x32xf32, #tpu.memory_space<vmem>>, %arg8: memref<1x32xf32, #tpu.memory_space<vmem>>, %arg9: memref<2x1x32xf32, #tpu.memory_space<vmem>>, %arg10: memref<2x1x32xf32, #tpu.memory_space<vmem>>, %arg11: memref<2x32x96xf32, #tpu.memory_space<vmem>>, %arg12: memref<2x1x96xf32, #tpu.memory_space<vmem>>, %arg13: memref<2x32x32xf32, #tpu.memory_space<vmem>>, %arg14: memref<2x1x32xf32, #tpu.memory_space<vmem>>, %arg15: memref<2x1x32xf32, #tpu.memory_space<vmem>>, %arg16: memref<2x1x32xf32, #tpu.memory_space<vmem>>, %arg17: memref<2x32x128xf32, #tpu.memory_space<vmem>>, %arg18: memref<2x1x128xf32, #tpu.memory_space<vmem>>, %arg19: memref<2x128x32xf32, #tpu.memory_space<vmem>>, %arg20: memref<2x1x32xf32, #tpu.memory_space<vmem>>, %arg21: memref<2x8x64xf32, #tpu.memory_space<vmem>>, %arg22: memref<1x1xf32, #tpu.memory_space<vmem>>) attributes {dimension_semantics = [#tpu.dimension_semantics<arbitrary>], iteration_bounds = array<i64: 1>, scalar_prefetch = 0 : i64, scratch_operands = 0 : i64, tpu.core_type = #tpu.core_type<tc>, window_params = [{pipeline_mode = #tpu.pipeline_mode<synchronous>, transform_indices = @transform_0, window_bounds = array<i64: 16, 16>}, {pipeline_mode = #tpu.pipeline_mode<synchronous>, transform_indices = @transform_1, window_bounds = array<i64: 2, 8, 1>}, {pipeline_mode = #tpu.pipeline_mode<synchronous>, transform_indices = @transform_2, window_bounds = array<i64: 16, 32>}, {pipeline_mode = #tpu.pipeline_mode<synchronous>, transform_indices = @transform_3, window_bounds = array<i64: 1, 32>}, {transform_indices = @transform_4, window_bounds = array<i64: 8, 32>}, {pipeline_mode = #tpu.pipeline_mode<synchronous>, transform_indices = @transform_5, window_bounds = array<i64: 64, 32>}, {pipeline_mode = #tpu.pipeline_mode<synchronous>, transform_indices = @transform_6, window_bounds = array<i64: 1, 32>}, {pipeline_mode = #tpu.pipeline_mode<synchronous>, transform_indices = @transform_7, window_bounds = array<i64: 1, 32>}, {pipeline_mode = #tpu.pipeline_mode<synchronous>, transform_indices = @transform_8, window_bounds = array<i64: 2, 1, 32>}, {pipeline_mode = #tpu.pipeline_mode<synchronous>, transform_indices = @transform_9, window_bounds = array<i64: 2, 1, 32>}, {pipeline_mode = #tpu.pipeline_mode<synchronous>, transform_indices = @transform_10, window_bounds = array<i64: 2, 32, 96>}, {pipeline_mode = #tpu.pipeline_mode<synchronous>, transform_indices = @transform_11, window_bounds = array<i64: 2, 1, 96>}, {pipeline_mode = #tpu.pipeline_mode<synchronous>, transform_indices = @transform_12, window_bounds = array<i64: 2, 32, 32>}, {pipeline_mode = #tpu.pipeline_mode<synchronous>, transform_indices = @transform_13, window_bounds = array<i64: 2, 1, 32>}, {pipeline_mode = #tpu.pipeline_mode<synchronous>, transform_indices = @transform_14, window_bounds = array<i64: 2, 1, 32>}, {pipeline_mode = #tpu.pipeline_mode<synchronous>, transform_indices = @transform_15, window_bounds = array<i64: 2, 1, 32>}, {pipeline_mode = #tpu.pipeline_mode<synchronous>, transform_indices = @transform_16, window_bounds = array<i64: 2, 32, 128>}, {pipeline_mode = #tpu.pipeline_mode<synchronous>, transform_indices = @transform_17, window_bounds = array<i64: 2, 1, 128>}, {pipeline_mode = #tpu.pipeline_mode<synchronous>, transform_indices = @transform_18, window_bounds = array<i64: 2, 128, 32>}, {pipeline_mode = #tpu.pipeline_mode<synchronous>, transform_indices = @transform_19, window_bounds = array<i64: 2, 1, 32>}, {pipeline_mode = #tpu.pipeline_mode<synchronous>, transform_indices = @transform_20, window_bounds = array<i64: 2, 8, 64>}, {pipeline_mode = #tpu.pipeline_mode<synchronous>, transform_indices = @transform_21, window_bounds = array<i64: 1, 1>}]} {
    %c0 = arith.constant 0 : index
    %c0_0 = arith.constant 0 : index
    %0 = vector.load %arg1[%c0, %c0_0] : memref<16x16xf32, #tpu.memory_space<vmem>>, vector<16x16xf32>
    %c0_1 = arith.constant 0 : index
    %c0_2 = arith.constant 0 : index
    %1 = vector.load %arg3[%c0_1, %c0_2] : memref<16x32xf32, #tpu.memory_space<vmem>>, vector<16x32xf32>
    %c0_3 = arith.constant 0 : index
    %c0_4 = arith.constant 0 : index
    %2 = vector.load %arg4[%c0_3, %c0_4] : memref<1x32xf32, #tpu.memory_space<vmem>>, vector<1x32xf32>
    %3 = arith.truncf %0 : vector<16x16xf32> to vector<16x16xbf16>
    %4 = arith.truncf %1 : vector<16x32xf32> to vector<16x32xbf16>
    %cst = arith.constant dense<0.000000e+00> : vector<16x32xf32>
    %5 = tpu.matmul %3, %4, %cst {dimension_numbers = #tpu.dot_dimension_numbers<[1], [0], [0], [1], [0, 0, 1, 1], [], []>} : vector<16x16xbf16>, vector<16x32xbf16>, vector<16x32xf32> -> vector<16x32xf32>
    %6 = vector.broadcast %2 : vector<1x32xf32> to vector<16x32xf32>
    %7 = arith.addf %5, %6 : vector<16x32xf32>
    %8 = vector.shape_cast %7 : vector<16x32xf32> to vector<2x8x32xf32>
    %c0_5 = arith.constant 0 : index
    %c0_6 = arith.constant 0 : index
    %9 = vector.load %arg5[%c0_5, %c0_6] : memref<8x32xf32, #tpu.memory_space<vmem>>, vector<8x32xf32>
    %10 = vector.shape_cast %9 : vector<8x32xf32> to vector<1x8x32xf32>
    %11 = vector.broadcast %10 : vector<1x8x32xf32> to vector<2x8x32xf32>
    %12 = arith.addf %8, %11 : vector<2x8x32xf32>
    %13 = vector.shape_cast %12 : vector<2x8x32xf32> to vector<16x32xf32>
    %14 = tpu.iota {dimensions = array<i32: 0>} : vector<8x8xi32>
    %15 = tpu.iota {dimensions = array<i32: 1>} : vector<8x8xi32>
    %16 = arith.cmpi sle, %15, %14 : vector<8x8xi32>
    %c0_7 = arith.constant 0 : index
    %c0_8 = arith.constant 0 : index
    %c0_9 = arith.constant 0 : index
    %17 = vector.load %arg9[%c0_7, %c0_8, %c0_9] : memref<2x1x32xf32, #tpu.memory_space<vmem>>, vector<1x1x32xf32>
    %18 = vector.shape_cast %17 : vector<1x1x32xf32> to vector<1x32xf32>
    %c0_10 = arith.constant 0 : index
    %c0_11 = arith.constant 0 : index
    %c0_12 = arith.constant 0 : index
    %19 = vector.load %arg10[%c0_10, %c0_11, %c0_12] : memref<2x1x32xf32, #tpu.memory_space<vmem>>, vector<1x1x32xf32>
    %20 = vector.shape_cast %19 : vector<1x1x32xf32> to vector<1x32xf32>
    %cst_13 = arith.constant dense<0.000000e+00> : vector<16xf32>
    %21 = vector.multi_reduction <add>, %13, %cst_13 [1] : vector<16x32xf32> to vector<16xf32>
    %22 = vector.shape_cast %21 : vector<16xf32> to vector<16x1xf32>
    %cst_14 = arith.constant 3.200000e+01 : f32
    %23 = vector.broadcast %cst_14 : f32 to vector<16x1xf32>
    %24 = arith.divf %22, %23 : vector<16x1xf32>
    %25 = vector.broadcast %24 : vector<16x1xf32> to vector<16x32xf32>
    %26 = arith.subf %13, %25 : vector<16x32xf32>
    %27 = arith.mulf %26, %26 : vector<16x32xf32>
    %cst_15 = arith.constant dense<0.000000e+00> : vector<16xf32>
    %28 = vector.multi_reduction <add>, %27, %cst_15 [1] : vector<16x32xf32> to vector<16xf32>
    %29 = vector.shape_cast %28 : vector<16xf32> to vector<16x1xf32>
    %cst_16 = arith.constant 3.200000e+01 : f32
    %30 = vector.broadcast %cst_16 : f32 to vector<16x1xf32>
    %31 = arith.divf %29, %30 : vector<16x1xf32>
    %cst_17 = arith.constant 9.99999974E-6 : f32
    %32 = vector.broadcast %cst_17 : f32 to vector<16x1xf32>
    %33 = arith.addf %31, %32 : vector<16x1xf32>
    %34 = math.rsqrt %33 : vector<16x1xf32>
    %35 = vector.broadcast %34 : vector<16x1xf32> to vector<16x32xf32>
    %36 = arith.mulf %26, %35 : vector<16x32xf32>
    %37 = vector.broadcast %18 : vector<1x32xf32> to vector<16x32xf32>
    %38 = arith.mulf %36, %37 : vector<16x32xf32>
    %39 = vector.broadcast %20 : vector<1x32xf32> to vector<16x32xf32>
    %40 = arith.addf %38, %39 : vector<16x32xf32>
    %c0_18 = arith.constant 0 : index
    %c0_19 = arith.constant 0 : index
    %c0_20 = arith.constant 0 : index
    %41 = vector.load %arg11[%c0_18, %c0_19, %c0_20] : memref<2x32x96xf32, #tpu.memory_space<vmem>>, vector<1x32x96xf32>
    %42 = vector.shape_cast %41 : vector<1x32x96xf32> to vector<32x96xf32>
    %c0_21 = arith.constant 0 : index
    %c0_22 = arith.constant 0 : index
    %c0_23 = arith.constant 0 : index
    %43 = vector.load %arg12[%c0_21, %c0_22, %c0_23] : memref<2x1x96xf32, #tpu.memory_space<vmem>>, vector<1x1x96xf32>
    %44 = vector.shape_cast %43 : vector<1x1x96xf32> to vector<1x96xf32>
    %45 = arith.truncf %40 : vector<16x32xf32> to vector<16x32xbf16>
    %46 = arith.truncf %42 : vector<32x96xf32> to vector<32x96xbf16>
    %cst_24 = arith.constant dense<0.000000e+00> : vector<16x96xf32>
    %47 = tpu.matmul %45, %46, %cst_24 {dimension_numbers = #tpu.dot_dimension_numbers<[1], [0], [0], [1], [0, 0, 1, 1], [], []>} : vector<16x32xbf16>, vector<32x96xbf16>, vector<16x96xf32> -> vector<16x96xf32>
    %48 = vector.broadcast %44 : vector<1x96xf32> to vector<16x96xf32>
    %49 = arith.addf %47, %48 : vector<16x96xf32>
    %50 = vector.extract_strided_slice %49 {offsets = [0, 0], sizes = [16, 8], strides = [1, 1]} : vector<16x96xf32> to vector<16x8xf32>
    %51 = vector.shape_cast %50 : vector<16x8xf32> to vector<2x8x8xf32>
    %52 = vector.extract_strided_slice %49 {offsets = [0, 32], sizes = [16, 8], strides = [1, 1]} : vector<16x96xf32> to vector<16x8xf32>
    %53 = vector.shape_cast %52 : vector<16x8xf32> to vector<2x8x8xf32>
    %54 = vector.extract_strided_slice %49 {offsets = [0, 64], sizes = [16, 8], strides = [1, 1]} : vector<16x96xf32> to vector<16x8xf32>
    %55 = vector.shape_cast %54 : vector<16x8xf32> to vector<2x8x8xf32>
    "tpu.trace_start"() <{level = 10 : i32, message = "bqd,bkd->bqk"}> : () -> ()
    %cst_25 = arith.constant dense<0.000000e+00> : vector<2x8x8xf32>
    %56 = tpu.matmul %51, %53, %cst_25 {dimension_numbers = #tpu.dot_dimension_numbers<[2], [2], [1], [1], [0, 0, 0, 1, 1, 1], [0], [0]>} : vector<2x8x8xf32>, vector<2x8x8xf32>, vector<2x8x8xf32> -> vector<2x8x8xf32>
    "tpu.trace_stop"() : () -> ()
    %cst_26 = arith.constant 0.353553385 : f32
    %57 = vector.broadcast %cst_26 : f32 to vector<2x8x8xf32>
    %58 = arith.mulf %56, %57 : vector<2x8x8xf32>
    %cst_27 = arith.constant -1.000000e+30 : f32
    %59 = vector.shape_cast %16 : vector<8x8xi1> to vector<1x8x8xi1>
    %60 = vector.broadcast %59 : vector<1x8x8xi1> to vector<2x8x8xi1>
    %61 = vector.broadcast %cst_27 : f32 to vector<2x8x8xf32>
    %62 = arith.select %60, %58, %61 : vector<2x8x8xi1>, vector<2x8x8xf32>
    %cst_28 = arith.constant dense<0xFF800000> : vector<2x8xf32>
    %63 = vector.multi_reduction <maximumf>, %62, %cst_28 [2] : vector<2x8x8xf32> to vector<2x8xf32>
    %64 = vector.shape_cast %63 : vector<2x8xf32> to vector<2x8x1xf32>
    %65 = vector.broadcast %64 : vector<2x8x1xf32> to vector<2x8x8xf32>
    %66 = arith.subf %62, %65 : vector<2x8x8xf32>
    %67 = math.exp %66 : vector<2x8x8xf32>
    %cst_29 = arith.constant dense<0.000000e+00> : vector<2x8xf32>
    %68 = vector.multi_reduction <add>, %67, %cst_29 [2] : vector<2x8x8xf32> to vector<2x8xf32>
    %69 = vector.shape_cast %68 : vector<2x8xf32> to vector<2x8x1xf32>
    %70 = tpu.reciprocal %69 {approx = true} : vector<2x8x1xf32> -> vector<2x8x1xf32>
    %71 = vector.broadcast %70 : vector<2x8x1xf32> to vector<2x8x8xf32>
    %72 = arith.mulf %67, %71 : vector<2x8x8xf32>
    "tpu.trace_start"() <{level = 10 : i32, message = "bqk,bkd->bqd"}> : () -> ()
    %cst_30 = arith.constant dense<0.000000e+00> : vector<2x8x8xf32>
    %73 = tpu.matmul %72, %55, %cst_30 {dimension_numbers = #tpu.dot_dimension_numbers<[2], [1], [1], [2], [0, 0, 0, 1, 1, 2], [0], [0]>} : vector<2x8x8xf32>, vector<2x8x8xf32>, vector<2x8x8xf32> -> vector<2x8x8xf32>
    "tpu.trace_stop"() : () -> ()
    %74 = vector.extract_strided_slice %49 {offsets = [0, 8], sizes = [16, 8], strides = [1, 1]} : vector<16x96xf32> to vector<16x8xf32>
    %75 = vector.shape_cast %74 : vector<16x8xf32> to vector<2x8x8xf32>
    %76 = vector.extract_strided_slice %49 {offsets = [0, 40], sizes = [16, 8], strides = [1, 1]} : vector<16x96xf32> to vector<16x8xf32>
    %77 = vector.shape_cast %76 : vector<16x8xf32> to vector<2x8x8xf32>
    %78 = vector.extract_strided_slice %49 {offsets = [0, 72], sizes = [16, 8], strides = [1, 1]} : vector<16x96xf32> to vector<16x8xf32>
    %79 = vector.shape_cast %78 : vector<16x8xf32> to vector<2x8x8xf32>
    "tpu.trace_start"() <{level = 10 : i32, message = "bqd,bkd->bqk"}> : () -> ()
    %cst_31 = arith.constant dense<0.000000e+00> : vector<2x8x8xf32>
    %80 = tpu.matmul %75, %77, %cst_31 {dimension_numbers = #tpu.dot_dimension_numbers<[2], [2], [1], [1], [0, 0, 0, 1, 1, 1], [0], [0]>} : vector<2x8x8xf32>, vector<2x8x8xf32>, vector<2x8x8xf32> -> vector<2x8x8xf32>
    "tpu.trace_stop"() : () -> ()
    %cst_32 = arith.constant 0.353553385 : f32
    %81 = vector.broadcast %cst_32 : f32 to vector<2x8x8xf32>
    %82 = arith.mulf %80, %81 : vector<2x8x8xf32>
    %cst_33 = arith.constant -1.000000e+30 : f32
    %83 = vector.shape_cast %16 : vector<8x8xi1> to vector<1x8x8xi1>
    %84 = vector.broadcast %83 : vector<1x8x8xi1> to vector<2x8x8xi1>
    %85 = vector.broadcast %cst_33 : f32 to vector<2x8x8xf32>
    %86 = arith.select %84, %82, %85 : vector<2x8x8xi1>, vector<2x8x8xf32>
    %cst_34 = arith.constant dense<0xFF800000> : vector<2x8xf32>
    %87 = vector.multi_reduction <maximumf>, %86, %cst_34 [2] : vector<2x8x8xf32> to vector<2x8xf32>
    %88 = vector.shape_cast %87 : vector<2x8xf32> to vector<2x8x1xf32>
    %89 = vector.broadcast %88 : vector<2x8x1xf32> to vector<2x8x8xf32>
    %90 = arith.subf %86, %89 : vector<2x8x8xf32>
    %91 = math.exp %90 : vector<2x8x8xf32>
    %cst_35 = arith.constant dense<0.000000e+00> : vector<2x8xf32>
    %92 = vector.multi_reduction <add>, %91, %cst_35 [2] : vector<2x8x8xf32> to vector<2x8xf32>
    %93 = vector.shape_cast %92 : vector<2x8xf32> to vector<2x8x1xf32>
    %94 = tpu.reciprocal %93 {approx = true} : vector<2x8x1xf32> -> vector<2x8x1xf32>
    %95 = vector.broadcast %94 : vector<2x8x1xf32> to vector<2x8x8xf32>
    %96 = arith.mulf %91, %95 : vector<2x8x8xf32>
    "tpu.trace_start"() <{level = 10 : i32, message = "bqk,bkd->bqd"}> : () -> ()
    %cst_36 = arith.constant dense<0.000000e+00> : vector<2x8x8xf32>
    %97 = tpu.matmul %96, %79, %cst_36 {dimension_numbers = #tpu.dot_dimension_numbers<[2], [1], [1], [2], [0, 0, 0, 1, 1, 2], [0], [0]>} : vector<2x8x8xf32>, vector<2x8x8xf32>, vector<2x8x8xf32> -> vector<2x8x8xf32>
    "tpu.trace_stop"() : () -> ()
    %98 = vector.extract_strided_slice %49 {offsets = [0, 16], sizes = [16, 8], strides = [1, 1]} : vector<16x96xf32> to vector<16x8xf32>
    %99 = vector.shape_cast %98 : vector<16x8xf32> to vector<2x8x8xf32>
    %100 = vector.extract_strided_slice %49 {offsets = [0, 48], sizes = [16, 8], strides = [1, 1]} : vector<16x96xf32> to vector<16x8xf32>
    %101 = vector.shape_cast %100 : vector<16x8xf32> to vector<2x8x8xf32>
    %102 = vector.extract_strided_slice %49 {offsets = [0, 80], sizes = [16, 8], strides = [1, 1]} : vector<16x96xf32> to vector<16x8xf32>
    %103 = vector.shape_cast %102 : vector<16x8xf32> to vector<2x8x8xf32>
    "tpu.trace_start"() <{level = 10 : i32, message = "bqd,bkd->bqk"}> : () -> ()
    %cst_37 = arith.constant dense<0.000000e+00> : vector<2x8x8xf32>
    %104 = tpu.matmul %99, %101, %cst_37 {dimension_numbers = #tpu.dot_dimension_numbers<[2], [2], [1], [1], [0, 0, 0, 1, 1, 1], [0], [0]>} : vector<2x8x8xf32>, vector<2x8x8xf32>, vector<2x8x8xf32> -> vector<2x8x8xf32>
    "tpu.trace_stop"() : () -> ()
    %cst_38 = arith.constant 0.353553385 : f32
    %105 = vector.broadcast %cst_38 : f32 to vector<2x8x8xf32>
    %106 = arith.mulf %104, %105 : vector<2x8x8xf32>
    %cst_39 = arith.constant -1.000000e+30 : f32
    %107 = vector.shape_cast %16 : vector<8x8xi1> to vector<1x8x8xi1>
    %108 = vector.broadcast %107 : vector<1x8x8xi1> to vector<2x8x8xi1>
    %109 = vector.broadcast %cst_39 : f32 to vector<2x8x8xf32>
    %110 = arith.select %108, %106, %109 : vector<2x8x8xi1>, vector<2x8x8xf32>
    %cst_40 = arith.constant dense<0xFF800000> : vector<2x8xf32>
    %111 = vector.multi_reduction <maximumf>, %110, %cst_40 [2] : vector<2x8x8xf32> to vector<2x8xf32>
    %112 = vector.shape_cast %111 : vector<2x8xf32> to vector<2x8x1xf32>
    %113 = vector.broadcast %112 : vector<2x8x1xf32> to vector<2x8x8xf32>
    %114 = arith.subf %110, %113 : vector<2x8x8xf32>
    %115 = math.exp %114 : vector<2x8x8xf32>
    %cst_41 = arith.constant dense<0.000000e+00> : vector<2x8xf32>
    %116 = vector.multi_reduction <add>, %115, %cst_41 [2] : vector<2x8x8xf32> to vector<2x8xf32>
    %117 = vector.shape_cast %116 : vector<2x8xf32> to vector<2x8x1xf32>
    %118 = tpu.reciprocal %117 {approx = true} : vector<2x8x1xf32> -> vector<2x8x1xf32>
    %119 = vector.broadcast %118 : vector<2x8x1xf32> to vector<2x8x8xf32>
    %120 = arith.mulf %115, %119 : vector<2x8x8xf32>
    "tpu.trace_start"() <{level = 10 : i32, message = "bqk,bkd->bqd"}> : () -> ()
    %cst_42 = arith.constant dense<0.000000e+00> : vector<2x8x8xf32>
    %121 = tpu.matmul %120, %103, %cst_42 {dimension_numbers = #tpu.dot_dimension_numbers<[2], [1], [1], [2], [0, 0, 0, 1, 1, 2], [0], [0]>} : vector<2x8x8xf32>, vector<2x8x8xf32>, vector<2x8x8xf32> -> vector<2x8x8xf32>
    "tpu.trace_stop"() : () -> ()
    %122 = vector.extract_strided_slice %49 {offsets = [0, 24], sizes = [16, 8], strides = [1, 1]} : vector<16x96xf32> to vector<16x8xf32>
    %123 = vector.shape_cast %122 : vector<16x8xf32> to vector<2x8x8xf32>
    %124 = vector.extract_strided_slice %49 {offsets = [0, 56], sizes = [16, 8], strides = [1, 1]} : vector<16x96xf32> to vector<16x8xf32>
    %125 = vector.shape_cast %124 : vector<16x8xf32> to vector<2x8x8xf32>
    %126 = vector.extract_strided_slice %49 {offsets = [0, 88], sizes = [16, 8], strides = [1, 1]} : vector<16x96xf32> to vector<16x8xf32>
    %127 = vector.shape_cast %126 : vector<16x8xf32> to vector<2x8x8xf32>
    "tpu.trace_start"() <{level = 10 : i32, message = "bqd,bkd->bqk"}> : () -> ()
    %cst_43 = arith.constant dense<0.000000e+00> : vector<2x8x8xf32>
    %128 = tpu.matmul %123, %125, %cst_43 {dimension_numbers = #tpu.dot_dimension_numbers<[2], [2], [1], [1], [0, 0, 0, 1, 1, 1], [0], [0]>} : vector<2x8x8xf32>, vector<2x8x8xf32>, vector<2x8x8xf32> -> vector<2x8x8xf32>
    "tpu.trace_stop"() : () -> ()
    %cst_44 = arith.constant 0.353553385 : f32
    %129 = vector.broadcast %cst_44 : f32 to vector<2x8x8xf32>
    %130 = arith.mulf %128, %129 : vector<2x8x8xf32>
    %cst_45 = arith.constant -1.000000e+30 : f32
    %131 = vector.shape_cast %16 : vector<8x8xi1> to vector<1x8x8xi1>
    %132 = vector.broadcast %131 : vector<1x8x8xi1> to vector<2x8x8xi1>
    %133 = vector.broadcast %cst_45 : f32 to vector<2x8x8xf32>
    %134 = arith.select %132, %130, %133 : vector<2x8x8xi1>, vector<2x8x8xf32>
    %cst_46 = arith.constant dense<0xFF800000> : vector<2x8xf32>
    %135 = vector.multi_reduction <maximumf>, %134, %cst_46 [2] : vector<2x8x8xf32> to vector<2x8xf32>
    %136 = vector.shape_cast %135 : vector<2x8xf32> to vector<2x8x1xf32>
    %137 = vector.broadcast %136 : vector<2x8x1xf32> to vector<2x8x8xf32>
    %138 = arith.subf %134, %137 : vector<2x8x8xf32>
    %139 = math.exp %138 : vector<2x8x8xf32>
    %cst_47 = arith.constant dense<0.000000e+00> : vector<2x8xf32>
    %140 = vector.multi_reduction <add>, %139, %cst_47 [2] : vector<2x8x8xf32> to vector<2x8xf32>
    %141 = vector.shape_cast %140 : vector<2x8xf32> to vector<2x8x1xf32>
    %142 = tpu.reciprocal %141 {approx = true} : vector<2x8x1xf32> -> vector<2x8x1xf32>
    %143 = vector.broadcast %142 : vector<2x8x1xf32> to vector<2x8x8xf32>
    %144 = arith.mulf %139, %143 : vector<2x8x8xf32>
    "tpu.trace_start"() <{level = 10 : i32, message = "bqk,bkd->bqd"}> : () -> ()
    %cst_48 = arith.constant dense<0.000000e+00> : vector<2x8x8xf32>
    %145 = tpu.matmul %144, %127, %cst_48 {dimension_numbers = #tpu.dot_dimension_numbers<[2], [1], [1], [2], [0, 0, 0, 1, 1, 2], [0], [0]>} : vector<2x8x8xf32>, vector<2x8x8xf32>, vector<2x8x8xf32> -> vector<2x8x8xf32>
    "tpu.trace_stop"() : () -> ()
    %146 = tpu.concatenate %73, %97, %121, %145 in 2 : vector<2x8x8xf32>, vector<2x8x8xf32>, vector<2x8x8xf32>, vector<2x8x8xf32> -> vector<2x8x32xf32>
    %147 = vector.shape_cast %146 : vector<2x8x32xf32> to vector<16x32xf32>
    %c0_49 = arith.constant 0 : index
    %c0_50 = arith.constant 0 : index
    %c0_51 = arith.constant 0 : index
    %148 = vector.load %arg13[%c0_49, %c0_50, %c0_51] : memref<2x32x32xf32, #tpu.memory_space<vmem>>, vector<1x32x32xf32>
    %149 = vector.shape_cast %148 : vector<1x32x32xf32> to vector<32x32xf32>
    %c0_52 = arith.constant 0 : index
    %c0_53 = arith.constant 0 : index
    %c0_54 = arith.constant 0 : index
    %150 = vector.load %arg14[%c0_52, %c0_53, %c0_54] : memref<2x1x32xf32, #tpu.memory_space<vmem>>, vector<1x1x32xf32>
    %151 = vector.shape_cast %150 : vector<1x1x32xf32> to vector<1x32xf32>
    %152 = arith.truncf %147 : vector<16x32xf32> to vector<16x32xbf16>
    %153 = arith.truncf %149 : vector<32x32xf32> to vector<32x32xbf16>
    %cst_55 = arith.constant dense<0.000000e+00> : vector<16x32xf32>
    %154 = tpu.matmul %152, %153, %cst_55 {dimension_numbers = #tpu.dot_dimension_numbers<[1], [0], [0], [1], [0, 0, 1, 1], [], []>} : vector<16x32xbf16>, vector<32x32xbf16>, vector<16x32xf32> -> vector<16x32xf32>
    %155 = vector.broadcast %151 : vector<1x32xf32> to vector<16x32xf32>
    %156 = arith.addf %154, %155 : vector<16x32xf32>
    %157 = arith.addf %13, %156 : vector<16x32xf32>
    %c0_56 = arith.constant 0 : index
    %c0_57 = arith.constant 0 : index
    %c0_58 = arith.constant 0 : index
    %158 = vector.load %arg15[%c0_56, %c0_57, %c0_58] : memref<2x1x32xf32, #tpu.memory_space<vmem>>, vector<1x1x32xf32>
    %159 = vector.shape_cast %158 : vector<1x1x32xf32> to vector<1x32xf32>
    %c0_59 = arith.constant 0 : index
    %c0_60 = arith.constant 0 : index
    %c0_61 = arith.constant 0 : index
    %160 = vector.load %arg16[%c0_59, %c0_60, %c0_61] : memref<2x1x32xf32, #tpu.memory_space<vmem>>, vector<1x1x32xf32>
    %161 = vector.shape_cast %160 : vector<1x1x32xf32> to vector<1x32xf32>
    %cst_62 = arith.constant dense<0.000000e+00> : vector<16xf32>
    %162 = vector.multi_reduction <add>, %157, %cst_62 [1] : vector<16x32xf32> to vector<16xf32>
    %163 = vector.shape_cast %162 : vector<16xf32> to vector<16x1xf32>
    %cst_63 = arith.constant 3.200000e+01 : f32
    %164 = vector.broadcast %cst_63 : f32 to vector<16x1xf32>
    %165 = arith.divf %163, %164 : vector<16x1xf32>
    %166 = vector.broadcast %165 : vector<16x1xf32> to vector<16x32xf32>
    %167 = arith.subf %157, %166 : vector<16x32xf32>
    %168 = arith.mulf %167, %167 : vector<16x32xf32>
    %cst_64 = arith.constant dense<0.000000e+00> : vector<16xf32>
    %169 = vector.multi_reduction <add>, %168, %cst_64 [1] : vector<16x32xf32> to vector<16xf32>
    %170 = vector.shape_cast %169 : vector<16xf32> to vector<16x1xf32>
    %cst_65 = arith.constant 3.200000e+01 : f32
    %171 = vector.broadcast %cst_65 : f32 to vector<16x1xf32>
    %172 = arith.divf %170, %171 : vector<16x1xf32>
    %cst_66 = arith.constant 9.99999974E-6 : f32
    %173 = vector.broadcast %cst_66 : f32 to vector<16x1xf32>
    %174 = arith.addf %172, %173 : vector<16x1xf32>
    %175 = math.rsqrt %174 : vector<16x1xf32>
    %176 = vector.broadcast %175 : vector<16x1xf32> to vector<16x32xf32>
    %177 = arith.mulf %167, %176 : vector<16x32xf32>
    %178 = vector.broadcast %159 : vector<1x32xf32> to vector<16x32xf32>
    %179 = arith.mulf %177, %178 : vector<16x32xf32>
    %180 = vector.broadcast %161 : vector<1x32xf32> to vector<16x32xf32>
    %181 = arith.addf %179, %180 : vector<16x32xf32>
    %c0_67 = arith.constant 0 : index
    %c0_68 = arith.constant 0 : index
    %c0_69 = arith.constant 0 : index
    %182 = vector.load %arg17[%c0_67, %c0_68, %c0_69] : memref<2x32x128xf32, #tpu.memory_space<vmem>>, vector<1x32x128xf32>
    %183 = vector.shape_cast %182 : vector<1x32x128xf32> to vector<32x128xf32>
    %c0_70 = arith.constant 0 : index
    %c0_71 = arith.constant 0 : index
    %c0_72 = arith.constant 0 : index
    %184 = vector.load %arg18[%c0_70, %c0_71, %c0_72] : memref<2x1x128xf32, #tpu.memory_space<vmem>>, vector<1x1x128xf32>
    %185 = vector.shape_cast %184 : vector<1x1x128xf32> to vector<1x128xf32>
    %186 = arith.truncf %181 : vector<16x32xf32> to vector<16x32xbf16>
    %187 = arith.truncf %183 : vector<32x128xf32> to vector<32x128xbf16>
    %cst_73 = arith.constant dense<0.000000e+00> : vector<16x128xf32>
    %188 = tpu.matmul %186, %187, %cst_73 {dimension_numbers = #tpu.dot_dimension_numbers<[1], [0], [0], [1], [0, 0, 1, 1], [], []>} : vector<16x32xbf16>, vector<32x128xbf16>, vector<16x128xf32> -> vector<16x128xf32>
    %189 = vector.broadcast %185 : vector<1x128xf32> to vector<16x128xf32>
    %190 = arith.addf %188, %189 : vector<16x128xf32>
    %cst_74 = arith.constant 5.000000e-01 : f32
    %191 = vector.broadcast %cst_74 : f32 to vector<16x128xf32>
    %192 = arith.mulf %191, %190 : vector<16x128xf32>
    %cst_75 = arith.constant 4.471500e-02 : f32
    %193 = vector.broadcast %cst_75 : f32 to vector<16x128xf32>
    %194 = arith.mulf %193, %190 : vector<16x128xf32>
    %195 = arith.mulf %194, %190 : vector<16x128xf32>
    %196 = arith.mulf %195, %190 : vector<16x128xf32>
    %197 = arith.addf %190, %196 : vector<16x128xf32>
    %cst_76 = arith.constant 0.797884583 : f32
    %198 = vector.broadcast %cst_76 : f32 to vector<16x128xf32>
    %199 = arith.mulf %198, %197 : vector<16x128xf32>
    %200 = math.tanh %199 : vector<16x128xf32>
    %cst_77 = arith.constant 1.000000e+00 : f32
    %201 = vector.broadcast %cst_77 : f32 to vector<16x128xf32>
    %202 = arith.addf %201, %200 : vector<16x128xf32>
    %203 = arith.mulf %192, %202 : vector<16x128xf32>
    %c0_78 = arith.constant 0 : index
    %c0_79 = arith.constant 0 : index
    %c0_80 = arith.constant 0 : index
    %204 = vector.load %arg19[%c0_78, %c0_79, %c0_80] : memref<2x128x32xf32, #tpu.memory_space<vmem>>, vector<1x128x32xf32>
    %205 = vector.shape_cast %204 : vector<1x128x32xf32> to vector<128x32xf32>
    %c0_81 = arith.constant 0 : index
    %c0_82 = arith.constant 0 : index
    %c0_83 = arith.constant 0 : index
    %206 = vector.load %arg20[%c0_81, %c0_82, %c0_83] : memref<2x1x32xf32, #tpu.memory_space<vmem>>, vector<1x1x32xf32>
    %207 = vector.shape_cast %206 : vector<1x1x32xf32> to vector<1x32xf32>
    %208 = arith.truncf %203 : vector<16x128xf32> to vector<16x128xbf16>
    %209 = arith.truncf %205 : vector<128x32xf32> to vector<128x32xbf16>
    %cst_84 = arith.constant dense<0.000000e+00> : vector<16x32xf32>
    %210 = tpu.matmul %208, %209, %cst_84 {dimension_numbers = #tpu.dot_dimension_numbers<[1], [0], [0], [1], [0, 0, 1, 1], [], []>} : vector<16x128xbf16>, vector<128x32xbf16>, vector<16x32xf32> -> vector<16x32xf32>
    %211 = vector.broadcast %207 : vector<1x32xf32> to vector<16x32xf32>
    %212 = arith.addf %210, %211 : vector<16x32xf32>
    %213 = arith.addf %157, %212 : vector<16x32xf32>
    %c1 = arith.constant 1 : index
    %c0_85 = arith.constant 0 : index
    %c0_86 = arith.constant 0 : index
    %214 = vector.load %arg9[%c1, %c0_85, %c0_86] : memref<2x1x32xf32, #tpu.memory_space<vmem>>, vector<1x1x32xf32>
    %215 = vector.shape_cast %214 : vector<1x1x32xf32> to vector<1x32xf32>
    %c1_87 = arith.constant 1 : index
    %c0_88 = arith.constant 0 : index
    %c0_89 = arith.constant 0 : index
    %216 = vector.load %arg10[%c1_87, %c0_88, %c0_89] : memref<2x1x32xf32, #tpu.memory_space<vmem>>, vector<1x1x32xf32>
    %217 = vector.shape_cast %216 : vector<1x1x32xf32> to vector<1x32xf32>
    %cst_90 = arith.constant dense<0.000000e+00> : vector<16xf32>
    %218 = vector.multi_reduction <add>, %213, %cst_90 [1] : vector<16x32xf32> to vector<16xf32>
    %219 = vector.shape_cast %218 : vector<16xf32> to vector<16x1xf32>
    %cst_91 = arith.constant 3.200000e+01 : f32
    %220 = vector.broadcast %cst_91 : f32 to vector<16x1xf32>
    %221 = arith.divf %219, %220 : vector<16x1xf32>
    %222 = vector.broadcast %221 : vector<16x1xf32> to vector<16x32xf32>
    %223 = arith.subf %213, %222 : vector<16x32xf32>
    %224 = arith.mulf %223, %223 : vector<16x32xf32>
    %cst_92 = arith.constant dense<0.000000e+00> : vector<16xf32>
    %225 = vector.multi_reduction <add>, %224, %cst_92 [1] : vector<16x32xf32> to vector<16xf32>
    %226 = vector.shape_cast %225 : vector<16xf32> to vector<16x1xf32>
    %cst_93 = arith.constant 3.200000e+01 : f32
    %227 = vector.broadcast %cst_93 : f32 to vector<16x1xf32>
    %228 = arith.divf %226, %227 : vector<16x1xf32>
    %cst_94 = arith.constant 9.99999974E-6 : f32
    %229 = vector.broadcast %cst_94 : f32 to vector<16x1xf32>
    %230 = arith.addf %228, %229 : vector<16x1xf32>
    %231 = math.rsqrt %230 : vector<16x1xf32>
    %232 = vector.broadcast %231 : vector<16x1xf32> to vector<16x32xf32>
    %233 = arith.mulf %223, %232 : vector<16x32xf32>
    %234 = vector.broadcast %215 : vector<1x32xf32> to vector<16x32xf32>
    %235 = arith.mulf %233, %234 : vector<16x32xf32>
    %236 = vector.broadcast %217 : vector<1x32xf32> to vector<16x32xf32>
    %237 = arith.addf %235, %236 : vector<16x32xf32>
    %c1_95 = arith.constant 1 : index
    %c0_96 = arith.constant 0 : index
    %c0_97 = arith.constant 0 : index
    %238 = vector.load %arg11[%c1_95, %c0_96, %c0_97] : memref<2x32x96xf32, #tpu.memory_space<vmem>>, vector<1x32x96xf32>
    %239 = vector.shape_cast %238 : vector<1x32x96xf32> to vector<32x96xf32>
    %c1_98 = arith.constant 1 : index
    %c0_99 = arith.constant 0 : index
    %c0_100 = arith.constant 0 : index
    %240 = vector.load %arg12[%c1_98, %c0_99, %c0_100] : memref<2x1x96xf32, #tpu.memory_space<vmem>>, vector<1x1x96xf32>
    %241 = vector.shape_cast %240 : vector<1x1x96xf32> to vector<1x96xf32>
    %242 = arith.truncf %237 : vector<16x32xf32> to vector<16x32xbf16>
    %243 = arith.truncf %239 : vector<32x96xf32> to vector<32x96xbf16>
    %cst_101 = arith.constant dense<0.000000e+00> : vector<16x96xf32>
    %244 = tpu.matmul %242, %243, %cst_101 {dimension_numbers = #tpu.dot_dimension_numbers<[1], [0], [0], [1], [0, 0, 1, 1], [], []>} : vector<16x32xbf16>, vector<32x96xbf16>, vector<16x96xf32> -> vector<16x96xf32>
    %245 = vector.broadcast %241 : vector<1x96xf32> to vector<16x96xf32>
    %246 = arith.addf %244, %245 : vector<16x96xf32>
    %247 = vector.extract_strided_slice %246 {offsets = [0, 0], sizes = [16, 8], strides = [1, 1]} : vector<16x96xf32> to vector<16x8xf32>
    %248 = vector.shape_cast %247 : vector<16x8xf32> to vector<2x8x8xf32>
    %249 = vector.extract_strided_slice %246 {offsets = [0, 32], sizes = [16, 8], strides = [1, 1]} : vector<16x96xf32> to vector<16x8xf32>
    %250 = vector.shape_cast %249 : vector<16x8xf32> to vector<2x8x8xf32>
    %251 = vector.extract_strided_slice %246 {offsets = [0, 64], sizes = [16, 8], strides = [1, 1]} : vector<16x96xf32> to vector<16x8xf32>
    %252 = vector.shape_cast %251 : vector<16x8xf32> to vector<2x8x8xf32>
    "tpu.trace_start"() <{level = 10 : i32, message = "bqd,bkd->bqk"}> : () -> ()
    %cst_102 = arith.constant dense<0.000000e+00> : vector<2x8x8xf32>
    %253 = tpu.matmul %248, %250, %cst_102 {dimension_numbers = #tpu.dot_dimension_numbers<[2], [2], [1], [1], [0, 0, 0, 1, 1, 1], [0], [0]>} : vector<2x8x8xf32>, vector<2x8x8xf32>, vector<2x8x8xf32> -> vector<2x8x8xf32>
    "tpu.trace_stop"() : () -> ()
    %cst_103 = arith.constant 0.353553385 : f32
    %254 = vector.broadcast %cst_103 : f32 to vector<2x8x8xf32>
    %255 = arith.mulf %253, %254 : vector<2x8x8xf32>
    %cst_104 = arith.constant -1.000000e+30 : f32
    %256 = vector.shape_cast %16 : vector<8x8xi1> to vector<1x8x8xi1>
    %257 = vector.broadcast %256 : vector<1x8x8xi1> to vector<2x8x8xi1>
    %258 = vector.broadcast %cst_104 : f32 to vector<2x8x8xf32>
    %259 = arith.select %257, %255, %258 : vector<2x8x8xi1>, vector<2x8x8xf32>
    %cst_105 = arith.constant dense<0xFF800000> : vector<2x8xf32>
    %260 = vector.multi_reduction <maximumf>, %259, %cst_105 [2] : vector<2x8x8xf32> to vector<2x8xf32>
    %261 = vector.shape_cast %260 : vector<2x8xf32> to vector<2x8x1xf32>
    %262 = vector.broadcast %261 : vector<2x8x1xf32> to vector<2x8x8xf32>
    %263 = arith.subf %259, %262 : vector<2x8x8xf32>
    %264 = math.exp %263 : vector<2x8x8xf32>
    %cst_106 = arith.constant dense<0.000000e+00> : vector<2x8xf32>
    %265 = vector.multi_reduction <add>, %264, %cst_106 [2] : vector<2x8x8xf32> to vector<2x8xf32>
    %266 = vector.shape_cast %265 : vector<2x8xf32> to vector<2x8x1xf32>
    %267 = tpu.reciprocal %266 {approx = true} : vector<2x8x1xf32> -> vector<2x8x1xf32>
    %268 = vector.broadcast %267 : vector<2x8x1xf32> to vector<2x8x8xf32>
    %269 = arith.mulf %264, %268 : vector<2x8x8xf32>
    "tpu.trace_start"() <{level = 10 : i32, message = "bqk,bkd->bqd"}> : () -> ()
    %cst_107 = arith.constant dense<0.000000e+00> : vector<2x8x8xf32>
    %270 = tpu.matmul %269, %252, %cst_107 {dimension_numbers = #tpu.dot_dimension_numbers<[2], [1], [1], [2], [0, 0, 0, 1, 1, 2], [0], [0]>} : vector<2x8x8xf32>, vector<2x8x8xf32>, vector<2x8x8xf32> -> vector<2x8x8xf32>
    "tpu.trace_stop"() : () -> ()
    %271 = vector.extract_strided_slice %246 {offsets = [0, 8], sizes = [16, 8], strides = [1, 1]} : vector<16x96xf32> to vector<16x8xf32>
    %272 = vector.shape_cast %271 : vector<16x8xf32> to vector<2x8x8xf32>
    %273 = vector.extract_strided_slice %246 {offsets = [0, 40], sizes = [16, 8], strides = [1, 1]} : vector<16x96xf32> to vector<16x8xf32>
    %274 = vector.shape_cast %273 : vector<16x8xf32> to vector<2x8x8xf32>
    %275 = vector.extract_strided_slice %246 {offsets = [0, 72], sizes = [16, 8], strides = [1, 1]} : vector<16x96xf32> to vector<16x8xf32>
    %276 = vector.shape_cast %275 : vector<16x8xf32> to vector<2x8x8xf32>
    "tpu.trace_start"() <{level = 10 : i32, message = "bqd,bkd->bqk"}> : () -> ()
    %cst_108 = arith.constant dense<0.000000e+00> : vector<2x8x8xf32>
    %277 = tpu.matmul %272, %274, %cst_108 {dimension_numbers = #tpu.dot_dimension_numbers<[2], [2], [1], [1], [0, 0, 0, 1, 1, 1], [0], [0]>} : vector<2x8x8xf32>, vector<2x8x8xf32>, vector<2x8x8xf32> -> vector<2x8x8xf32>
    "tpu.trace_stop"() : () -> ()
    %cst_109 = arith.constant 0.353553385 : f32
    %278 = vector.broadcast %cst_109 : f32 to vector<2x8x8xf32>
    %279 = arith.mulf %277, %278 : vector<2x8x8xf32>
    %cst_110 = arith.constant -1.000000e+30 : f32
    %280 = vector.shape_cast %16 : vector<8x8xi1> to vector<1x8x8xi1>
    %281 = vector.broadcast %280 : vector<1x8x8xi1> to vector<2x8x8xi1>
    %282 = vector.broadcast %cst_110 : f32 to vector<2x8x8xf32>
    %283 = arith.select %281, %279, %282 : vector<2x8x8xi1>, vector<2x8x8xf32>
    %cst_111 = arith.constant dense<0xFF800000> : vector<2x8xf32>
    %284 = vector.multi_reduction <maximumf>, %283, %cst_111 [2] : vector<2x8x8xf32> to vector<2x8xf32>
    %285 = vector.shape_cast %284 : vector<2x8xf32> to vector<2x8x1xf32>
    %286 = vector.broadcast %285 : vector<2x8x1xf32> to vector<2x8x8xf32>
    %287 = arith.subf %283, %286 : vector<2x8x8xf32>
    %288 = math.exp %287 : vector<2x8x8xf32>
    %cst_112 = arith.constant dense<0.000000e+00> : vector<2x8xf32>
    %289 = vector.multi_reduction <add>, %288, %cst_112 [2] : vector<2x8x8xf32> to vector<2x8xf32>
    %290 = vector.shape_cast %289 : vector<2x8xf32> to vector<2x8x1xf32>
    %291 = tpu.reciprocal %290 {approx = true} : vector<2x8x1xf32> -> vector<2x8x1xf32>
    %292 = vector.broadcast %291 : vector<2x8x1xf32> to vector<2x8x8xf32>
    %293 = arith.mulf %288, %292 : vector<2x8x8xf32>
    "tpu.trace_start"() <{level = 10 : i32, message = "bqk,bkd->bqd"}> : () -> ()
    %cst_113 = arith.constant dense<0.000000e+00> : vector<2x8x8xf32>
    %294 = tpu.matmul %293, %276, %cst_113 {dimension_numbers = #tpu.dot_dimension_numbers<[2], [1], [1], [2], [0, 0, 0, 1, 1, 2], [0], [0]>} : vector<2x8x8xf32>, vector<2x8x8xf32>, vector<2x8x8xf32> -> vector<2x8x8xf32>
    "tpu.trace_stop"() : () -> ()
    %295 = vector.extract_strided_slice %246 {offsets = [0, 16], sizes = [16, 8], strides = [1, 1]} : vector<16x96xf32> to vector<16x8xf32>
    %296 = vector.shape_cast %295 : vector<16x8xf32> to vector<2x8x8xf32>
    %297 = vector.extract_strided_slice %246 {offsets = [0, 48], sizes = [16, 8], strides = [1, 1]} : vector<16x96xf32> to vector<16x8xf32>
    %298 = vector.shape_cast %297 : vector<16x8xf32> to vector<2x8x8xf32>
    %299 = vector.extract_strided_slice %246 {offsets = [0, 80], sizes = [16, 8], strides = [1, 1]} : vector<16x96xf32> to vector<16x8xf32>
    %300 = vector.shape_cast %299 : vector<16x8xf32> to vector<2x8x8xf32>
    "tpu.trace_start"() <{level = 10 : i32, message = "bqd,bkd->bqk"}> : () -> ()
    %cst_114 = arith.constant dense<0.000000e+00> : vector<2x8x8xf32>
    %301 = tpu.matmul %296, %298, %cst_114 {dimension_numbers = #tpu.dot_dimension_numbers<[2], [2], [1], [1], [0, 0, 0, 1, 1, 1], [0], [0]>} : vector<2x8x8xf32>, vector<2x8x8xf32>, vector<2x8x8xf32> -> vector<2x8x8xf32>
    "tpu.trace_stop"() : () -> ()
    %cst_115 = arith.constant 0.353553385 : f32
    %302 = vector.broadcast %cst_115 : f32 to vector<2x8x8xf32>
    %303 = arith.mulf %301, %302 : vector<2x8x8xf32>
    %cst_116 = arith.constant -1.000000e+30 : f32
    %304 = vector.shape_cast %16 : vector<8x8xi1> to vector<1x8x8xi1>
    %305 = vector.broadcast %304 : vector<1x8x8xi1> to vector<2x8x8xi1>
    %306 = vector.broadcast %cst_116 : f32 to vector<2x8x8xf32>
    %307 = arith.select %305, %303, %306 : vector<2x8x8xi1>, vector<2x8x8xf32>
    %cst_117 = arith.constant dense<0xFF800000> : vector<2x8xf32>
    %308 = vector.multi_reduction <maximumf>, %307, %cst_117 [2] : vector<2x8x8xf32> to vector<2x8xf32>
    %309 = vector.shape_cast %308 : vector<2x8xf32> to vector<2x8x1xf32>
    %310 = vector.broadcast %309 : vector<2x8x1xf32> to vector<2x8x8xf32>
    %311 = arith.subf %307, %310 : vector<2x8x8xf32>
    %312 = math.exp %311 : vector<2x8x8xf32>
    %cst_118 = arith.constant dense<0.000000e+00> : vector<2x8xf32>
    %313 = vector.multi_reduction <add>, %312, %cst_118 [2] : vector<2x8x8xf32> to vector<2x8xf32>
    %314 = vector.shape_cast %313 : vector<2x8xf32> to vector<2x8x1xf32>
    %315 = tpu.reciprocal %314 {approx = true} : vector<2x8x1xf32> -> vector<2x8x1xf32>
    %316 = vector.broadcast %315 : vector<2x8x1xf32> to vector<2x8x8xf32>
    %317 = arith.mulf %312, %316 : vector<2x8x8xf32>
    "tpu.trace_start"() <{level = 10 : i32, message = "bqk,bkd->bqd"}> : () -> ()
    %cst_119 = arith.constant dense<0.000000e+00> : vector<2x8x8xf32>
    %318 = tpu.matmul %317, %300, %cst_119 {dimension_numbers = #tpu.dot_dimension_numbers<[2], [1], [1], [2], [0, 0, 0, 1, 1, 2], [0], [0]>} : vector<2x8x8xf32>, vector<2x8x8xf32>, vector<2x8x8xf32> -> vector<2x8x8xf32>
    "tpu.trace_stop"() : () -> ()
    %319 = vector.extract_strided_slice %246 {offsets = [0, 24], sizes = [16, 8], strides = [1, 1]} : vector<16x96xf32> to vector<16x8xf32>
    %320 = vector.shape_cast %319 : vector<16x8xf32> to vector<2x8x8xf32>
    %321 = vector.extract_strided_slice %246 {offsets = [0, 56], sizes = [16, 8], strides = [1, 1]} : vector<16x96xf32> to vector<16x8xf32>
    %322 = vector.shape_cast %321 : vector<16x8xf32> to vector<2x8x8xf32>
    %323 = vector.extract_strided_slice %246 {offsets = [0, 88], sizes = [16, 8], strides = [1, 1]} : vector<16x96xf32> to vector<16x8xf32>
    %324 = vector.shape_cast %323 : vector<16x8xf32> to vector<2x8x8xf32>
    "tpu.trace_start"() <{level = 10 : i32, message = "bqd,bkd->bqk"}> : () -> ()
    %cst_120 = arith.constant dense<0.000000e+00> : vector<2x8x8xf32>
    %325 = tpu.matmul %320, %322, %cst_120 {dimension_numbers = #tpu.dot_dimension_numbers<[2], [2], [1], [1], [0, 0, 0, 1, 1, 1], [0], [0]>} : vector<2x8x8xf32>, vector<2x8x8xf32>, vector<2x8x8xf32> -> vector<2x8x8xf32>
    "tpu.trace_stop"() : () -> ()
    %cst_121 = arith.constant 0.353553385 : f32
    %326 = vector.broadcast %cst_121 : f32 to vector<2x8x8xf32>
    %327 = arith.mulf %325, %326 : vector<2x8x8xf32>
    %cst_122 = arith.constant -1.000000e+30 : f32
    %328 = vector.shape_cast %16 : vector<8x8xi1> to vector<1x8x8xi1>
    %329 = vector.broadcast %328 : vector<1x8x8xi1> to vector<2x8x8xi1>
    %330 = vector.broadcast %cst_122 : f32 to vector<2x8x8xf32>
    %331 = arith.select %329, %327, %330 : vector<2x8x8xi1>, vector<2x8x8xf32>
    %cst_123 = arith.constant dense<0xFF800000> : vector<2x8xf32>
    %332 = vector.multi_reduction <maximumf>, %331, %cst_123 [2] : vector<2x8x8xf32> to vector<2x8xf32>
    %333 = vector.shape_cast %332 : vector<2x8xf32> to vector<2x8x1xf32>
    %334 = vector.broadcast %333 : vector<2x8x1xf32> to vector<2x8x8xf32>
    %335 = arith.subf %331, %334 : vector<2x8x8xf32>
    %336 = math.exp %335 : vector<2x8x8xf32>
    %cst_124 = arith.constant dense<0.000000e+00> : vector<2x8xf32>
    %337 = vector.multi_reduction <add>, %336, %cst_124 [2] : vector<2x8x8xf32> to vector<2x8xf32>
    %338 = vector.shape_cast %337 : vector<2x8xf32> to vector<2x8x1xf32>
    %339 = tpu.reciprocal %338 {approx = true} : vector<2x8x1xf32> -> vector<2x8x1xf32>
    %340 = vector.broadcast %339 : vector<2x8x1xf32> to vector<2x8x8xf32>
    %341 = arith.mulf %336, %340 : vector<2x8x8xf32>
    "tpu.trace_start"() <{level = 10 : i32, message = "bqk,bkd->bqd"}> : () -> ()
    %cst_125 = arith.constant dense<0.000000e+00> : vector<2x8x8xf32>
    %342 = tpu.matmul %341, %324, %cst_125 {dimension_numbers = #tpu.dot_dimension_numbers<[2], [1], [1], [2], [0, 0, 0, 1, 1, 2], [0], [0]>} : vector<2x8x8xf32>, vector<2x8x8xf32>, vector<2x8x8xf32> -> vector<2x8x8xf32>
    "tpu.trace_stop"() : () -> ()
    %343 = tpu.concatenate %270, %294, %318, %342 in 2 : vector<2x8x8xf32>, vector<2x8x8xf32>, vector<2x8x8xf32>, vector<2x8x8xf32> -> vector<2x8x32xf32>
    %344 = vector.shape_cast %343 : vector<2x8x32xf32> to vector<16x32xf32>
    %c1_126 = arith.constant 1 : index
    %c0_127 = arith.constant 0 : index
    %c0_128 = arith.constant 0 : index
    %345 = vector.load %arg13[%c1_126, %c0_127, %c0_128] : memref<2x32x32xf32, #tpu.memory_space<vmem>>, vector<1x32x32xf32>
    %346 = vector.shape_cast %345 : vector<1x32x32xf32> to vector<32x32xf32>
    %c1_129 = arith.constant 1 : index
    %c0_130 = arith.constant 0 : index
    %c0_131 = arith.constant 0 : index
    %347 = vector.load %arg14[%c1_129, %c0_130, %c0_131] : memref<2x1x32xf32, #tpu.memory_space<vmem>>, vector<1x1x32xf32>
    %348 = vector.shape_cast %347 : vector<1x1x32xf32> to vector<1x32xf32>
    %349 = arith.truncf %344 : vector<16x32xf32> to vector<16x32xbf16>
    %350 = arith.truncf %346 : vector<32x32xf32> to vector<32x32xbf16>
    %cst_132 = arith.constant dense<0.000000e+00> : vector<16x32xf32>
    %351 = tpu.matmul %349, %350, %cst_132 {dimension_numbers = #tpu.dot_dimension_numbers<[1], [0], [0], [1], [0, 0, 1, 1], [], []>} : vector<16x32xbf16>, vector<32x32xbf16>, vector<16x32xf32> -> vector<16x32xf32>
    %352 = vector.broadcast %348 : vector<1x32xf32> to vector<16x32xf32>
    %353 = arith.addf %351, %352 : vector<16x32xf32>
    %354 = arith.addf %213, %353 : vector<16x32xf32>
    %c1_133 = arith.constant 1 : index
    %c0_134 = arith.constant 0 : index
    %c0_135 = arith.constant 0 : index
    %355 = vector.load %arg15[%c1_133, %c0_134, %c0_135] : memref<2x1x32xf32, #tpu.memory_space<vmem>>, vector<1x1x32xf32>
    %356 = vector.shape_cast %355 : vector<1x1x32xf32> to vector<1x32xf32>
    %c1_136 = arith.constant 1 : index
    %c0_137 = arith.constant 0 : index
    %c0_138 = arith.constant 0 : index
    %357 = vector.load %arg16[%c1_136, %c0_137, %c0_138] : memref<2x1x32xf32, #tpu.memory_space<vmem>>, vector<1x1x32xf32>
    %358 = vector.shape_cast %357 : vector<1x1x32xf32> to vector<1x32xf32>
    %cst_139 = arith.constant dense<0.000000e+00> : vector<16xf32>
    %359 = vector.multi_reduction <add>, %354, %cst_139 [1] : vector<16x32xf32> to vector<16xf32>
    %360 = vector.shape_cast %359 : vector<16xf32> to vector<16x1xf32>
    %cst_140 = arith.constant 3.200000e+01 : f32
    %361 = vector.broadcast %cst_140 : f32 to vector<16x1xf32>
    %362 = arith.divf %360, %361 : vector<16x1xf32>
    %363 = vector.broadcast %362 : vector<16x1xf32> to vector<16x32xf32>
    %364 = arith.subf %354, %363 : vector<16x32xf32>
    %365 = arith.mulf %364, %364 : vector<16x32xf32>
    %cst_141 = arith.constant dense<0.000000e+00> : vector<16xf32>
    %366 = vector.multi_reduction <add>, %365, %cst_141 [1] : vector<16x32xf32> to vector<16xf32>
    %367 = vector.shape_cast %366 : vector<16xf32> to vector<16x1xf32>
    %cst_142 = arith.constant 3.200000e+01 : f32
    %368 = vector.broadcast %cst_142 : f32 to vector<16x1xf32>
    %369 = arith.divf %367, %368 : vector<16x1xf32>
    %cst_143 = arith.constant 9.99999974E-6 : f32
    %370 = vector.broadcast %cst_143 : f32 to vector<16x1xf32>
    %371 = arith.addf %369, %370 : vector<16x1xf32>
    %372 = math.rsqrt %371 : vector<16x1xf32>
    %373 = vector.broadcast %372 : vector<16x1xf32> to vector<16x32xf32>
    %374 = arith.mulf %364, %373 : vector<16x32xf32>
    %375 = vector.broadcast %356 : vector<1x32xf32> to vector<16x32xf32>
    %376 = arith.mulf %374, %375 : vector<16x32xf32>
    %377 = vector.broadcast %358 : vector<1x32xf32> to vector<16x32xf32>
    %378 = arith.addf %376, %377 : vector<16x32xf32>
    %c1_144 = arith.constant 1 : index
    %c0_145 = arith.constant 0 : index
    %c0_146 = arith.constant 0 : index
    %379 = vector.load %arg17[%c1_144, %c0_145, %c0_146] : memref<2x32x128xf32, #tpu.memory_space<vmem>>, vector<1x32x128xf32>
    %380 = vector.shape_cast %379 : vector<1x32x128xf32> to vector<32x128xf32>
    %c1_147 = arith.constant 1 : index
    %c0_148 = arith.constant 0 : index
    %c0_149 = arith.constant 0 : index
    %381 = vector.load %arg18[%c1_147, %c0_148, %c0_149] : memref<2x1x128xf32, #tpu.memory_space<vmem>>, vector<1x1x128xf32>
    %382 = vector.shape_cast %381 : vector<1x1x128xf32> to vector<1x128xf32>
    %383 = arith.truncf %378 : vector<16x32xf32> to vector<16x32xbf16>
    %384 = arith.truncf %380 : vector<32x128xf32> to vector<32x128xbf16>
    %cst_150 = arith.constant dense<0.000000e+00> : vector<16x128xf32>
    %385 = tpu.matmul %383, %384, %cst_150 {dimension_numbers = #tpu.dot_dimension_numbers<[1], [0], [0], [1], [0, 0, 1, 1], [], []>} : vector<16x32xbf16>, vector<32x128xbf16>, vector<16x128xf32> -> vector<16x128xf32>
    %386 = vector.broadcast %382 : vector<1x128xf32> to vector<16x128xf32>
    %387 = arith.addf %385, %386 : vector<16x128xf32>
    %cst_151 = arith.constant 5.000000e-01 : f32
    %388 = vector.broadcast %cst_151 : f32 to vector<16x128xf32>
    %389 = arith.mulf %388, %387 : vector<16x128xf32>
    %cst_152 = arith.constant 4.471500e-02 : f32
    %390 = vector.broadcast %cst_152 : f32 to vector<16x128xf32>
    %391 = arith.mulf %390, %387 : vector<16x128xf32>
    %392 = arith.mulf %391, %387 : vector<16x128xf32>
    %393 = arith.mulf %392, %387 : vector<16x128xf32>
    %394 = arith.addf %387, %393 : vector<16x128xf32>
    %cst_153 = arith.constant 0.797884583 : f32
    %395 = vector.broadcast %cst_153 : f32 to vector<16x128xf32>
    %396 = arith.mulf %395, %394 : vector<16x128xf32>
    %397 = math.tanh %396 : vector<16x128xf32>
    %cst_154 = arith.constant 1.000000e+00 : f32
    %398 = vector.broadcast %cst_154 : f32 to vector<16x128xf32>
    %399 = arith.addf %398, %397 : vector<16x128xf32>
    %400 = arith.mulf %389, %399 : vector<16x128xf32>
    %c1_155 = arith.constant 1 : index
    %c0_156 = arith.constant 0 : index
    %c0_157 = arith.constant 0 : index
    %401 = vector.load %arg19[%c1_155, %c0_156, %c0_157] : memref<2x128x32xf32, #tpu.memory_space<vmem>>, vector<1x128x32xf32>
    %402 = vector.shape_cast %401 : vector<1x128x32xf32> to vector<128x32xf32>
    %c1_158 = arith.constant 1 : index
    %c0_159 = arith.constant 0 : index
    %c0_160 = arith.constant 0 : index
    %403 = vector.load %arg20[%c1_158, %c0_159, %c0_160] : memref<2x1x32xf32, #tpu.memory_space<vmem>>, vector<1x1x32xf32>
    %404 = vector.shape_cast %403 : vector<1x1x32xf32> to vector<1x32xf32>
    %405 = arith.truncf %400 : vector<16x128xf32> to vector<16x128xbf16>
    %406 = arith.truncf %402 : vector<128x32xf32> to vector<128x32xbf16>
    %cst_161 = arith.constant dense<0.000000e+00> : vector<16x32xf32>
    %407 = tpu.matmul %405, %406, %cst_161 {dimension_numbers = #tpu.dot_dimension_numbers<[1], [0], [0], [1], [0, 0, 1, 1], [], []>} : vector<16x128xbf16>, vector<128x32xbf16>, vector<16x32xf32> -> vector<16x32xf32>
    %408 = vector.broadcast %404 : vector<1x32xf32> to vector<16x32xf32>
    %409 = arith.addf %407, %408 : vector<16x32xf32>
    %410 = arith.addf %354, %409 : vector<16x32xf32>
    %c0_162 = arith.constant 0 : index
    %c0_163 = arith.constant 0 : index
    %411 = vector.load %arg7[%c0_162, %c0_163] : memref<1x32xf32, #tpu.memory_space<vmem>>, vector<1x32xf32>
    %c0_164 = arith.constant 0 : index
    %c0_165 = arith.constant 0 : index
    %412 = vector.load %arg8[%c0_164, %c0_165] : memref<1x32xf32, #tpu.memory_space<vmem>>, vector<1x32xf32>
    %cst_166 = arith.constant dense<0.000000e+00> : vector<16xf32>
    %413 = vector.multi_reduction <add>, %410, %cst_166 [1] : vector<16x32xf32> to vector<16xf32>
    %414 = vector.shape_cast %413 : vector<16xf32> to vector<16x1xf32>
    %cst_167 = arith.constant 3.200000e+01 : f32
    %415 = vector.broadcast %cst_167 : f32 to vector<16x1xf32>
    %416 = arith.divf %414, %415 : vector<16x1xf32>
    %417 = vector.broadcast %416 : vector<16x1xf32> to vector<16x32xf32>
    %418 = arith.subf %410, %417 : vector<16x32xf32>
    %419 = arith.mulf %418, %418 : vector<16x32xf32>
    %cst_168 = arith.constant dense<0.000000e+00> : vector<16xf32>
    %420 = vector.multi_reduction <add>, %419, %cst_168 [1] : vector<16x32xf32> to vector<16xf32>
    %421 = vector.shape_cast %420 : vector<16xf32> to vector<16x1xf32>
    %cst_169 = arith.constant 3.200000e+01 : f32
    %422 = vector.broadcast %cst_169 : f32 to vector<16x1xf32>
    %423 = arith.divf %421, %422 : vector<16x1xf32>
    %cst_170 = arith.constant 9.99999974E-6 : f32
    %424 = vector.broadcast %cst_170 : f32 to vector<16x1xf32>
    %425 = arith.addf %423, %424 : vector<16x1xf32>
    %426 = math.rsqrt %425 : vector<16x1xf32>
    %427 = vector.broadcast %426 : vector<16x1xf32> to vector<16x32xf32>
    %428 = arith.mulf %418, %427 : vector<16x32xf32>
    %429 = vector.broadcast %411 : vector<1x32xf32> to vector<16x32xf32>
    %430 = arith.mulf %428, %429 : vector<16x32xf32>
    %431 = vector.broadcast %412 : vector<1x32xf32> to vector<16x32xf32>
    %432 = arith.addf %430, %431 : vector<16x32xf32>
    %433 = arith.truncf %432 : vector<16x32xf32> to vector<16x32xbf16>
    %c0_171 = arith.constant 0 : index
    %c0_172 = arith.constant 0 : index
    %434 = vector.load %arg6[%c0_171, %c0_172] : memref<64x32xf32, #tpu.memory_space<vmem>>, vector<64x32xf32>
    %435 = arith.truncf %434 : vector<64x32xf32> to vector<64x32xbf16>
    %cst_173 = arith.constant dense<0.000000e+00> : vector<16x64xf32>
    %436 = tpu.matmul %433, %435, %cst_173 {dimension_numbers = #tpu.dot_dimension_numbers<[1], [1], [0], [0], [0, 0, 1, 0], [], []>} : vector<16x32xbf16>, vector<64x32xbf16>, vector<16x64xf32> -> vector<16x64xf32>
    %437 = vector.shape_cast %436 : vector<16x64xf32> to vector<2x8x64xf32>
    %c0_174 = arith.constant 0 : index
    %c0_175 = arith.constant 0 : index
    %c0_176 = arith.constant 0 : index
    %438 = vector.load %arg21[%c0_174, %c0_175, %c0_176] : memref<2x8x64xf32, #tpu.memory_space<vmem>>, vector<2x8x64xf32>
    tpu.vector_store %arg21[%c0_174, %c0_175, %c0_176], %437 {strides = array<i32>} : memref<2x8x64xf32, #tpu.memory_space<vmem>>, vector<2x8x64xf32>,
    %439 = vector.extract_strided_slice %437 {offsets = [0, 0, 0], sizes = [2, 7, 64], strides = [1, 1, 1]} : vector<2x8x64xf32> to vector<2x7x64xf32>
    %c0_177 = arith.constant 0 : index
    %c0_178 = arith.constant 0 : index
    %c0_179 = arith.constant 0 : index
    %440 = vector.load %arg2[%c0_177, %c0_178, %c0_179] : memref<2x8x1xi32, #tpu.memory_space<vmem>>, vector<2x8x1xi32>
    %441 = vector.extract_strided_slice %440 {offsets = [0, 1, 0], sizes = [2, 7, 1], strides = [1, 1, 1]} : vector<2x8x1xi32> to vector<2x7x1xi32>
    %cst_180 = arith.constant dense<0xFF800000> : vector<2x7xf32>
    %442 = vector.multi_reduction <maximumf>, %439, %cst_180 [2] : vector<2x7x64xf32> to vector<2x7xf32>
    %443 = vector.shape_cast %442 : vector<2x7xf32> to vector<2x7x1xf32>
    %444 = vector.broadcast %443 : vector<2x7x1xf32> to vector<2x7x64xf32>
    %445 = arith.subf %439, %444 : vector<2x7x64xf32>
    %446 = math.exp %445 : vector<2x7x64xf32>
    %cst_181 = arith.constant dense<0.000000e+00> : vector<2x7xf32>
    %447 = vector.multi_reduction <add>, %446, %cst_181 [2] : vector<2x7x64xf32> to vector<2x7xf32>
    %448 = vector.shape_cast %447 : vector<2x7xf32> to vector<2x7x1xf32>
    %449 = math.log %448 : vector<2x7x1xf32>
    %450 = arith.addf %449, %443 : vector<2x7x1xf32>
    %451 = tpu.iota {dimensions = array<i32: 2>} : vector<2x7x64xi32>
    %452 = vector.broadcast %441 : vector<2x7x1xi32> to vector<2x7x64xi32>
    %453 = arith.cmpi eq, %451, %452 : vector<2x7x64xi32>
    %cst_182 = arith.constant 0.000000e+00 : f32
    %454 = vector.broadcast %cst_182 : f32 to vector<2x7x64xf32>
    %455 = arith.select %453, %439, %454 : vector<2x7x64xi1>, vector<2x7x64xf32>
    %cst_183 = arith.constant dense<0.000000e+00> : vector<2x7xf32>
    %456 = vector.multi_reduction <add>, %455, %cst_183 [2] : vector<2x7x64xf32> to vector<2x7xf32>
    %457 = vector.shape_cast %456 : vector<2x7xf32> to vector<2x7x1xf32>
    %458 = arith.subf %450, %457 : vector<2x7x1xf32>
    %cst_184 = arith.constant dense<0.000000e+00> : vector<2x1xf32>
    %459 = vector.multi_reduction <add>, %458, %cst_184 [1] : vector<2x7x1xf32> to vector<2x1xf32>
    %460 = vector.shape_cast %459 : vector<2x1xf32> to vector<2x1x1xf32>
    %cst_185 = arith.constant dense<0.000000e+00> : vector<1x1xf32>
    %461 = vector.multi_reduction <add>, %460, %cst_185 [0] : vector<2x1x1xf32> to vector<1x1xf32>
    %462 = vector.shape_cast %461 : vector<1x1xf32> to vector<1x1x1xf32>
    %463 = vector.shape_cast %462 : vector<1x1x1xf32> to vector<1x1xf32>
    %cst_186 = arith.constant 0.0714285746 : f32
    %464 = vector.broadcast %cst_186 : f32 to vector<1x1xf32>
    %465 = arith.mulf %463, %464 : vector<1x1xf32>
    %c0_187 = arith.constant 0 : index
    %c0_188 = arith.constant 0 : index
    %466 = vector.load %arg22[%c0_187, %c0_188] : memref<1x1xf32, #tpu.memory_space<vmem>>, vector<1x1xf32>
    tpu.vector_store %arg22[%c0_187, %c0_188], %465 {strides = array<i32>} : memref<1x1xf32, #tpu.memory_space<vmem>>, vector<1x1xf32>,
    return
  }
  func.func @transform_0(%arg0: i32) -> (i32, i32) {
    %c0_i32 = arith.constant 0 : i32
    %c0_i32_0 = arith.constant 0 : i32
    %c0_i32_1 = arith.constant 0 : i32
    return %c0_i32, %c0_i32_0 : i32, i32
  }
  func.func @transform_1(%arg0: i32) -> (i32, i32, i32) {
    %c0_i32 = arith.constant 0 : i32
    %c0_i32_0 = arith.constant 0 : i32
    %c0_i32_1 = arith.constant 0 : i32
    %c0_i32_2 = arith.constant 0 : i32
    return %c0_i32, %c0_i32_0, %c0_i32_1 : i32, i32, i32
  }
  func.func @transform_2(%arg0: i32) -> (i32, i32) {
    %c0_i32 = arith.constant 0 : i32
    %c0_i32_0 = arith.constant 0 : i32
    %c0_i32_1 = arith.constant 0 : i32
    return %c0_i32, %c0_i32_0 : i32, i32
  }
  func.func @transform_3(%arg0: i32) -> (i32, i32) {
    %c0_i32 = arith.constant 0 : i32
    %c0_i32_0 = arith.constant 0 : i32
    %c0_i32_1 = arith.constant 0 : i32
    return %c0_i32, %c0_i32_0 : i32, i32
  }
  func.func @transform_4(%arg0: i32) -> (i32, i32) {
    %c0_i32 = arith.constant 0 : i32
    %c0_i32_0 = arith.constant 0 : i32
    %c0_i32_1 = arith.constant 0 : i32
    return %c0_i32, %c0_i32_0 : i32, i32
  }
  func.func @transform_5(%arg0: i32) -> (i32, i32) {
    %c0_i32 = arith.constant 0 : i32
    %c0_i32_0 = arith.constant 0 : i32
    %c0_i32_1 = arith.constant 0 : i32
    return %c0_i32, %c0_i32_0 : i32, i32
  }
  func.func @transform_6(%arg0: i32) -> (i32, i32) {
    %c0_i32 = arith.constant 0 : i32
    %c0_i32_0 = arith.constant 0 : i32
    %c0_i32_1 = arith.constant 0 : i32
    return %c0_i32, %c0_i32_0 : i32, i32
  }
  func.func @transform_7(%arg0: i32) -> (i32, i32) {
    %c0_i32 = arith.constant 0 : i32
    %c0_i32_0 = arith.constant 0 : i32
    %c0_i32_1 = arith.constant 0 : i32
    return %c0_i32, %c0_i32_0 : i32, i32
  }
  func.func @transform_8(%arg0: i32) -> (i32, i32, i32) {
    %c0_i32 = arith.constant 0 : i32
    %c0_i32_0 = arith.constant 0 : i32
    %c0_i32_1 = arith.constant 0 : i32
    %c0_i32_2 = arith.constant 0 : i32
    return %c0_i32, %c0_i32_0, %c0_i32_1 : i32, i32, i32
  }
  func.func @transform_9(%arg0: i32) -> (i32, i32, i32) {
    %c0_i32 = arith.constant 0 : i32
    %c0_i32_0 = arith.constant 0 : i32
    %c0_i32_1 = arith.constant 0 : i32
    %c0_i32_2 = arith.constant 0 : i32
    return %c0_i32, %c0_i32_0, %c0_i32_1 : i32, i32, i32
  }
  func.func @transform_10(%arg0: i32) -> (i32, i32, i32) {
    %c0_i32 = arith.constant 0 : i32
    %c0_i32_0 = arith.constant 0 : i32
    %c0_i32_1 = arith.constant 0 : i32
    %c0_i32_2 = arith.constant 0 : i32
    return %c0_i32, %c0_i32_0, %c0_i32_1 : i32, i32, i32
  }
  func.func @transform_11(%arg0: i32) -> (i32, i32, i32) {
    %c0_i32 = arith.constant 0 : i32
    %c0_i32_0 = arith.constant 0 : i32
    %c0_i32_1 = arith.constant 0 : i32
    %c0_i32_2 = arith.constant 0 : i32
    return %c0_i32, %c0_i32_0, %c0_i32_1 : i32, i32, i32
  }
  func.func @transform_12(%arg0: i32) -> (i32, i32, i32) {
    %c0_i32 = arith.constant 0 : i32
    %c0_i32_0 = arith.constant 0 : i32
    %c0_i32_1 = arith.constant 0 : i32
    %c0_i32_2 = arith.constant 0 : i32
    return %c0_i32, %c0_i32_0, %c0_i32_1 : i32, i32, i32
  }
  func.func @transform_13(%arg0: i32) -> (i32, i32, i32) {
    %c0_i32 = arith.constant 0 : i32
    %c0_i32_0 = arith.constant 0 : i32
    %c0_i32_1 = arith.constant 0 : i32
    %c0_i32_2 = arith.constant 0 : i32
    return %c0_i32, %c0_i32_0, %c0_i32_1 : i32, i32, i32
  }
  func.func @transform_14(%arg0: i32) -> (i32, i32, i32) {
    %c0_i32 = arith.constant 0 : i32
    %c0_i32_0 = arith.constant 0 : i32
    %c0_i32_1 = arith.constant 0 : i32
    %c0_i32_2 = arith.constant 0 : i32
    return %c0_i32, %c0_i32_0, %c0_i32_1 : i32, i32, i32
  }
  func.func @transform_15(%arg0: i32) -> (i32, i32, i32) {
    %c0_i32 = arith.constant 0 : i32
    %c0_i32_0 = arith.constant 0 : i32
    %c0_i32_1 = arith.constant 0 : i32
    %c0_i32_2 = arith.constant 0 : i32
    return %c0_i32, %c0_i32_0, %c0_i32_1 : i32, i32, i32
  }
  func.func @transform_16(%arg0: i32) -> (i32, i32, i32) {
    %c0_i32 = arith.constant 0 : i32
    %c0_i32_0 = arith.constant 0 : i32
    %c0_i32_1 = arith.constant 0 : i32
    %c0_i32_2 = arith.constant 0 : i32
    return %c0_i32, %c0_i32_0, %c0_i32_1 : i32, i32, i32
  }
  func.func @transform_17(%arg0: i32) -> (i32, i32, i32) {
    %c0_i32 = arith.constant 0 : i32
    %c0_i32_0 = arith.constant 0 : i32
    %c0_i32_1 = arith.constant 0 : i32
    %c0_i32_2 = arith.constant 0 : i32
    return %c0_i32, %c0_i32_0, %c0_i32_1 : i32, i32, i32
  }
  func.func @transform_18(%arg0: i32) -> (i32, i32, i32) {
    %c0_i32 = arith.constant 0 : i32
    %c0_i32_0 = arith.constant 0 : i32
    %c0_i32_1 = arith.constant 0 : i32
    %c0_i32_2 = arith.constant 0 : i32
    return %c0_i32, %c0_i32_0, %c0_i32_1 : i32, i32, i32
  }
  func.func @transform_19(%arg0: i32) -> (i32, i32, i32) {
    %c0_i32 = arith.constant 0 : i32
    %c0_i32_0 = arith.constant 0 : i32
    %c0_i32_1 = arith.constant 0 : i32
    %c0_i32_2 = arith.constant 0 : i32
    return %c0_i32, %c0_i32_0, %c0_i32_1 : i32, i32, i32
  }
  func.func @transform_20(%arg0: i32) -> (i32, i32, i32) {
    %c0_i32 = arith.constant 0 : i32
    %c0_i32_0 = arith.constant 0 : i32
    %c0_i32_1 = arith.constant 0 : i32
    %c0_i32_2 = arith.constant 0 : i32
    return %c0_i32, %c0_i32_0, %c0_i32_1 : i32, i32, i32
  }
  func.func @transform_21(%arg0: i32) -> (i32, i32) {
    %c0_i32 = arith.constant 0 : i32
    %c0_i32_0 = arith.constant 0 : i32
    %c0_i32_1 = arith.constant 0 : i32
    return %c0_i32, %c0_i32_0 : i32, i32
  }
}

</mosaic_0001>

<llo_original>
// kernel: eeg2text_forward.1
$region0: #{eeg2text_forward.1}
  #allocation0 [shape = 'u32[]', space=smem, size = 0x4, offset = 0x4, fixed_abs, tag = 'smem constant byte address 0x4 - core index']
  #allocation1 [shape = 'u32[144,128]{1,0:T(1,128)}', space=vmem, size = 0x12000, scoped, tag = 'internal scratch']
  %s0 = inlined_call_operand.vmem [shape: f32[16,16], index: 0, kind: input, shape index: {}]
  %s1 = inlined_call_operand.vmem [shape: s32[2,8,1], index: 1, kind: input, shape index: {}]
  %s2 = inlined_call_operand.vmem [shape: f32[16,32], index: 2, kind: input, shape index: {}]
  %s3 = inlined_call_operand.vmem [shape: f32[1,32], index: 3, kind: input, shape index: {}]
  %s4 = inlined_call_operand.vmem [shape: f32[32,32], index: 4, kind: input, shape index: {}]
  %s5 = inlined_call_operand.vmem [shape: f32[64,32], index: 5, kind: input, shape index: {}]
  %s6 = inlined_call_operand.vmem [shape: f32[1,32], index: 6, kind: input, shape index: {}]
  %s7 = inlined_call_operand.vmem [shape: f32[1,32], index: 7, kind: input, shape index: {}]
  %s8 = inlined_call_operand.vmem [shape: f32[2,1,32], index: 8, kind: input, shape index: {}]
  %s9 = inlined_call_operand.vmem [shape: f32[2,1,32], index: 9, kind: input, shape index: {}]
  %s10 = inlined_call_operand.vmem [shape: f32[2,32,96], index: 10, kind: input, shape index: {}]
  %s11 = inlined_call_operand.vmem [shape: f32[2,1,96], index: 11, kind: input, shape index: {}]
  %s12 = inlined_call_operand.vmem [shape: f32[2,32,32], index: 12, kind: input, shape index: {}]
  %s13 = inlined_call_operand.vmem [shape: f32[2,1,32], index: 13, kind: input, shape index: {}]
  %s14 = inlined_call_operand.vmem [shape: f32[2,1,32], index: 14, kind: input, shape index: {}]
  %s15 = inlined_call_operand.vmem [shape: f32[2,1,32], index: 15, kind: input, shape index: {}]
  %s16 = inlined_call_operand.vmem [shape: f32[2,32,128], index: 16, kind: input, shape index: {}]
  %s17 = inlined_call_operand.vmem [shape: f32[2,1,128], index: 17, kind: input, shape index: {}]
  %s18 = inlined_call_operand.vmem [shape: f32[2,128,32], index: 18, kind: input, shape index: {}]
  %s19 = inlined_call_operand.vmem [shape: f32[2,1,32], index: 19, kind: input, shape index: {}]
  %s20 = inlined_call_operand.hbm [shape: f32[2,8,64], index: 20, kind: output, shape index: {0}]
  %s21 = inlined_call_operand.hbm [shape: f32[1,1], index: 21, kind: output, shape index: {1}]
  %22 = xla_tuple %s20, %s21
  %s23 = sld [smem:[#allocation0]]
  $region98: #{eeg2text_forward.1} parent=0
    _
  %s25 = ssub.s32 1, %s23
  %s26 = scalar_select 0, %s25, %s23
  $region1: #{eeg2text_forward.1} parent=0
    #allocation2 [shape = 'u8[8192]{0}', space=vmem, size = 0x2000, scoped, tag = 'output window, operand 0, single buffered']
    #allocation3 [shape = 's32[1]{0}', space=sflag, size = 0x4, scoped, tag = 'scoped memory for eeg2text_forward.1']
    #allocation4 [shape = 'u8[512]{0}', space=vmem, size = 0x400, scoped, tag = 'output window, operand 1, single buffered']
    #allocation5 [shape = 's32[1]{0}', space=sflag, size = 0x4, scoped, tag = 'scoped memory for eeg2text_forward.1']
    %27 = vsyncpa [#allocation3], 0
    %28 = vsyncpa [#allocation5], 0
    // Predicated region
    $region2: #{eeg2text_forward.1} parent=1 // pred_check
      _
    $region3: #{eeg2text_forward.1} parent=1 // pred_check_branch
      %30 = sbr.rel (0) target = $region5
    $region4: #{eeg2text_forward.1} parent=1 // pred_region
      _
    $region5: #{eeg2text_forward.1} parent=1 // pred_fallthru
      _
    // Predicated region
    $region6: #{eeg2text_forward.1} parent=1 // pred_check
      _
    $region7: #{eeg2text_forward.1} parent=1 // pred_check_branch
      %32 = sbr.rel (0) target = $region9
    $region8: #{eeg2text_forward.1} parent=1 // pred_region
      _
    $region9: #{eeg2text_forward.1} parent=1 // pred_fallthru
      _
    // Predicated region
    $region10: #{eeg2text_forward.1} parent=1 // pred_check
      _
    $region11: #{eeg2text_forward.1} parent=1 // pred_check_branch
      %34 = sbr.rel (0) target = $region13
    $region12: #{eeg2text_forward.1} parent=1 // pred_region
      _
    $region13: #{eeg2text_forward.1} parent=1 // pred_fallthru
      _
    // Predicated region
    $region14: #{eeg2text_forward.1} parent=1 // pred_check
      _
    $region15: #{eeg2text_forward.1} parent=1 // pred_check_branch
      %36 = sbr.rel (0) target = $region17
    $region16: #{eeg2text_forward.1} parent=1 // pred_region
      _
    $region17: #{eeg2text_forward.1} parent=1 // pred_fallthru
      _
    // Predicated region
    $region18: #{eeg2text_forward.1} parent=1 // pred_check
      _
    $region19: #{eeg2text_forward.1} parent=1 // pred_check_branch
      %38 = sbr.rel (0) target = $region21
    $region20: #{eeg2text_forward.1} parent=1 // pred_region
      _
    $region21: #{eeg2text_forward.1} parent=1 // pred_fallthru
      _
    // Predicated region
    $region22: #{eeg2text_forward.1} parent=1 // pred_check
      _
    $region23: #{eeg2text_forward.1} parent=1 // pred_check_branch
      %40 = sbr.rel (0) target = $region25
    $region24: #{eeg2text_forward.1} parent=1 // pred_region
      _
    $region25: #{eeg2text_forward.1} parent=1 // pred_fallthru
      _
    // Predicated region
    $region26: #{eeg2text_forward.1} parent=1 // pred_check
      _
    $region27: #{eeg2text_forward.1} parent=1 // pred_check_branch
      %42 = sbr.rel (0) target = $region29
    $region28: #{eeg2text_forward.1} parent=1 // pred_region
      _
    $region29: #{eeg2text_forward.1} parent=1 // pred_fallthru
      _
    // Predicated region
    $region30: #{eeg2text_forward.1} parent=1 // pred_check
      _
    $region31: #{eeg2text_forward.1} parent=1 // pred_check_branch
      %44 = sbr.rel (0) target = $region33
    $region32: #{eeg2text_forward.1} parent=1 // pred_region
      _
    $region33: #{eeg2text_forward.1} parent=1 // pred_fallthru
      _
    // Predicated region
    $region34: #{eeg2text_forward.1} parent=1 // pred_check
      _
    $region35: #{eeg2text_forward.1} parent=1 // pred_check_branch
      %46 = sbr.rel (0) target = $region37
    $region36: #{eeg2text_forward.1} parent=1 // pred_region
      _
    $region37: #{eeg2text_forward.1} parent=1 // pred_fallthru
      _
    // Predicated region
    $region38: #{eeg2text_forward.1} parent=1 // pred_check
      _
    $region39: #{eeg2text_forward.1} parent=1 // pred_check_branch
      %48 = sbr.rel (0) target = $region41
    $region40: #{eeg2text_forward.1} parent=1 // pred_region
      _
    $region41: #{eeg2text_forward.1} parent=1 // pred_fallthru
      _
    // Predicated region
    $region42: #{eeg2text_forward.1} parent=1 // pred_check
      _
    $region43: #{eeg2text_forward.1} parent=1 // pred_check_branch
      %50 = sbr.rel (0) target = $region45
    $region44: #{eeg2text_forward.1} parent=1 // pred_region
      _
    $region45: #{eeg2text_forward.1} parent=1 // pred_fallthru
      _
    // Predicated region
    $region46: #{eeg2text_forward.1} parent=1 // pred_check
      _
    $region47: #{eeg2text_forward.1} parent=1 // pred_check_branch
      %52 = sbr.rel (0) target = $region49
    $region48: #{eeg2text_forward.1} parent=1 // pred_region
      _
    $region49: #{eeg2text_forward.1} parent=1 // pred_fallthru
      _
    // Predicated region
    $region50: #{eeg2text_forward.1} parent=1 // pred_check
      _
    $region51: #{eeg2text_forward.1} parent=1 // pred_check_branch
      %54 = sbr.rel (0) target = $region53
    $region52: #{eeg2text_forward.1} parent=1 // pred_region
      _
    $region53: #{eeg2text_forward.1} parent=1 // pred_fallthru
      _
    // Predicated region
    $region54: #{eeg2text_forward.1} parent=1 // pred_check
      _
    $region55: #{eeg2text_forward.1} parent=1 // pred_check_branch
      %56 = sbr.rel (0) target = $region57
    $region56: #{eeg2text_forward.1} parent=1 // pred_region
      _
    $region57: #{eeg2text_forward.1} parent=1 // pred_fallthru
      _
    // Predicated region
    $region58: #{eeg2text_forward.1} parent=1 // pred_check
      _
    $region59: #{eeg2text_forward.1} parent=1 // pred_check_branch
      %58 = sbr.rel (0) target = $region61
    $region60: #{eeg2text_forward.1} parent=1 // pred_region
      _
    $region61: #{eeg2text_forward.1} parent=1 // pred_fallthru
      _
    // Predicated region
    $region62: #{eeg2text_forward.1} parent=1 // pred_check
      _
    $region63: #{eeg2text_forward.1} parent=1 // pred_check_branch
      %60 = sbr.rel (0) target = $region65
    $region64: #{eeg2text_forward.1} parent=1 // pred_region
      _
    $region65: #{eeg2text_forward.1} parent=1 // pred_fallthru
      _
    // Predicated region
    $region66: #{eeg2text_forward.1} parent=1 // pred_check
      _
    $region67: #{eeg2text_forward.1} parent=1 // pred_check_branch
      %62 = sbr.rel (0) target = $region69
    $region68: #{eeg2text_forward.1} parent=1 // pred_region
      _
    $region69: #{eeg2text_forward.1} parent=1 // pred_fallthru
      _
    // Predicated region
    $region70: #{eeg2text_forward.1} parent=1 // pred_check
      _
    $region71: #{eeg2text_forward.1} parent=1 // pred_check_branch
      %64 = sbr.rel (0) target = $region73
    $region72: #{eeg2text_forward.1} parent=1 // pred_region
      _
    $region73: #{eeg2text_forward.1} parent=1 // pred_fallthru
      _
    // Predicated region
    $region74: #{eeg2text_forward.1} parent=1 // pred_check
      _
    $region75: #{eeg2text_forward.1} parent=1 // pred_check_branch
      %66 = sbr.rel (0) target = $region77
    $region76: #{eeg2text_forward.1} parent=1 // pred_region
      _
    $region77: #{eeg2text_forward.1} parent=1 // pred_fallthru
      _
    // Predicated region
    $region78: #{eeg2text_forward.1} parent=1 // pred_check
      _
    $region79: #{eeg2text_forward.1} parent=1 // pred_check_branch
      %68 = sbr.rel (0) target = $region81
    $region80: #{eeg2text_forward.1} parent=1 // pred_region
      _
    $region81: #{eeg2text_forward.1} parent=1 // pred_fallthru
      _
    %v70 = vld [vmem:[%s0] sm:$0xff]
    %v71 = vld [vmem:[%s0 + $0x8] sm:$0xff]
    %v72 = vld [vmem:[%s2] sm:$0xff]
    %v73 = vld [vmem:[%s2 + $0x8] sm:$0xff]
    %v74 = vld [vmem:[%s3] sm:$0x1]
    %v75 = vpack.c.bf16 %v71, %v70
    %v76 = vpack.c.bf16 %v73, %v72
    %v78 = vlaneseq
    %v79 = vshrl.u32 %v78, 7
    %v80 = vsub.s32 0, %v79
    %v81 = vrot.slane %v74, %v80
    %vm83 = vcmask 130048
    %v85 = vsel %vm83, %v75, 0
    %87 = vmatprep.subr.bf16.mxu0 0
    %88 = vmatpush1.bf16.msra.mxu0 %v76
    %89 = vmatprep.subr.bf16.mxu0 0
    %90 = vmatpush1.bf16.msra.mxu0 0
    %91 = vmatprep.subr.bf16.mxu0 0
    %92 = vmatpush1.bf16.msra.mxu0 0
    %93 = vmatprep.subr.bf16.mxu0 0
    %94 = vmatpush1.bf16.msra.mxu0 0
    %95 = vmatprep.subr.bf16.mxu0 0
    %96 = vmatpush1.bf16.msra.mxu0 0
    %97 = vmatprep.subr.bf16.mxu0 0
    %98 = vmatpush1.bf16.msra.mxu0 0
    %99 = vmatprep.subr.bf16.mxu0 0
    %100 = vmatpush1.bf16.msra.mxu0 0
    %101 = vmatprep.subr.bf16.mxu0 0
    %102 = vmatpush1.bf16.msra.mxu0 0
    %103 = vmatprep.subr.bf16.mxu0 0
    %104 = vmatpush1.bf16.msra.mxu0 0
    %105 = vmatprep.subr.bf16.mxu0 0
    %106 = vmatpush1.bf16.msra.mxu0 0
    %107 = vmatprep.subr.bf16.mxu0 0
    %108 = vmatpush1.bf16.msra.mxu0 0
    %109 = vmatprep.subr.bf16.mxu0 0
    %110 = vmatpush1.bf16.msra.mxu0 0
    %111 = vmatprep.subr.bf16.mxu0 0
    %112 = vmatpush1.bf16.msra.mxu0 0
    %113 = vmatprep.subr.bf16.mxu0 0
    %114 = vmatpush1.bf16.msra.mxu0 0
    %115 = vmatprep.subr.bf16.mxu0 0
    %116 = vmatpush1.bf16.msra.mxu0 0
    %117 = vmatprep.subr.bf16.mxu0 0
    %118 = vmatpush1.bf16.msra.mxu0 0
    %119 = vmatprep.mubr.bf16.mxu0 0
    %120 = vmatmul.mubr.bf16.gmra.mrb[0].mxu0 %v85
    %v121 = vpop.f32.mrb[0].mxu0
    %v122 = vadd.f32 %v81, %v121
    %v123 = vpop.f32.mrb[0].mxu0
    %v124 = vpop.f32.mrb[0].mxu0
    %v125 = vadd.f32 %v81, %v124
    %v126 = vpop.f32.mrb[0].mxu0
    %127 = vdwg.mxu0
    %v128 = vld [vmem:[%s4] sm:$0xff]
    %v129 = vadd.f32 %v122, %v128
    %v130 = vadd.f32 %v125, %v128
    %v131 = vlaneseq
    %v132 = vshrl.u32 %v131, 7
    %v133 = vlaneseq
    %v134 = vand.u32 %v133, 127
    %vm135 = vcmp.le.s32.totalorder %v134, %v132
    %v136 = vld [vmem:[%s8] sm:$0x1]
    %v137 = vld [vmem:[%s9] sm:$0x1]
    %vm138 = vcmask 261120
    %v139 = vsel %vm138, %v129, 0.0
    %140 = vadd.xlane.f32.xlu0 %v139
    %v141 = vpop.xlane.xlu0 %140
    %v142 = vsel %vm138, %v130, 0.0
    %143 = vadd.xlane.f32.xlu0 %v142
    %v144 = vpop.xlane.xlu0 %143
    %v145 = vrcp.pop 32.0
    %v146 = vmul.f32 %v141, %v145
    %v147 = vmul.f32 %v144, %v145
    %v148 = vsub.f32 %v129, %v146
    %v149 = vsub.f32 %v130, %v147
    %v150 = vmul.f32 %v148, %v148
    %v151 = vmul.f32 %v149, %v149
    %v152 = vsel %vm138, %v150, 0.0
    %153 = vadd.xlane.f32.xlu0 %v152
    %v154 = vpop.xlane.xlu0 %153
    %v155 = vsel %vm138, %v151, 0.0
    %156 = vadd.xlane.f32.xlu0 %v155
    %v157 = vpop.xlane.xlu0 %156
    %v158 = vmul.f32 %v154, %v145
    %v159 = vmul.f32 %v157, %v145
    %v160 = vadd.f32 %v158, 1e-05
    %v161 = vadd.f32 %v159, 1e-05
    %v162 = vrsqrt.pop %v160
    %v163 = vrsqrt.pop %v161
    %v164 = vmul.f32 %v148, %v162
    %v165 = vmul.f32 %v149, %v163
    %v167 = vlaneseq
    %v168 = vshrl.u32 %v167, 7
    %v169 = vsub.s32 0, %v168
    %v170 = vrot.slane %v136, %v169
    %v172 = vmul.f32 %v164, %v170
    %v173 = vmul.f32 %v165, %v170
    %v175 = vlaneseq
    %v176 = vshrl.u32 %v175, 7
    %v177 = vsub.s32 0, %v176
    %v178 = vrot.slane %v137, %v177
    %v180 = vadd.f32 %v172, %v178
    %v181 = vadd.f32 %v173, %v178
    %v182 = vld [vmem:[%s10] sm:$0xff]
    %v183 = vld [vmem:[%s10 + $0x8] sm:$0xff]
    %v184 = vld [vmem:[%s10 + $0x10] sm:$0xff]
    %v185 = vld [vmem:[%s10 + $0x18] sm:$0xff]
    %v186 = vld [vmem:[%s11] sm:$0x1]
    %v187 = vpack.c.bf16 %v181, %v180
    %v188 = vpack.c.bf16 %v183, %v182
    %v189 = vpack.c.bf16 %v185, %v184
    %v191 = vlaneseq
    %v192 = vshrl.u32 %v191, 7
    %v193 = vsub.s32 0, %v192
    %v194 = vrot.slane %v186, %v193
    %v197 = vsel %vm138, %v187, 0
    %199 = vmatprep.subr.bf16.mxu0 0
    %200 = vmatpush1.bf16.msra.mxu0 %v188
    %201 = vmatprep.subr.bf16.mxu0 0
    %202 = vmatpush1.bf16.msra.mxu0 %v189
    %203 = vmatprep.subr.bf16.mxu0 0
    %204 = vmatpush1.bf16.msra.mxu0 0
    %205 = vmatprep.subr.bf16.mxu0 0
    %206 = vmatpush1.bf16.msra.mxu0 0
    %207 = vmatprep.subr.bf16.mxu0 0
    %208 = vmatpush1.bf16.msra.mxu0 0
    %209 = vmatprep.subr.bf16.mxu0 0
    %210 = vmatpush1.bf16.msra.mxu0 0
    %211 = vmatprep.subr.bf16.mxu0 0
    %212 = vmatpush1.bf16.msra.mxu0 0
    %213 = vmatprep.subr.bf16.mxu0 0
    %214 = vmatpush1.bf16.msra.mxu0 0
    %215 = vmatprep.subr.bf16.mxu0 0
    %216 = vmatpush1.bf16.msra.mxu0 0
    %217 = vmatprep.subr.bf16.mxu0 0
    %218 = vmatpush1.bf16.msra.mxu0 0
    %219 = vmatprep.subr.bf16.mxu0 0
    %220 = vmatpush1.bf16.msra.mxu0 0
    %221 = vmatprep.subr.bf16.mxu0 0
    %222 = vmatpush1.bf16.msra.mxu0 0
    %223 = vmatprep.subr.bf16.mxu0 0
    %224 = vmatpush1.bf16.msra.mxu0 0
    %225 = vmatprep.subr.bf16.mxu0 0
    %226 = vmatpush1.bf16.msra.mxu0 0
    %227 = vmatprep.subr.bf16.mxu0 0
    %228 = vmatpush1.bf16.msra.mxu0 0
    %229 = vmatprep.subr.bf16.mxu0 0
    %230 = vmatpush1.bf16.msra.mxu0 0
    %231 = vmatprep.mubr.bf16.mxu0 0
    %232 = vmatmul.mubr.bf16.gmra.mrb[0].mxu0 %v197
    %v233 = vpop.f32.mrb[0].mxu0
    %v234 = vadd.f32 %v194, %v233
    %v235 = vpop.f32.mrb[0].mxu0
    %v236 = vpop.f32.mrb[0].mxu0
    %v237 = vadd.f32 %v194, %v236
    %v238 = vpop.f32.mrb[0].mxu0
    %239 = vdwg.mxu0
    %241 = vrot.lane.b32.xlu0 %v234, 96
    %v242 = vpop.permute.xlu0 %241
    %vm243 = vcmask 64512
    %v244 = vsel %vm243, %v234, 0
    %v246 = vsel %vm243, %v242, 0
    %248 = vmatprep.subr.mxu0 0.0
    %249 = vmatpush1.xpose.msra.mxu0 %v246
    %250 = vmatprep.subr.mxu0 0.0
    %251 = vmatpush1.xpose.msra.mxu0 0.0
    %252 = vmatprep.subr.mxu0 0.0
    %253 = vmatpush1.xpose.msra.mxu0 0.0
    %254 = vmatprep.subr.mxu0 0.0
    %255 = vmatpush1.xpose.msra.mxu0 0.0
    %256 = vmatprep.subr.mxu0 0.0
    %257 = vmatpush1.xpose.msra.mxu0 0.0
    %258 = vmatprep.subr.mxu0 0.0
    %259 = vmatpush1.xpose.msra.mxu0 0.0
    %260 = vmatprep.subr.mxu0 0.0
    %261 = vmatpush1.xpose.msra.mxu0 0.0
    %262 = vmatprep.subr.mxu0 0.0
    %263 = vmatpush1.xpose.msra.mxu0 0.0
    %264 = vmatprep.subr.mxu0 0.0
    %265 = vmatpush1.xpose.msra.mxu0 0.0
    %266 = vmatprep.subr.mxu0 0.0
    %267 = vmatpush1.xpose.msra.mxu0 0.0
    %268 = vmatprep.subr.mxu0 0.0
    %269 = vmatpush1.xpose.msra.mxu0 0.0
    %270 = vmatprep.subr.mxu0 0.0
    %271 = vmatpush1.xpose.msra.mxu0 0.0
    %272 = vmatprep.subr.mxu0 0.0
    %273 = vmatpush1.xpose.msra.mxu0 0.0
    %274 = vmatprep.subr.mxu0 0.0
    %275 = vmatpush1.xpose.msra.mxu0 0.0
    %276 = vmatprep.subr.mxu0 0.0
    %277 = vmatpush1.xpose.msra.mxu0 0.0
    %278 = vmatprep.subr.mxu0 0.0
    %279 = vmatpush1.xpose.msra.mxu0 0.0
    %280 = vmatprep.subr.mxu0 0.0
    %281 = vmatpush1.xpose.msra.mxu0 0.0
    %282 = vmatprep.subr.mxu0 0.0
    %283 = vmatpush1.xpose.msra.mxu0 0.0
    %284 = vmatprep.subr.mxu0 0.0
    %285 = vmatpush1.xpose.msra.mxu0 0.0
    %286 = vmatprep.subr.mxu0 0.0
    %287 = vmatpush1.xpose.msra.mxu0 0.0
    %288 = vmatprep.subr.mxu0 0.0
    %289 = vmatpush1.xpose.msra.mxu0 0.0
    %290 = vmatprep.subr.mxu0 0.0
    %291 = vmatpush1.xpose.msra.mxu0 0.0
    %292 = vmatprep.subr.mxu0 0.0
    %293 = vmatpush1.xpose.msra.mxu0 0.0
    %294 = vmatprep.subr.mxu0 0.0
    %295 = vmatpush1.xpose.msra.mxu0 0.0
    %296 = vmatprep.subr.mxu0 0.0
    %297 = vmatpush1.xpose.msra.mxu0 0.0
    %298 = vmatprep.subr.mxu0 0.0
    %299 = vmatpush1.xpose.msra.mxu0 0.0
    %300 = vmatprep.subr.mxu0 0.0
    %301 = vmatpush1.xpose.msra.mxu0 0.0
    %302 = vmatprep.subr.mxu0 0.0
    %303 = vmatpush1.xpose.msra.mxu0 0.0
    %304 = vmatprep.subr.mxu0 0.0
    %305 = vmatpush1.xpose.msra.mxu0 0.0
    %306 = vmatprep.subr.mxu0 0.0
    %307 = vmatpush1.xpose.msra.mxu0 0.0
    %308 = vmatprep.subr.mxu0 0.0
    %309 = vmatpush1.xpose.msra.mxu0 0.0
    %310 = vmatprep.subr.mxu0 0.0
    %311 = vmatpush1.xpose.msra.mxu0 0.0
    %312 = vmatprep.mubr.f32.mxu0 0.0
    %313 = vmatmul.mubr.f32.gmra.mrb[0].mxu0 %v244
    %v314 = vpop.f32.mrb[0].mxu0
    %v315 = vadd.f32 0.0, %v314
    %v316 = vpop.f32.mrb[0].mxu0
    %317 = vdwg.mxu0
    %319 = vrot.lane.b32.xlu0 %v237, 96
    %v320 = vpop.permute.xlu0 %319
    %v321 = vsel %vm243, %v237, 0
    %v323 = vsel %vm243, %v320, 0
    %325 = vmatprep.subr.mxu0 0.0
    %326 = vmatpush1.xpose.msra.mxu0 %v323
    %327 = vmatprep.subr.mxu0 0.0
    %328 = vmatpush1.xpose.msra.mxu0 0.0
    %329 = vmatprep.subr.mxu0 0.0
    %330 = vmatpush1.xpose.msra.mxu0 0.0
    %331 = vmatprep.subr.mxu0 0.0
    %332 = vmatpush1.xpose.msra.mxu0 0.0
    %333 = vmatprep.subr.mxu0 0.0
    %334 = vmatpush1.xpose.msra.mxu0 0.0
    %335 = vmatprep.subr.mxu0 0.0
    %336 = vmatpush1.xpose.msra.mxu0 0.0
    %337 = vmatprep.subr.mxu0 0.0
    %338 = vmatpush1.xpose.msra.mxu0 0.0
    %339 = vmatprep.subr.mxu0 0.0
    %340 = vmatpush1.xpose.msra.mxu0 0.0
    %341 = vmatprep.subr.mxu0 0.0
    %342 = vmatpush1.xpose.msra.mxu0 0.0
    %343 = vmatprep.subr.mxu0 0.0
    %344 = vmatpush1.xpose.msra.mxu0 0.0
    %345 = vmatprep.subr.mxu0 0.0
    %346 = vmatpush1.xpose.msra.mxu0 0.0
    %347 = vmatprep.subr.mxu0 0.0
    %348 = vmatpush1.xpose.msra.mxu0 0.0
    %349 = vmatprep.subr.mxu0 0.0
    %350 = vmatpush1.xpose.msra.mxu0 0.0
    %351 = vmatprep.subr.mxu0 0.0
    %352 = vmatpush1.xpose.msra.mxu0 0.0
    %353 = vmatprep.subr.mxu0 0.0
    %354 = vmatpush1.xpose.msra.mxu0 0.0
    %355 = vmatprep.subr.mxu0 0.0
    %356 = vmatpush1.xpose.msra.mxu0 0.0
    %357 = vmatprep.subr.mxu0 0.0
    %358 = vmatpush1.xpose.msra.mxu0 0.0
    %359 = vmatprep.subr.mxu0 0.0
    %360 = vmatpush1.xpose.msra.mxu0 0.0
    %361 = vmatprep.subr.mxu0 0.0
    %362 = vmatpush1.xpose.msra.mxu0 0.0
    %363 = vmatprep.subr.mxu0 0.0
    %364 = vmatpush1.xpose.msra.mxu0 0.0
    %365 = vmatprep.subr.mxu0 0.0
    %366 = vmatpush1.xpose.msra.mxu0 0.0
    %367 = vmatprep.subr.mxu0 0.0
    %368 = vmatpush1.xpose.msra.mxu0 0.0
    %369 = vmatprep.subr.mxu0 0.0
    %370 = vmatpush1.xpose.msra.mxu0 0.0
    %371 = vmatprep.subr.mxu0 0.0
    %372 = vmatpush1.xpose.msra.mxu0 0.0
    %373 = vmatprep.subr.mxu0 0.0
    %374 = vmatpush1.xpose.msra.mxu0 0.0
    %375 = vmatprep.subr.mxu0 0.0
    %376 = vmatpush1.xpose.msra.mxu0 0.0
    %377 = vmatprep.subr.mxu0 0.0
    %378 = vmatpush1.xpose.msra.mxu0 0.0
    %379 = vmatprep.subr.mxu0 0.0
    %380 = vmatpush1.xpose.msra.mxu0 0.0
    %381 = vmatprep.subr.mxu0 0.0
    %382 = vmatpush1.xpose.msra.mxu0 0.0
    %383 = vmatprep.subr.mxu0 0.0
    %384 = vmatpush1.xpose.msra.mxu0 0.0
    %385 = vmatprep.subr.mxu0 0.0
    %386 = vmatpush1.xpose.msra.mxu0 0.0
    %387 = vmatprep.subr.mxu0 0.0
    %388 = vmatpush1.xpose.msra.mxu0 0.0
    %389 = vmatprep.mubr.f32.mxu0 0.0
    %390 = vmatmul.mubr.f32.gmra.mrb[0].mxu0 %v321
    %v391 = vpop.f32.mrb[0].mxu0
    %v392 = vadd.f32 0.0, %v391
    %v393 = vpop.f32.mrb[0].mxu0
    %394 = vdwg.mxu0
    %v395 = vmul.f32 %v315, 0.35355338
    %v396 = vmul.f32 %v392, 0.35355338
    %v397 = vsel %vm135, 1, 0
    %vm398 = vcmp.eq.s32.totalorder %v397, 1
    %v399 = vsel %vm398, %v395, -1e+30
    %v400 = vsel %vm398, %v396, -1e+30
    %v401 = vsel %vm243, %v399, -inf
    %402 = vmax.xlane.f32.xlu0 %v401
    %v403 = vpop.xlane.xlu0 %402
    %v404 = vsel %vm243, %v400, -inf
    %405 = vmax.xlane.f32.xlu0 %v404
    %v406 = vpop.xlane.xlu0 %405
    %v407 = vsub.f32 %v399, %v403
    %v408 = vsub.f32 %v400, %v406
    %v409 = vmul.f32 %v407, 1.442695
    %v410 = vpow.pop %v409
    %v411 = vmul.f32 %v408, 1.442695
    %v412 = vpow.pop %v411
    %v413 = vsel %vm243, %v410, 0.0
    %414 = vadd.xlane.f32.xlu0 %v413
    %v415 = vpop.xlane.xlu0 %414
    %v416 = vsel %vm243, %v412, 0.0
    %417 = vadd.xlane.f32.xlu0 %v416
    %v418 = vpop.xlane.xlu0 %417
    %v419 = vrcp.pop %v415
    %v420 = vrcp.pop %v418
    %v421 = vmul.f32 %v410, %v419
    %v422 = vmul.f32 %v412, %v420
    %423 = vrot.lane.b32.xlu0 %v234, 64
    %v424 = vpop.permute.xlu0 %423
    %v427 = vsel %vm243, %v421, 0
    %429 = vmatprep.subr.mxu0 0.0
    %430 = vmatpush1.msra.mxu0 %v424
    %431 = vmatprep.subr.mxu0 0.0
    %432 = vmatpush1.msra.mxu0 0.0
    %433 = vmatprep.subr.mxu0 0.0
    %434 = vmatpush1.msra.mxu0 0.0
    %435 = vmatprep.subr.mxu0 0.0
    %436 = vmatpush1.msra.mxu0 0.0
    %437 = vmatprep.subr.mxu0 0.0
    %438 = vmatpush1.msra.mxu0 0.0
    %439 = vmatprep.subr.mxu0 0.0
    %440 = vmatpush1.msra.mxu0 0.0
    %441 = vmatprep.subr.mxu0 0.0
    %442 = vmatpush1.msra.mxu0 0.0
    %443 = vmatprep.subr.mxu0 0.0
    %444 = vmatpush1.msra.mxu0 0.0
    %445 = vmatprep.subr.mxu0 0.0
    %446 = vmatpush1.msra.mxu0 0.0
    %447 = vmatprep.subr.mxu0 0.0
    %448 = vmatpush1.msra.mxu0 0.0
    %449 = vmatprep.subr.mxu0 0.0
    %450 = vmatpush1.msra.mxu0 0.0
    %451 = vmatprep.subr.mxu0 0.0
    %452 = vmatpush1.msra.mxu0 0.0
    %453 = vmatprep.subr.mxu0 0.0
    %454 = vmatpush1.msra.mxu0 0.0
    %455 = vmatprep.subr.mxu0 0.0
    %456 = vmatpush1.msra.mxu0 0.0
    %457 = vmatprep.subr.mxu0 0.0
    %458 = vmatpush1.msra.mxu0 0.0
    %459 = vmatprep.subr.mxu0 0.0
    %460 = vmatpush1.msra.mxu0 0.0
    %461 = vmatprep.subr.mxu0 0.0
    %462 = vmatpush1.msra.mxu0 0.0
    %463 = vmatprep.subr.mxu0 0.0
    %464 = vmatpush1.msra.mxu0 0.0
    %465 = vmatprep.subr.mxu0 0.0
    %466 = vmatpush1.msra.mxu0 0.0
    %467 = vmatprep.subr.mxu0 0.0
    %468 = vmatpush1.msra.mxu0 0.0
    %469 = vmatprep.subr.mxu0 0.0
    %470 = vmatpush1.msra.mxu0 0.0
    %471 = vmatprep.subr.mxu0 0.0
    %472 = vmatpush1.msra.mxu0 0.0
    %473 = vmatprep.subr.mxu0 0.0
    %474 = vmatpush1.msra.mxu0 0.0
    %475 = vmatprep.subr.mxu0 0.0
    %476 = vmatpush1.msra.mxu0 0.0
    %477 = vmatprep.subr.mxu0 0.0
    %478 = vmatpush1.msra.mxu0 0.0
    %479 = vmatprep.subr.mxu0 0.0
    %480 = vmatpush1.msra.mxu0 0.0
    %481 = vmatprep.subr.mxu0 0.0
    %482 = vmatpush1.msra.mxu0 0.0
    %483 = vmatprep.subr.mxu0 0.0
    %484 = vmatpush1.msra.mxu0 0.0
    %485 = vmatprep.subr.mxu0 0.0
    %486 = vmatpush1.msra.mxu0 0.0
    %487 = vmatprep.subr.mxu0 0.0
    %488 = vmatpush1.msra.mxu0 0.0
    %489 = vmatprep.subr.mxu0 0.0
    %490 = vmatpush1.msra.mxu0 0.0
    %491 = vmatprep.subr.mxu0 0.0
    %492 = vmatpush1.msra.mxu0 0.0
    %493 = vmatprep.mubr.f32.mxu0 0.0
    %494 = vmatmul.mubr.f32.gmra.mrb[0].mxu0 %v427
    %v495 = vpop.f32.mrb[0].mxu0
    %v496 = vadd.f32 0.0, %v495
    %v497 = vpop.f32.mrb[0].mxu0
    %498 = vdwg.mxu0
    %499 = vrot.lane.b32.xlu0 %v237, 64
    %v500 = vpop.permute.xlu0 %499
    %v503 = vsel %vm243, %v422, 0
    %505 = vmatprep.subr.mxu0 0.0
    %506 = vmatpush1.msra.mxu0 %v500
    %507 = vmatprep.subr.mxu0 0.0
    %508 = vmatpush1.msra.mxu0 0.0
    %509 = vmatprep.subr.mxu0 0.0
    %510 = vmatpush1.msra.mxu0 0.0
    %511 = vmatprep.subr.mxu0 0.0
    %512 = vmatpush1.msra.mxu0 0.0
    %513 = vmatprep.subr.mxu0 0.0
    %514 = vmatpush1.msra.mxu0 0.0
    %515 = vmatprep.subr.mxu0 0.0
    %516 = vmatpush1.msra.mxu0 0.0
    %517 = vmatprep.subr.mxu0 0.0
    %518 = vmatpush1.msra.mxu0 0.0
    %519 = vmatprep.subr.mxu0 0.0
    %520 = vmatpush1.msra.mxu0 0.0
    %521 = vmatprep.subr.mxu0 0.0
    %522 = vmatpush1.msra.mxu0 0.0
    %523 = vmatprep.subr.mxu0 0.0
    %524 = vmatpush1.msra.mxu0 0.0
    %525 = vmatprep.subr.mxu0 0.0
    %526 = vmatpush1.msra.mxu0 0.0
    %527 = vmatprep.subr.mxu0 0.0
    %528 = vmatpush1.msra.mxu0 0.0
    %529 = vmatprep.subr.mxu0 0.0
    %530 = vmatpush1.msra.mxu0 0.0
    %531 = vmatprep.subr.mxu0 0.0
    %532 = vmatpush1.msra.mxu0 0.0
    %533 = vmatprep.subr.mxu0 0.0
    %534 = vmatpush1.msra.mxu0 0.0
    %535 = vmatprep.subr.mxu0 0.0
    %536 = vmatpush1.msra.mxu0 0.0
    %537 = vmatprep.subr.mxu0 0.0
    %538 = vmatpush1.msra.mxu0 0.0
    %539 = vmatprep.subr.mxu0 0.0
    %540 = vmatpush1.msra.mxu0 0.0
    %541 = vmatprep.subr.mxu0 0.0
    %542 = vmatpush1.msra.mxu0 0.0
    %543 = vmatprep.subr.mxu0 0.0
    %544 = vmatpush1.msra.mxu0 0.0
    %545 = vmatprep.subr.mxu0 0.0
    %546 = vmatpush1.msra.mxu0 0.0
    %547 = vmatprep.subr.mxu0 0.0
    %548 = vmatpush1.msra.mxu0 0.0
    %549 = vmatprep.subr.mxu0 0.0
    %550 = vmatpush1.msra.mxu0 0.0
    %551 = vmatprep.subr.mxu0 0.0
    %552 = vmatpush1.msra.mxu0 0.0
    %553 = vmatprep.subr.mxu0 0.0
    %554 = vmatpush1.msra.mxu0 0.0
    %555 = vmatprep.subr.mxu0 0.0
    %556 = vmatpush1.msra.mxu0 0.0
    %557 = vmatprep.subr.mxu0 0.0
    %558 = vmatpush1.msra.mxu0 0.0
    %559 = vmatprep.subr.mxu0 0.0
    %560 = vmatpush1.msra.mxu0 0.0
    %561 = vmatprep.subr.mxu0 0.0
    %562 = vmatpush1.msra.mxu0 0.0
    %563 = vmatprep.subr.mxu0 0.0
    %564 = vmatpush1.msra.mxu0 0.0
    %565 = vmatprep.subr.mxu0 0.0
    %566 = vmatpush1.msra.mxu0 0.0
    %567 = vmatprep.subr.mxu0 0.0
    %568 = vmatpush1.msra.mxu0 0.0
    %569 = vmatprep.mubr.f32.mxu0 0.0
    %570 = vmatmul.mubr.f32.gmra.mrb[0].mxu0 %v503
    %v571 = vpop.f32.mrb[0].mxu0
    %v572 = vadd.f32 0.0, %v571
    %v573 = vpop.f32.mrb[0].mxu0
    %574 = vdwg.mxu0
    %575 = vrot.lane.b32.xlu0 %v234, 120
    %v576 = vpop.permute.xlu0 %575
    %577 = vrot.lane.b32.xlu0 %v234, 88
    %v578 = vpop.permute.xlu0 %577
    %v579 = vsel %vm243, %v576, 0
    %v581 = vsel %vm243, %v578, 0
    %583 = vmatprep.subr.mxu0 0.0
    %584 = vmatpush1.xpose.msra.mxu0 %v581
    %585 = vmatprep.subr.mxu0 0.0
    %586 = vmatpush1.xpose.msra.mxu0 0.0
    %587 = vmatprep.subr.mxu0 0.0
    %588 = vmatpush1.xpose.msra.mxu0 0.0
    %589 = vmatprep.subr.mxu0 0.0
    %590 = vmatpush1.xpose.msra.mxu0 0.0
    %591 = vmatprep.subr.mxu0 0.0
    %592 = vmatpush1.xpose.msra.mxu0 0.0
    %593 = vmatprep.subr.mxu0 0.0
    %594 = vmatpush1.xpose.msra.mxu0 0.0
    %595 = vmatprep.subr.mxu0 0.0
    %596 = vmatpush1.xpose.msra.mxu0 0.0
    %597 = vmatprep.subr.mxu0 0.0
    %598 = vmatpush1.xpose.msra.mxu0 0.0
    %599 = vmatprep.subr.mxu0 0.0
    %600 = vmatpush1.xpose.msra.mxu0 0.0
    %601 = vmatprep.subr.mxu0 0.0
    %602 = vmatpush1.xpose.msra.mxu0 0.0
    %603 = vmatprep.subr.mxu0 0.0
    %604 = vmatpush1.xpose.msra.mxu0 0.0
    %605 = vmatprep.subr.mxu0 0.0
    %606 = vmatpush1.xpose.msra.mxu0 0.0
    %607 = vmatprep.subr.mxu0 0.0
    %608 = vmatpush1.xpose.msra.mxu0 0.0
    %609 = vmatprep.subr.mxu0 0.0
    %610 = vmatpush1.xpose.msra.mxu0 0.0
    %611 = vmatprep.subr.mxu0 0.0
    %612 = vmatpush1.xpose.msra.mxu0 0.0
    %613 = vmatprep.subr.mxu0 0.0
    %614 = vmatpush1.xpose.msra.mxu0 0.0
    %615 = vmatprep.subr.mxu0 0.0
    %616 = vmatpush1.xpose.msra.mxu0 0.0
    %617 = vmatprep.subr.mxu0 0.0
    %618 = vmatpush1.xpose.msra.mxu0 0.0
    %619 = vmatprep.subr.mxu0 0.0
    %620 = vmatpush1.xpose.msra.mxu0 0.0
    %621 = vmatprep.subr.mxu0 0.0
    %622 = vmatpush1.xpose.msra.mxu0 0.0
    %623 = vmatprep.subr.mxu0 0.0
    %624 = vmatpush1.xpose.msra.mxu0 0.0
    %625 = vmatprep.subr.mxu0 0.0
    %626 = vmatpush1.xpose.msra.mxu0 0.0
    %627 = vmatprep.subr.mxu0 0.0
    %628 = vmatpush1.xpose.msra.mxu0 0.0
    %629 = vmatprep.subr.mxu0 0.0
    %630 = vmatpush1.xpose.msra.mxu0 0.0
    %631 = vmatprep.subr.mxu0 0.0
    %632 = vmatpush1.xpose.msra.mxu0 0.0
    %633 = vmatprep.subr.mxu0 0.0
    %634 = vmatpush1.xpose.msra.mxu0 0.0
    %635 = vmatprep.subr.mxu0 0.0
    %636 = vmatpush1.xpose.msra.mxu0 0.0
    %637 = vmatprep.subr.mxu0 0.0
    %638 = vmatpush1.xpose.msra.mxu0 0.0
    %639 = vmatprep.subr.mxu0 0.0
    %640 = vmatpush1.xpose.msra.mxu0 0.0
    %641 = vmatprep.subr.mxu0 0.0
    %642 = vmatpush1.xpose.msra.mxu0 0.0
    %643 = vmatprep.subr.mxu0 0.0
    %644 = vmatpush1.xpose.msra.mxu0 0.0
    %645 = vmatprep.subr.mxu0 0.0
    %646 = vmatpush1.xpose.msra.mxu0 0.0
    %647 = vmatprep.mubr.f32.mxu0 0.0
    %648 = vmatmul.mubr.f32.gmra.mrb[0].mxu0 %v579
    %v649 = vpop.f32.mrb[0].mxu0
    %v650 = vadd.f32 0.0, %v649
    %v651 = vpop.f32.mrb[0].mxu0
    %652 = vdwg.mxu0
    %653 = vrot.lane.b32.xlu0 %v237, 120
    %v654 = vpop.permute.xlu0 %653
    %655 = vrot.lane.b32.xlu0 %v237, 88
    %v656 = vpop.permute.xlu0 %655
    %v657 = vsel %vm243, %v654, 0
    %v659 = vsel %vm243, %v656, 0
    %661 = vmatprep.subr.mxu0 0.0
    %662 = vmatpush1.xpose.msra.mxu0 %v659
    %663 = vmatprep.subr.mxu0 0.0
    %664 = vmatpush1.xpose.msra.mxu0 0.0
    %665 = vmatprep.subr.mxu0 0.0
    %666 = vmatpush1.xpose.msra.mxu0 0.0
    %667 = vmatprep.subr.mxu0 0.0
    %668 = vmatpush1.xpose.msra.mxu0 0.0
    %669 = vmatprep.subr.mxu0 0.0
    %670 = vmatpush1.xpose.msra.mxu0 0.0
    %671 = vmatprep.subr.mxu0 0.0
    %672 = vmatpush1.xpose.msra.mxu0 0.0
    %673 = vmatprep.subr.mxu0 0.0
    %674 = vmatpush1.xpose.msra.mxu0 0.0
    %675 = vmatprep.subr.mxu0 0.0
    %676 = vmatpush1.xpose.msra.mxu0 0.0
    %677 = vmatprep.subr.mxu0 0.0
    %678 = vmatpush1.xpose.msra.mxu0 0.0
    %679 = vmatprep.subr.mxu0 0.0
    %680 = vmatpush1.xpose.msra.mxu0 0.0
    %681 = vmatprep.subr.mxu0 0.0
    %682 = vmatpush1.xpose.msra.mxu0 0.0
    %683 = vmatprep.subr.mxu0 0.0
    %684 = vmatpush1.xpose.msra.mxu0 0.0
    %685 = vmatprep.subr.mxu0 0.0
    %686 = vmatpush1.xpose.msra.mxu0 0.0
    %687 = vmatprep.subr.mxu0 0.0
    %688 = vmatpush1.xpose.msra.mxu0 0.0
    %689 = vmatprep.subr.mxu0 0.0
    %690 = vmatpush1.xpose.msra.mxu0 0.0
    %691 = vmatprep.subr.mxu0 0.0
    %692 = vmatpush1.xpose.msra.mxu0 0.0
    %693 = vmatprep.subr.mxu0 0.0
    %694 = vmatpush1.xpose.msra.mxu0 0.0
    %695 = vmatprep.subr.mxu0 0.0
    %696 = vmatpush1.xpose.msra.mxu0 0.0
    %697 = vmatprep.subr.mxu0 0.0
    %698 = vmatpush1.xpose.msra.mxu0 0.0
    %699 = vmatprep.subr.mxu0 0.0
    %700 = vmatpush1.xpose.msra.mxu0 0.0
    %701 = vmatprep.subr.mxu0 0.0
    %702 = vmatpush1.xpose.msra.mxu0 0.0
    %703 = vmatprep.subr.mxu0 0.0
    %704 = vmatpush1.xpose.msra.mxu0 0.0
    %705 = vmatprep.subr.mxu0 0.0
    %706 = vmatpush1.xpose.msra.mxu0 0.0
    %707 = vmatprep.subr.mxu0 0.0
    %708 = vmatpush1.xpose.msra.mxu0 0.0
    %709 = vmatprep.subr.mxu0 0.0
    %710 = vmatpush1.xpose.msra.mxu0 0.0
    %711 = vmatprep.subr.mxu0 0.0
    %712 = vmatpush1.xpose.msra.mxu0 0.0
    %713 = vmatprep.subr.mxu0 0.0
    %714 = vmatpush1.xpose.msra.mxu0 0.0
    %715 = vmatprep.subr.mxu0 0.0
    %716 = vmatpush1.xpose.msra.mxu0 0.0
    %717 = vmatprep.subr.mxu0 0.0
    %718 = vmatpush1.xpose.msra.mxu0 0.0
    %719 = vmatprep.subr.mxu0 0.0
    %720 = vmatpush1.xpose.msra.mxu0 0.0
    %721 = vmatprep.subr.mxu0 0.0
    %722 = vmatpush1.xpose.msra.mxu0 0.0
    %723 = vmatprep.subr.mxu0 0.0
    %724 = vmatpush1.xpose.msra.mxu0 0.0
    %725 = vmatprep.mubr.f32.mxu0 0.0
    %726 = vmatmul.mubr.f32.gmra.mrb[0].mxu0 %v657
    %v727 = vpop.f32.mrb[0].mxu0
    %v728 = vadd.f32 0.0, %v727
    %v729 = vpop.f32.mrb[0].mxu0
    %730 = vdwg.mxu0
    %v731 = vmul.f32 %v650, 0.35355338
    %v732 = vmul.f32 %v728, 0.35355338
    %v733 = vsel %vm398, %v731, -1e+30
    %v734 = vsel %vm398, %v732, -1e+30
    %v735 = vsel %vm243, %v733, -inf
    %736 = vmax.xlane.f32.xlu0 %v735
    %v737 = vpop.xlane.xlu0 %736
    %v738 = vsel %vm243, %v734, -inf
    %739 = vmax.xlane.f32.xlu0 %v738
    %v740 = vpop.xlane.xlu0 %739
    %v741 = vsub.f32 %v733, %v737
    %v742 = vsub.f32 %v734, %v740
    %v743 = vmul.f32 %v741, 1.442695
    %v744 = vpow.pop %v743
    %v745 = vmul.f32 %v742, 1.442695
    %v746 = vpow.pop %v745
    %v747 = vsel %vm243, %v744, 0.0
    %748 = vadd.xlane.f32.xlu0 %v747
    %v749 = vpop.xlane.xlu0 %748
    %v750 = vsel %vm243, %v746, 0.0
    %751 = vadd.xlane.f32.xlu0 %v750
    %v752 = vpop.xlane.xlu0 %751
    %v753 = vrcp.pop %v749
    %v754 = vrcp.pop %v752
    %v755 = vmul.f32 %v744, %v753
    %v756 = vmul.f32 %v746, %v754
    %757 = vrot.lane.b32.xlu0 %v234, 56
    %v758 = vpop.permute.xlu0 %757
    %v761 = vsel %vm243, %v755, 0
    %763 = vmatprep.subr.mxu0 0.0
    %764 = vmatpush1.msra.mxu0 %v758
    %765 = vmatprep.subr.mxu0 0.0
    %766 = vmatpush1.msra.mxu0 0.0
    %767 = vmatprep.subr.mxu0 0.0
    %768 = vmatpush1.msra.mxu0 0.0
    %769 = vmatprep.subr.mxu0 0.0
    %770 = vmatpush1.msra.mxu0 0.0
    %771 = vmatprep.subr.mxu0 0.0
    %772 = vmatpush1.msra.mxu0 0.0
    %773 = vmatprep.subr.mxu0 0.0
    %774 = vmatpush1.msra.mxu0 0.0
    %775 = vmatprep.subr.mxu0 0.0
    %776 = vmatpush1.msra.mxu0 0.0
    %777 = vmatprep.subr.mxu0 0.0
    %778 = vmatpush1.msra.mxu0 0.0
    %779 = vmatprep.subr.mxu0 0.0
    %780 = vmatpush1.msra.mxu0 0.0
    %781 = vmatprep.subr.mxu0 0.0
    %782 = vmatpush1.msra.mxu0 0.0
    %783 = vmatprep.subr.mxu0 0.0
    %784 = vmatpush1.msra.mxu0 0.0
    %785 = vmatprep.subr.mxu0 0.0
    %786 = vmatpush1.msra.mxu0 0.0
    %787 = vmatprep.subr.mxu0 0.0
    %788 = vmatpush1.msra.mxu0 0.0
    %789 = vmatprep.subr.mxu0 0.0
    %790 = vmatpush1.msra.mxu0 0.0
    %791 = vmatprep.subr.mxu0 0.0
    %792 = vmatpush1.msra.mxu0 0.0
    %793 = vmatprep.subr.mxu0 0.0
    %794 = vmatpush1.msra.mxu0 0.0
    %795 = vmatprep.subr.mxu0 0.0
    %796 = vmatpush1.msra.mxu0 0.0
    %797 = vmatprep.subr.mxu0 0.0
    %798 = vmatpush1.msra.mxu0 0.0
    %799 = vmatprep.subr.mxu0 0.0
    %800 = vmatpush1.msra.mxu0 0.0
    %801 = vmatprep.subr.mxu0 0.0
    %802 = vmatpush1.msra.mxu0 0.0
    %803 = vmatprep.subr.mxu0 0.0
    %804 = vmatpush1.msra.mxu0 0.0
    %805 = vmatprep.subr.mxu0 0.0
    %806 = vmatpush1.msra.mxu0 0.0
    %807 = vmatprep.subr.mxu0 0.0
    %808 = vmatpush1.msra.mxu0 0.0
    %809 = vmatprep.subr.mxu0 0.0
    %810 = vmatpush1.msra.mxu0 0.0
    %811 = vmatprep.subr.mxu0 0.0
    %812 = vmatpush1.msra.mxu0 0.0
    %813 = vmatprep.subr.mxu0 0.0
    %814 = vmatpush1.msra.mxu0 0.0
    %815 = vmatprep.subr.mxu0 0.0
    %816 = vmatpush1.msra.mxu0 0.0
    %817 = vmatprep.subr.mxu0 0.0
    %818 = vmatpush1.msra.mxu0 0.0
    %819 = vmatprep.subr.mxu0 0.0
    %820 = vmatpush1.msra.mxu0 0.0
    %821 = vmatprep.subr.mxu0 0.0
    %822 = vmatpush1.msra.mxu0 0.0
    %823 = vmatprep.subr.mxu0 0.0
    %824 = vmatpush1.msra.mxu0 0.0
    %825 = vmatprep.subr.mxu0 0.0
    %826 = vmatpush1.msra.mxu0 0.0
    %827 = vmatprep.mubr.f32.mxu0 0.0
    %828 = vmatmul.mubr.f32.gmra.mrb[0].mxu0 %v761
    %v829 = vpop.f32.mrb[0].mxu0
    %v830 = vadd.f32 0.0, %v829
    %v831 = vpop.f32.mrb[0].mxu0
    %832 = vdwg.mxu0
    %833 = vrot.lane.b32.xlu0 %v237, 56
    %v834 = vpop.permute.xlu0 %833
    %v837 = vsel %vm243, %v756, 0
    %839 = vmatprep.subr.mxu0 0.0
    %840 = vmatpush1.msra.mxu0 %v834
    %841 = vmatprep.subr.mxu0 0.0
    %842 = vmatpush1.msra.mxu0 0.0
    %843 = vmatprep.subr.mxu0 0.0
    %844 = vmatpush1.msra.mxu0 0.0
    %845 = vmatprep.subr.mxu0 0.0
    %846 = vmatpush1.msra.mxu0 0.0
    %847 = vmatprep.subr.mxu0 0.0
    %848 = vmatpush1.msra.mxu0 0.0
    %849 = vmatprep.subr.mxu0 0.0
    %850 = vmatpush1.msra.mxu0 0.0
    %851 = vmatprep.subr.mxu0 0.0
    %852 = vmatpush1.msra.mxu0 0.0
    %853 = vmatprep.subr.mxu0 0.0
    %854 = vmatpush1.msra.mxu0 0.0
    %855 = vmatprep.subr.mxu0 0.0
    %856 = vmatpush1.msra.mxu0 0.0
    %857 = vmatprep.subr.mxu0 0.0
    %858 = vmatpush1.msra.mxu0 0.0
    %859 = vmatprep.subr.mxu0 0.0
    %860 = vmatpush1.msra.mxu0 0.0
    %861 = vmatprep.subr.mxu0 0.0
    %862 = vmatpush1.msra.mxu0 0.0
    %863 = vmatprep.subr.mxu0 0.0
    %864 = vmatpush1.msra.mxu0 0.0
    %865 = vmatprep.subr.mxu0 0.0
    %866 = vmatpush1.msra.mxu0 0.0
    %867 = vmatprep.subr.mxu0 0.0
    %868 = vmatpush1.msra.mxu0 0.0
    %869 = vmatprep.subr.mxu0 0.0
    %870 = vmatpush1.msra.mxu0 0.0
    %871 = vmatprep.subr.mxu0 0.0
    %872 = vmatpush1.msra.mxu0 0.0
    %873 = vmatprep.subr.mxu0 0.0
    %874 = vmatpush1.msra.mxu0 0.0
    %875 = vmatprep.subr.mxu0 0.0
    %876 = vmatpush1.msra.mxu0 0.0
    %877 = vmatprep.subr.mxu0 0.0
    %878 = vmatpush1.msra.mxu0 0.0
    %879 = vmatprep.subr.mxu0 0.0
    %880 = vmatpush1.msra.mxu0 0.0
    %881 = vmatprep.subr.mxu0 0.0
    %882 = vmatpush1.msra.mxu0 0.0
    %883 = vmatprep.subr.mxu0 0.0
    %884 = vmatpush1.msra.mxu0 0.0
    %885 = vmatprep.subr.mxu0 0.0
    %886 = vmatpush1.msra.mxu0 0.0
    %887 = vmatprep.subr.mxu0 0.0
    %888 = vmatpush1.msra.mxu0 0.0
    %889 = vmatprep.subr.mxu0 0.0
    %890 = vmatpush1.msra.mxu0 0.0
    %891 = vmatprep.subr.mxu0 0.0
    %892 = vmatpush1.msra.mxu0 0.0
    %893 = vmatprep.subr.mxu0 0.0
    %894 = vmatpush1.msra.mxu0 0.0
    %895 = vmatprep.subr.mxu0 0.0
    %896 = vmatpush1.msra.mxu0 0.0
    %897 = vmatprep.subr.mxu0 0.0
    %898 = vmatpush1.msra.mxu0 0.0
    %899 = vmatprep.subr.mxu0 0.0
    %900 = vmatpush1.msra.mxu0 0.0
    %901 = vmatprep.subr.mxu0 0.0
    %902 = vmatpush1.msra.mxu0 0.0
    %903 = vmatprep.mubr.f32.mxu0 0.0
    %904 = vmatmul.mubr.f32.gmra.mrb[0].mxu0 %v837
    %v905 = vpop.f32.mrb[0].mxu0
    %v906 = vadd.f32 0.0, %v905
    %v907 = vpop.f32.mrb[0].mxu0
    %908 = vdwg.mxu0
    %909 = vrot.lane.b32.xlu0 %v234, 112
    %v910 = vpop.permute.xlu0 %909
    %911 = vrot.lane.b32.xlu0 %v234, 80
    %v912 = vpop.permute.xlu0 %911
    %v913 = vsel %vm243, %v910, 0
    %v915 = vsel %vm243, %v912, 0
    %917 = vmatprep.subr.mxu0 0.0
    %918 = vmatpush1.xpose.msra.mxu0 %v915
    %919 = vmatprep.subr.mxu0 0.0
    %920 = vmatpush1.xpose.msra.mxu0 0.0
    %921 = vmatprep.subr.mxu0 0.0
    %922 = vmatpush1.xpose.msra.mxu0 0.0
    %923 = vmatprep.subr.mxu0 0.0
    %924 = vmatpush1.xpose.msra.mxu0 0.0
    %925 = vmatprep.subr.mxu0 0.0
    %926 = vmatpush1.xpose.msra.mxu0 0.0
    %927 = vmatprep.subr.mxu0 0.0
    %928 = vmatpush1.xpose.msra.mxu0 0.0
    %929 = vmatprep.subr.mxu0 0.0
    %930 = vmatpush1.xpose.msra.mxu0 0.0
    %931 = vmatprep.subr.mxu0 0.0
    %932 = vmatpush1.xpose.msra.mxu0 0.0
    %933 = vmatprep.subr.mxu0 0.0
    %934 = vmatpush1.xpose.msra.mxu0 0.0
    %935 = vmatprep.subr.mxu0 0.0
    %936 = vmatpush1.xpose.msra.mxu0 0.0
    %937 = vmatprep.subr.mxu0 0.0
    %938 = vmatpush1.xpose.msra.mxu0 0.0
    %939 = vmatprep.subr.mxu0 0.0
    %940 = vmatpush1.xpose.msra.mxu0 0.0
    %941 = vmatprep.subr.mxu0 0.0
    %942 = vmatpush1.xpose.msra.mxu0 0.0
    %943 = vmatprep.subr.mxu0 0.0
    %944 = vmatpush1.xpose.msra.mxu0 0.0
    %945 = vmatprep.subr.mxu0 0.0
    %946 = vmatpush1.xpose.msra.mxu0 0.0
    %947 = vmatprep.subr.mxu0 0.0
    %948 = vmatpush1.xpose.msra.mxu0 0.0
    %949 = vmatprep.subr.mxu0 0.0
    %950 = vmatpush1.xpose.msra.mxu0 0.0
    %951 = vmatprep.subr.mxu0 0.0
    %952 = vmatpush1.xpose.msra.mxu0 0.0
    %953 = vmatprep.subr.mxu0 0.0
    %954 = vmatpush1.xpose.msra.mxu0 0.0
    %955 = vmatprep.subr.mxu0 0.0
    %956 = vmatpush1.xpose.msra.mxu0 0.0
    %957 = vmatprep.subr.mxu0 0.0
    %958 = vmatpush1.xpose.msra.mxu0 0.0
    %959 = vmatprep.subr.mxu0 0.0
    %960 = vmatpush1.xpose.msra.mxu0 0.0
    %961 = vmatprep.subr.mxu0 0.0
    %962 = vmatpush1.xpose.msra.mxu0 0.0
    %963 = vmatprep.subr.mxu0 0.0
    %964 = vmatpush1.xpose.msra.mxu0 0.0
    %965 = vmatprep.subr.mxu0 0.0
    %966 = vmatpush1.xpose.msra.mxu0 0.0
    %967 = vmatprep.subr.mxu0 0.0
    %968 = vmatpush1.xpose.msra.mxu0 0.0
    %969 = vmatprep.subr.mxu0 0.0
    %970 = vmatpush1.xpose.msra.mxu0 0.0
    %971 = vmatprep.subr.mxu0 0.0
    %972 = vmatpush1.xpose.msra.mxu0 0.0
    %973 = vmatprep.subr.mxu0 0.0
    %974 = vmatpush1.xpose.msra.mxu0 0.0
    %975 = vmatprep.subr.mxu0 0.0
    %976 = vmatpush1.xpose.msra.mxu0 0.0
    %977 = vmatprep.subr.mxu0 0.0
    %978 = vmatpush1.xpose.msra.mxu0 0.0
    %979 = vmatprep.subr.mxu0 0.0
    %980 = vmatpush1.xpose.msra.mxu0 0.0
    %981 = vmatprep.mubr.f32.mxu0 0.0
    %982 = vmatmul.mubr.f32.gmra.mrb[0].mxu0 %v913
    %v983 = vpop.f32.mrb[0].mxu0
    %v984 = vadd.f32 0.0, %v983
    %v985 = vpop.f32.mrb[0].mxu0
    %986 = vdwg.mxu0
    %987 = vrot.lane.b32.xlu0 %v237, 112
    %v988 = vpop.permute.xlu0 %987
    %989 = vrot.lane.b32.xlu0 %v237, 80
    %v990 = vpop.permute.xlu0 %989
    %v991 = vsel %vm243, %v988, 0
    %v993 = vsel %vm243, %v990, 0
    %995 = vmatprep.subr.mxu0 0.0
    %996 = vmatpush1.xpose.msra.mxu0 %v993
    %997 = vmatprep.subr.mxu0 0.0
    %998 = vmatpush1.xpose.msra.mxu0 0.0
    %999 = vmatprep.subr.mxu0 0.0
    %1000 = vmatpush1.xpose.msra.mxu0 0.0
    %1001 = vmatprep.subr.mxu0 0.0
    %1002 = vmatpush1.xpose.msra.mxu0 0.0
    %1003 = vmatprep.subr.mxu0 0.0
    %1004 = vmatpush1.xpose.msra.mxu0 0.0
    %1005 = vmatprep.subr.mxu0 0.0
    %1006 = vmatpush1.xpose.msra.mxu0 0.0
    %1007 = vmatprep.subr.mxu0 0.0
    %1008 = vmatpush1.xpose.msra.mxu0 0.0
    %1009 = vmatprep.subr.mxu0 0.0
    %1010 = vmatpush1.xpose.msra.mxu0 0.0
    %1011 = vmatprep.subr.mxu0 0.0
    %1012 = vmatpush1.xpose.msra.mxu0 0.0
    %1013 = vmatprep.subr.mxu0 0.0
    %1014 = vmatpush1.xpose.msra.mxu0 0.0
    %1015 = vmatprep.subr.mxu0 0.0
    %1016 = vmatpush1.xpose.msra.mxu0 0.0
    %1017 = vmatprep.subr.mxu0 0.0
    %1018 = vmatpush1.xpose.msra.mxu0 0.0
    %1019 = vmatprep.subr.mxu0 0.0
    %1020 = vmatpush1.xpose.msra.mxu0 0.0
    %1021 = vmatprep.subr.mxu0 0.0
    %1022 = vmatpush1.xpose.msra.mxu0 0.0
    %1023 = vmatprep.subr.mxu0 0.0
    %1024 = vmatpush1.xpose.msra.mxu0 0.0
    %1025 = vmatprep.subr.mxu0 0.0
    %1026 = vmatpush1.xpose.msra.mxu0 0.0
    %1027 = vmatprep.subr.mxu0 0.0
    %1028 = vmatpush1.xpose.msra.mxu0 0.0
    %1029 = vmatprep.subr.mxu0 0.0
    %1030 = vmatpush1.xpose.msra.mxu0 0.0
    %1031 = vmatprep.subr.mxu0 0.0
    %1032 = vmatpush1.xpose.msra.mxu0 0.0
    %1033 = vmatprep.subr.mxu0 0.0
    %1034 = vmatpush1.xpose.msra.mxu0 0.0
    %1035 = vmatprep.subr.mxu0 0.0
    %1036 = vmatpush1.xpose.msra.mxu0 0.0
    %1037 = vmatprep.subr.mxu0 0.0
    %1038 = vmatpush1.xpose.msra.mxu0 0.0
    %1039 = vmatprep.subr.mxu0 0.0
    %1040 = vmatpush1.xpose.msra.mxu0 0.0
    %1041 = vmatprep.subr.mxu0 0.0
    %1042 = vmatpush1.xpose.msra.mxu0 0.0
    %1043 = vmatprep.subr.mxu0 0.0
    %1044 = vmatpush1.xpose.msra.mxu0 0.0
    %1045 = vmatprep.subr.mxu0 0.0
    %1046 = vmatpush1.xpose.msra.mxu0 0.0
    %1047 = vmatprep.subr.mxu0 0.0
    %1048 = vmatpush1.xpose.msra.mxu0 0.0
    %1049 = vmatprep.subr.mxu0 0.0
    %1050 = vmatpush1.xpose.msra.mxu0 0.0
    %1051 = vmatprep.subr.mxu0 0.0
    %1052 = vmatpush1.xpose.msra.mxu0 0.0
    %1053 = vmatprep.subr.mxu0 0.0
    %1054 = vmatpush1.xpose.msra.mxu0 0.0
    %1055 = vmatprep.subr.mxu0 0.0
    %1056 = vmatpush1.xpose.msra.mxu0 0.0
    %1057 = vmatprep.subr.mxu0 0.0
    %1058 = vmatpush1.xpose.msra.mxu0 0.0
    %1059 = vmatprep.mubr.f32.mxu0 0.0
    %1060 = vmatmul.mubr.f32.gmra.mrb[0].mxu0 %v991
    %v1061 = vpop.f32.mrb[0].mxu0
    %v1062 = vadd.f32 0.0, %v1061
    %v1063 = vpop.f32.mrb[0].mxu0
    %1064 = vdwg.mxu0
    %v1065 = vmul.f32 %v984, 0.35355338
    %v1066 = vmul.f32 %v1062, 0.35355338
    %v1067 = vsel %vm398, %v1065, -1e+30
    %v1068 = vsel %vm398, %v1066, -1e+30
    %v1069 = vsel %vm243, %v1067, -inf
    %1070 = vmax.xlane.f32.xlu0 %v1069
    %v1071 = vpop.xlane.xlu0 %1070
    %v1072 = vsel %vm243, %v1068, -inf
    %1073 = vmax.xlane.f32.xlu0 %v1072
    %v1074 = vpop.xlane.xlu0 %1073
    %v1075 = vsub.f32 %v1067, %v1071
    %v1076 = vsub.f32 %v1068, %v1074
    %v1077 = vmul.f32 %v1075, 1.442695
    %v1078 = vpow.pop %v1077
    %v1079 = vmul.f32 %v1076, 1.442695
    %v1080 = vpow.pop %v1079
    %v1081 = vsel %vm243, %v1078, 0.0
    %1082 = vadd.xlane.f32.xlu0 %v1081
    %v1083 = vpop.xlane.xlu0 %1082
    %v1084 = vsel %vm243, %v1080, 0.0
    %1085 = vadd.xlane.f32.xlu0 %v1084
    %v1086 = vpop.xlane.xlu0 %1085
    %v1087 = vrcp.pop %v1083
    %v1088 = vrcp.pop %v1086
    %v1089 = vmul.f32 %v1078, %v1087
    %v1090 = vmul.f32 %v1080, %v1088
    %1091 = vrot.lane.b32.xlu0 %v234, 48
    %v1092 = vpop.permute.xlu0 %1091
    %v1095 = vsel %vm243, %v1089, 0
    %1097 = vmatprep.subr.mxu0 0.0
    %1098 = vmatpush1.msra.mxu0 %v1092
    %1099 = vmatprep.subr.mxu0 0.0
    %1100 = vmatpush1.msra.mxu0 0.0
    %1101 = vmatprep.subr.mxu0 0.0
    %1102 = vmatpush1.msra.mxu0 0.0
    %1103 = vmatprep.subr.mxu0 0.0
    %1104 = vmatpush1.msra.mxu0 0.0
    %1105 = vmatprep.subr.mxu0 0.0
    %1106 = vmatpush1.msra.mxu0 0.0
    %1107 = vmatprep.subr.mxu0 0.0
    %1108 = vmatpush1.msra.mxu0 0.0
    %1109 = vmatprep.subr.mxu0 0.0
    %1110 = vmatpush1.msra.mxu0 0.0
    %1111 = vmatprep.subr.mxu0 0.0
    %1112 = vmatpush1.msra.mxu0 0.0
    %1113 = vmatprep.subr.mxu0 0.0
    %1114 = vmatpush1.msra.mxu0 0.0
    %1115 = vmatprep.subr.mxu0 0.0
    %1116 = vmatpush1.msra.mxu0 0.0
    %1117 = vmatprep.subr.mxu0 0.0
    %1118 = vmatpush1.msra.mxu0 0.0
    %1119 = vmatprep.subr.mxu0 0.0
    %1120 = vmatpush1.msra.mxu0 0.0
    %1121 = vmatprep.subr.mxu0 0.0
    %1122 = vmatpush1.msra.mxu0 0.0
    %1123 = vmatprep.subr.mxu0 0.0
    %1124 = vmatpush1.msra.mxu0 0.0
    %1125 = vmatprep.subr.mxu0 0.0
    %1126 = vmatpush1.msra.mxu0 0.0
    %1127 = vmatprep.subr.mxu0 0.0
    %1128 = vmatpush1.msra.mxu0 0.0
    %1129 = vmatprep.subr.mxu0 0.0
    %1130 = vmatpush1.msra.mxu0 0.0
    %1131 = vmatprep.subr.mxu0 0.0
    %1132 = vmatpush1.msra.mxu0 0.0
    %1133 = vmatprep.subr.mxu0 0.0
    %1134 = vmatpush1.msra.mxu0 0.0
    %1135 = vmatprep.subr.mxu0 0.0
    %1136 = vmatpush1.msra.mxu0 0.0
    %1137 = vmatprep.subr.mxu0 0.0
    %1138 = vmatpush1.msra.mxu0 0.0
    %1139 = vmatprep.subr.mxu0 0.0
    %1140 = vmatpush1.msra.mxu0 0.0
    %1141 = vmatprep.subr.mxu0 0.0
    %1142 = vmatpush1.msra.mxu0 0.0
    %1143 = vmatprep.subr.mxu0 0.0
    %1144 = vmatpush1.msra.mxu0 0.0
    %1145 = vmatprep.subr.mxu0 0.0
    %1146 = vmatpush1.msra.mxu0 0.0
    %1147 = vmatprep.subr.mxu0 0.0
    %1148 = vmatpush1.msra.mxu0 0.0
    %1149 = vmatprep.subr.mxu0 0.0
    %1150 = vmatpush1.msra.mxu0 0.0
    %1151 = vmatprep.subr.mxu0 0.0
    %1152 = vmatpush1.msra.mxu0 0.0
    %1153 = vmatprep.subr.mxu0 0.0
    %1154 = vmatpush1.msra.mxu0 0.0
    %1155 = vmatprep.subr.mxu0 0.0
    %1156 = vmatpush1.msra.mxu0 0.0
    %1157 = vmatprep.subr.mxu0 0.0
    %1158 = vmatpush1.msra.mxu0 0.0
    %1159 = vmatprep.subr.mxu0 0.0
    %1160 = vmatpush1.msra.mxu0 0.0
    %1161 = vmatprep.mubr.f32.mxu0 0.0
    %1162 = vmatmul.mubr.f32.gmra.mrb[0].mxu0 %v1095
    %v1163 = vpop.f32.mrb[0].mxu0
    %v1164 = vadd.f32 0.0, %v1163
    %v1165 = vpop.f32.mrb[0].mxu0
    %1166 = vdwg.mxu0
    %1167 = vrot.lane.b32.xlu0 %v237, 48
    %v1168 = vpop.permute.xlu0 %1167
    %v1171 = vsel %vm243, %v1090, 0
    %1173 = vmatprep.subr.mxu0 0.0
    %1174 = vmatpush1.msra.mxu0 %v1168
    %1175 = vmatprep.subr.mxu0 0.0
    %1176 = vmatpush1.msra.mxu0 0.0
    %1177 = vmatprep.subr.mxu0 0.0
    %1178 = vmatpush1.msra.mxu0 0.0
    %1179 = vmatprep.subr.mxu0 0.0
    %1180 = vmatpush1.msra.mxu0 0.0
    %1181 = vmatprep.subr.mxu0 0.0
    %1182 = vmatpush1.msra.mxu0 0.0
    %1183 = vmatprep.subr.mxu0 0.0
    %1184 = vmatpush1.msra.mxu0 0.0
    %1185 = vmatprep.subr.mxu0 0.0
    %1186 = vmatpush1.msra.mxu0 0.0
    %1187 = vmatprep.subr.mxu0 0.0
    %1188 = vmatpush1.msra.mxu0 0.0
    %1189 = vmatprep.subr.mxu0 0.0
    %1190 = vmatpush1.msra.mxu0 0.0
    %1191 = vmatprep.subr.mxu0 0.0
    %1192 = vmatpush1.msra.mxu0 0.0
    %1193 = vmatprep.subr.mxu0 0.0
    %1194 = vmatpush1.msra.mxu0 0.0
    %1195 = vmatprep.subr.mxu0 0.0
    %1196 = vmatpush1.msra.mxu0 0.0
    %1197 = vmatprep.subr.mxu0 0.0
    %1198 = vmatpush1.msra.mxu0 0.0
    %1199 = vmatprep.subr.mxu0 0.0
    %1200 = vmatpush1.msra.mxu0 0.0
    %1201 = vmatprep.subr.mxu0 0.0
    %1202 = vmatpush1.msra.mxu0 0.0
    %1203 = vmatprep.subr.mxu0 0.0
    %1204 = vmatpush1.msra.mxu0 0.0
    %1205 = vmatprep.subr.mxu0 0.0
    %1206 = vmatpush1.msra.mxu0 0.0
    %1207 = vmatprep.subr.mxu0 0.0
    %1208 = vmatpush1.msra.mxu0 0.0
    %1209 = vmatprep.subr.mxu0 0.0
    %1210 = vmatpush1.msra.mxu0 0.0
    %1211 = vmatprep.subr.mxu0 0.0
    %1212 = vmatpush1.msra.mxu0 0.0
    %1213 = vmatprep.subr.mxu0 0.0
    %1214 = vmatpush1.msra.mxu0 0.0
    %1215 = vmatprep.subr.mxu0 0.0
    %1216 = vmatpush1.msra.mxu0 0.0
    %1217 = vmatprep.subr.mxu0 0.0
    %1218 = vmatpush1.msra.mxu0 0.0
    %1219 = vmatprep.subr.mxu0 0.0
    %1220 = vmatpush1.msra.mxu0 0.0
    %1221 = vmatprep.subr.mxu0 0.0
    %1222 = vmatpush1.msra.mxu0 0.0
    %1223 = vmatprep.subr.mxu0 0.0
    %1224 = vmatpush1.msra.mxu0 0.0
    %1225 = vmatprep.subr.mxu0 0.0
    %1226 = vmatpush1.msra.mxu0 0.0
    %1227 = vmatprep.subr.mxu0 0.0
    %1228 = vmatpush1.msra.mxu0 0.0
    %1229 = vmatprep.subr.mxu0 0.0
    %1230 = vmatpush1.msra.mxu0 0.0
    %1231 = vmatprep.subr.mxu0 0.0
    %1232 = vmatpush1.msra.mxu0 0.0
    %1233 = vmatprep.subr.mxu0 0.0
    %1234 = vmatpush1.msra.mxu0 0.0
    %1235 = vmatprep.subr.mxu0 0.0
    %1236 = vmatpush1.msra.mxu0 0.0
    %1237 = vmatprep.mubr.f32.mxu0 0.0
    %1238 = vmatmul.mubr.f32.gmra.mrb[0].mxu0 %v1171
    %v1239 = vpop.f32.mrb[0].mxu0
    %v1240 = vadd.f32 0.0, %v1239
    %v1241 = vpop.f32.mrb[0].mxu0
    %1242 = vdwg.mxu0
    %1243 = vrot.lane.b32.xlu0 %v234, 104
    %v1244 = vpop.permute.xlu0 %1243
    %1245 = vrot.lane.b32.xlu0 %v234, 72
    %v1246 = vpop.permute.xlu0 %1245
    %v1247 = vsel %vm243, %v1244, 0
    %v1249 = vsel %vm243, %v1246, 0
    %1251 = vmatprep.subr.mxu0 0.0
    %1252 = vmatpush1.xpose.msra.mxu0 %v1249
    %1253 = vmatprep.subr.mxu0 0.0
    %1254 = vmatpush1.xpose.msra.mxu0 0.0
    %1255 = vmatprep.subr.mxu0 0.0
    %1256 = vmatpush1.xpose.msra.mxu0 0.0
    %1257 = vmatprep.subr.mxu0 0.0
    %1258 = vmatpush1.xpose.msra.mxu0 0.0
    %1259 = vmatprep.subr.mxu0 0.0
    %1260 = vmatpush1.xpose.msra.mxu0 0.0
    %1261 = vmatprep.subr.mxu0 0.0
    %1262 = vmatpush1.xpose.msra.mxu0 0.0
    %1263 = vmatprep.subr.mxu0 0.0
    %1264 = vmatpush1.xpose.msra.mxu0 0.0
    %1265 = vmatprep.subr.mxu0 0.0
    %1266 = vmatpush1.xpose.msra.mxu0 0.0
    %1267 = vmatprep.subr.mxu0 0.0
    %1268 = vmatpush1.xpose.msra.mxu0 0.0
    %1269 = vmatprep.subr.mxu0 0.0
    %1270 = vmatpush1.xpose.msra.mxu0 0.0
    %1271 = vmatprep.subr.mxu0 0.0
    %1272 = vmatpush1.xpose.msra.mxu0 0.0
    %1273 = vmatprep.subr.mxu0 0.0
    %1274 = vmatpush1.xpose.msra.mxu0 0.0
    %1275 = vmatprep.subr.mxu0 0.0
    %1276 = vmatpush1.xpose.msra.mxu0 0.0
    %1277 = vmatprep.subr.mxu0 0.0
    %1278 = vmatpush1.xpose.msra.mxu0 0.0
    %1279 = vmatprep.subr.mxu0 0.0
    %1280 = vmatpush1.xpose.msra.mxu0 0.0
    %1281 = vmatprep.subr.mxu0 0.0
    %1282 = vmatpush1.xpose.msra.mxu0 0.0
    %1283 = vmatprep.subr.mxu0 0.0
    %1284 = vmatpush1.xpose.msra.mxu0 0.0
    %1285 = vmatprep.subr.mxu0 0.0
    %1286 = vmatpush1.xpose.msra.mxu0 0.0
    %1287 = vmatprep.subr.mxu0 0.0
    %1288 = vmatpush1.xpose.msra.mxu0 0.0
    %1289 = vmatprep.subr.mxu0 0.0
    %1290 = vmatpush1.xpose.msra.mxu0 0.0
    %1291 = vmatprep.subr.mxu0 0.0
    %1292 = vmatpush1.xpose.msra.mxu0 0.0
    %1293 = vmatprep.subr.mxu0 0.0
    %1294 = vmatpush1.xpose.msra.mxu0 0.0
    %1295 = vmatprep.subr.mxu0 0.0
    %1296 = vmatpush1.xpose.msra.mxu0 0.0
    %1297 = vmatprep.subr.mxu0 0.0
    %1298 = vmatpush1.xpose.msra.mxu0 0.0
    %1299 = vmatprep.subr.mxu0 0.0
    %1300 = vmatpush1.xpose.msra.mxu0 0.0
    %1301 = vmatprep.subr.mxu0 0.0
    %1302 = vmatpush1.xpose.msra.mxu0 0.0
    %1303 = vmatprep.subr.mxu0 0.0
    %1304 = vmatpush1.xpose.msra.mxu0 0.0
    %1305 = vmatprep.subr.mxu0 0.0
    %1306 = vmatpush1.xpose.msra.mxu0 0.0
    %1307 = vmatprep.subr.mxu0 0.0
    %1308 = vmatpush1.xpose.msra.mxu0 0.0
    %1309 = vmatprep.subr.mxu0 0.0
    %1310 = vmatpush1.xpose.msra.mxu0 0.0
    %1311 = vmatprep.subr.mxu0 0.0
    %1312 = vmatpush1.xpose.msra.mxu0 0.0
    %1313 = vmatprep.subr.mxu0 0.0
    %1314 = vmatpush1.xpose.msra.mxu0 0.0
    %1315 = vmatprep.mubr.f32.mxu0 0.0
    %1316 = vmatmul.mubr.f32.gmra.mrb[0].mxu0 %v1247
    %v1317 = vpop.f32.mrb[0].mxu0
    %v1318 = vadd.f32 0.0, %v1317
    %v1319 = vpop.f32.mrb[0].mxu0
    %1320 = vdwg.mxu0
    %1321 = vrot.lane.b32.xlu0 %v237, 104
    %v1322 = vpop.permute.xlu0 %1321
    %1323 = vrot.lane.b32.xlu0 %v237, 72
    %v1324 = vpop.permute.xlu0 %1323
    %v1325 = vsel %vm243, %v1322, 0
    %v1327 = vsel %vm243, %v1324, 0
    %1329 = vmatprep.subr.mxu0 0.0
    %1330 = vmatpush1.xpose.msra.mxu0 %v1327
    %1331 = vmatprep.subr.mxu0 0.0
    %1332 = vmatpush1.xpose.msra.mxu0 0.0
    %1333 = vmatprep.subr.mxu0 0.0
    %1334 = vmatpush1.xpose.msra.mxu0 0.0
    %1335 = vmatprep.subr.mxu0 0.0
    %1336 = vmatpush1.xpose.msra.mxu0 0.0
    %1337 = vmatprep.subr.mxu0 0.0
    %1338 = vmatpush1.xpose.msra.mxu0 0.0
    %1339 = vmatprep.subr.mxu0 0.0
    %1340 = vmatpush1.xpose.msra.mxu0 0.0
    %1341 = vmatprep.subr.mxu0 0.0
    %1342 = vmatpush1.xpose.msra.mxu0 0.0
    %1343 = vmatprep.subr.mxu0 0.0
    %1344 = vmatpush1.xpose.msra.mxu0 0.0
    %1345 = vmatprep.subr.mxu0 0.0
    %1346 = vmatpush1.xpose.msra.mxu0 0.0
    %1347 = vmatprep.subr.mxu0 0.0
    %1348 = vmatpush1.xpose.msra.mxu0 0.0
    %1349 = vmatprep.subr.mxu0 0.0
    %1350 = vmatpush1.xpose.msra.mxu0 0.0
    %1351 = vmatprep.subr.mxu0 0.0
    %1352 = vmatpush1.xpose.msra.mxu0 0.0
    %1353 = vmatprep.subr.mxu0 0.0
    %1354 = vmatpush1.xpose.msra.mxu0 0.0
    %1355 = vmatprep.subr.mxu0 0.0
    %1356 = vmatpush1.xpose.msra.mxu0 0.0
    %1357 = vmatprep.subr.mxu0 0.0
    %1358 = vmatpush1.xpose.msra.mxu0 0.0
    %1359 = vmatprep.subr.mxu0 0.0
    %1360 = vmatpush1.xpose.msra.mxu0 0.0
    %1361 = vmatprep.subr.mxu0 0.0
    %1362 = vmatpush1.xpose.msra.mxu0 0.0
    %1363 = vmatprep.subr.mxu0 0.0
    %1364 = vmatpush1.xpose.msra.mxu0 0.0
    %1365 = vmatprep.subr.mxu0 0.0
    %1366 = vmatpush1.xpose.msra.mxu0 0.0
    %1367 = vmatprep.subr.mxu0 0.0
    %1368 = vmatpush1.xpose.msra.mxu0 0.0
    %1369 = vmatprep.subr.mxu0 0.0
    %1370 = vmatpush1.xpose.msra.mxu0 0.0
    %1371 = vmatprep.subr.mxu0 0.0
    %1372 = vmatpush1.xpose.msra.mxu0 0.0
    %1373 = vmatprep.subr.mxu0 0.0
    %1374 = vmatpush1.xpose.msra.mxu0 0.0
    %1375 = vmatprep.subr.mxu0 0.0
    %1376 = vmatpush1.xpose.msra.mxu0 0.0
    %1377 = vmatprep.subr.mxu0 0.0
    %1378 = vmatpush1.xpose.msra.mxu0 0.0
    %1379 = vmatprep.subr.mxu0 0.0
    %1380 = vmatpush1.xpose.msra.mxu0 0.0
    %1381 = vmatprep.subr.mxu0 0.0
    %1382 = vmatpush1.xpose.msra.mxu0 0.0
    %1383 = vmatprep.subr.mxu0 0.0
    %1384 = vmatpush1.xpose.msra.mxu0 0.0
    %1385 = vmatprep.subr.mxu0 0.0
    %1386 = vmatpush1.xpose.msra.mxu0 0.0
    %1387 = vmatprep.subr.mxu0 0.0
    %1388 = vmatpush1.xpose.msra.mxu0 0.0
    %1389 = vmatprep.subr.mxu0 0.0
    %1390 = vmatpush1.xpose.msra.mxu0 0.0
    %1391 = vmatprep.subr.mxu0 0.0
    %1392 = vmatpush1.xpose.msra.mxu0 0.0
    %1393 = vmatprep.mubr.f32.mxu0 0.0
    %1394 = vmatmul.mubr.f32.gmra.mrb[0].mxu0 %v1325
    %v1395 = vpop.f32.mrb[0].mxu0
    %v1396 = vadd.f32 0.0, %v1395
    %v1397 = vpop.f32.mrb[0].mxu0
    %1398 = vdwg.mxu0
    %v1399 = vmul.f32 %v1318, 0.35355338
    %v1400 = vmul.f32 %v1396, 0.35355338
    %v1401 = vsel %vm398, %v1399, -1e+30
    %v1402 = vsel %vm398, %v1400, -1e+30
    %v1403 = vsel %vm243, %v1401, -inf
    %1404 = vmax.xlane.f32.xlu0 %v1403
    %v1405 = vpop.xlane.xlu0 %1404
    %v1406 = vsel %vm243, %v1402, -inf
    %1407 = vmax.xlane.f32.xlu0 %v1406
    %v1408 = vpop.xlane.xlu0 %1407
    %v1409 = vsub.f32 %v1401, %v1405
    %v1410 = vsub.f32 %v1402, %v1408
    %v1411 = vmul.f32 %v1409, 1.442695
    %v1412 = vpow.pop %v1411
    %v1413 = vmul.f32 %v1410, 1.442695
    %v1414 = vpow.pop %v1413
    %v1415 = vsel %vm243, %v1412, 0.0
    %1416 = vadd.xlane.f32.xlu0 %v1415
    %v1417 = vpop.xlane.xlu0 %1416
    %v1418 = vsel %vm243, %v1414, 0.0
    %1419 = vadd.xlane.f32.xlu0 %v1418
    %v1420 = vpop.xlane.xlu0 %1419
    %v1421 = vrcp.pop %v1417
    %v1422 = vrcp.pop %v1420
    %v1423 = vmul.f32 %v1412, %v1421
    %v1424 = vmul.f32 %v1414, %v1422
    %1425 = vrot.lane.b32.xlu0 %v234, 40
    %v1426 = vpop.permute.xlu0 %1425
    %v1429 = vsel %vm243, %v1423, 0
    %1431 = vmatprep.subr.mxu0 0.0
    %1432 = vmatpush1.msra.mxu0 %v1426
    %1433 = vmatprep.subr.mxu0 0.0
    %1434 = vmatpush1.msra.mxu0 0.0
    %1435 = vmatprep.subr.mxu0 0.0
    %1436 = vmatpush1.msra.mxu0 0.0
    %1437 = vmatprep.subr.mxu0 0.0
    %1438 = vmatpush1.msra.mxu0 0.0
    %1439 = vmatprep.subr.mxu0 0.0
    %1440 = vmatpush1.msra.mxu0 0.0
    %1441 = vmatprep.subr.mxu0 0.0
    %1442 = vmatpush1.msra.mxu0 0.0
    %1443 = vmatprep.subr.mxu0 0.0
    %1444 = vmatpush1.msra.mxu0 0.0
    %1445 = vmatprep.subr.mxu0 0.0
    %1446 = vmatpush1.msra.mxu0 0.0
    %1447 = vmatprep.subr.mxu0 0.0
    %1448 = vmatpush1.msra.mxu0 0.0
    %1449 = vmatprep.subr.mxu0 0.0
    %1450 = vmatpush1.msra.mxu0 0.0
    %1451 = vmatprep.subr.mxu0 0.0
    %1452 = vmatpush1.msra.mxu0 0.0
    %1453 = vmatprep.subr.mxu0 0.0
    %1454 = vmatpush1.msra.mxu0 0.0
    %1455 = vmatprep.subr.mxu0 0.0
    %1456 = vmatpush1.msra.mxu0 0.0
    %1457 = vmatprep.subr.mxu0 0.0
    %1458 = vmatpush1.msra.mxu0 0.0
    %1459 = vmatprep.subr.mxu0 0.0
    %1460 = vmatpush1.msra.mxu0 0.0
    %1461 = vmatprep.subr.mxu0 0.0
    %1462 = vmatpush1.msra.mxu0 0.0
    %1463 = vmatprep.subr.mxu0 0.0
    %1464 = vmatpush1.msra.mxu0 0.0
    %1465 = vmatprep.subr.mxu0 0.0
    %1466 = vmatpush1.msra.mxu0 0.0
    %1467 = vmatprep.subr.mxu0 0.0
    %1468 = vmatpush1.msra.mxu0 0.0
    %1469 = vmatprep.subr.mxu0 0.0
    %1470 = vmatpush1.msra.mxu0 0.0
    %1471 = vmatprep.subr.mxu0 0.0
    %1472 = vmatpush1.msra.mxu0 0.0
    %1473 = vmatprep.subr.mxu0 0.0
    %1474 = vmatpush1.msra.mxu0 0.0
    %1475 = vmatprep.subr.mxu0 0.0
    %1476 = vmatpush1.msra.mxu0 0.0
    %1477 = vmatprep.subr.mxu0 0.0
    %1478 = vmatpush1.msra.mxu0 0.0
    %1479 = vmatprep.subr.mxu0 0.0
    %1480 = vmatpush1.msra.mxu0 0.0
    %1481 = vmatprep.subr.mxu0 0.0
    %1482 = vmatpush1.msra.mxu0 0.0
    %1483 = vmatprep.subr.mxu0 0.0
    %1484 = vmatpush1.msra.mxu0 0.0
    %1485 = vmatprep.subr.mxu0 0.0
    %1486 = vmatpush1.msra.mxu0 0.0
    %1487 = vmatprep.subr.mxu0 0.0
    %1488 = vmatpush1.msra.mxu0 0.0
    %1489 = vmatprep.subr.mxu0 0.0
    %1490 = vmatpush1.msra.mxu0 0.0
    %1491 = vmatprep.subr.mxu0 0.0
    %1492 = vmatpush1.msra.mxu0 0.0
    %1493 = vmatprep.subr.mxu0 0.0
    %1494 = vmatpush1.msra.mxu0 0.0
    %1495 = vmatprep.mubr.f32.mxu0 0.0
    %1496 = vmatmul.mubr.f32.gmra.mrb[0].mxu0 %v1429
    %v1497 = vpop.f32.mrb[0].mxu0
    %v1498 = vadd.f32 0.0, %v1497
    %v1499 = vpop.f32.mrb[0].mxu0
    %1500 = vdwg.mxu0
    %1501 = vrot.lane.b32.xlu0 %v237, 40
    %v1502 = vpop.permute.xlu0 %1501
    %v1505 = vsel %vm243, %v1424, 0
    %1507 = vmatprep.subr.mxu0 0.0
    %1508 = vmatpush1.msra.mxu0 %v1502
    %1509 = vmatprep.subr.mxu0 0.0
    %1510 = vmatpush1.msra.mxu0 0.0
    %1511 = vmatprep.subr.mxu0 0.0
    %1512 = vmatpush1.msra.mxu0 0.0
    %1513 = vmatprep.subr.mxu0 0.0
    %1514 = vmatpush1.msra.mxu0 0.0
    %1515 = vmatprep.subr.mxu0 0.0
    %1516 = vmatpush1.msra.mxu0 0.0
    %1517 = vmatprep.subr.mxu0 0.0
    %1518 = vmatpush1.msra.mxu0 0.0
    %1519 = vmatprep.subr.mxu0 0.0
    %1520 = vmatpush1.msra.mxu0 0.0
    %1521 = vmatprep.subr.mxu0 0.0
    %1522 = vmatpush1.msra.mxu0 0.0
    %1523 = vmatprep.subr.mxu0 0.0
    %1524 = vmatpush1.msra.mxu0 0.0
    %1525 = vmatprep.subr.mxu0 0.0
    %1526 = vmatpush1.msra.mxu0 0.0
    %1527 = vmatprep.subr.mxu0 0.0
    %1528 = vmatpush1.msra.mxu0 0.0
    %1529 = vmatprep.subr.mxu0 0.0
    %1530 = vmatpush1.msra.mxu0 0.0
    %1531 = vmatprep.subr.mxu0 0.0
    %1532 = vmatpush1.msra.mxu0 0.0
    %1533 = vmatprep.subr.mxu0 0.0
    %1534 = vmatpush1.msra.mxu0 0.0
    %1535 = vmatprep.subr.mxu0 0.0
    %1536 = vmatpush1.msra.mxu0 0.0
    %1537 = vmatprep.subr.mxu0 0.0
    %1538 = vmatpush1.msra.mxu0 0.0
    %1539 = vmatprep.subr.mxu0 0.0
    %1540 = vmatpush1.msra.mxu0 0.0
    %1541 = vmatprep.subr.mxu0 0.0
    %1542 = vmatpush1.msra.mxu0 0.0
    %1543 = vmatprep.subr.mxu0 0.0
    %1544 = vmatpush1.msra.mxu0 0.0
    %1545 = vmatprep.subr.mxu0 0.0
    %1546 = vmatpush1.msra.mxu0 0.0
    %1547 = vmatprep.subr.mxu0 0.0
    %1548 = vmatpush1.msra.mxu0 0.0
    %1549 = vmatprep.subr.mxu0 0.0
    %1550 = vmatpush1.msra.mxu0 0.0
    %1551 = vmatprep.subr.mxu0 0.0
    %1552 = vmatpush1.msra.mxu0 0.0
    %1553 = vmatprep.subr.mxu0 0.0
    %1554 = vmatpush1.msra.mxu0 0.0
    %1555 = vmatprep.subr.mxu0 0.0
    %1556 = vmatpush1.msra.mxu0 0.0
    %1557 = vmatprep.subr.mxu0 0.0
    %1558 = vmatpush1.msra.mxu0 0.0
    %1559 = vmatprep.subr.mxu0 0.0
    %1560 = vmatpush1.msra.mxu0 0.0
    %1561 = vmatprep.subr.mxu0 0.0
    %1562 = vmatpush1.msra.mxu0 0.0
    %1563 = vmatprep.subr.mxu0 0.0
    %1564 = vmatpush1.msra.mxu0 0.0
    %1565 = vmatprep.subr.mxu0 0.0
    %1566 = vmatpush1.msra.mxu0 0.0
    %1567 = vmatprep.subr.mxu0 0.0
    %1568 = vmatpush1.msra.mxu0 0.0
    %1569 = vmatprep.subr.mxu0 0.0
    %1570 = vmatpush1.msra.mxu0 0.0
    %1571 = vmatprep.mubr.f32.mxu0 0.0
    %1572 = vmatmul.mubr.f32.gmra.mrb[0].mxu0 %v1505
    %v1573 = vpop.f32.mrb[0].mxu0
    %v1574 = vadd.f32 0.0, %v1573
    %v1575 = vpop.f32.mrb[0].mxu0
    %1576 = vdwg.mxu0
    %1579 = vrot.lane.b32.xlu0 %v830, 8
    %v1580 = vpop.permute.xlu0 %1579
    %1581 = vrot.lane.b32.xlu0 %v906, 8
    %v1582 = vpop.permute.xlu0 %1581
    %1587 = vrot.lane.b32.xlu0 %v1164, 16
    %v1588 = vpop.permute.xlu0 %1587
    %1589 = vrot.lane.b32.xlu0 %v1240, 16
    %v1590 = vpop.permute.xlu0 %1589
    %1595 = vrot.lane.b32.xlu0 %v1498, 24
    %v1596 = vpop.permute.xlu0 %1595
    %1597 = vrot.lane.b32.xlu0 %v1574, 24
    %v1598 = vpop.permute.xlu0 %1597
    %v1601 = vsel %vm243, %v496, %v1580
    %v1602 = vsel %vm243, %v572, %v1582
    %v1603 = vsel %vm83, %v1601, %v1588
    %v1604 = vsel %vm83, %v1602, %v1590
    %vm1605 = vcmask 195584
    %v1606 = vsel %vm1605, %v1603, %v1596
    %v1607 = vsel %vm1605, %v1604, %v1598
    %v1608 = vld [vmem:[%s12] sm:$0xff]
    %v1609 = vld [vmem:[%s12 + $0x8] sm:$0xff]
    %v1610 = vld [vmem:[%s12 + $0x10] sm:$0xff]
    %v1611 = vld [vmem:[%s12 + $0x18] sm:$0xff]
    %v1612 = vld [vmem:[%s13] sm:$0x1]
    %v1613 = vpack.c.bf16 %v1607, %v1606
    %v1614 = vpack.c.bf16 %v1609, %v1608
    %v1615 = vpack.c.bf16 %v1611, %v1610
    %v1617 = vlaneseq
    %v1618 = vshrl.u32 %v1617, 7
    %v1619 = vsub.s32 0, %v1618
    %v1620 = vrot.slane %v1612, %v1619
    %v1623 = vsel %vm138, %v1613, 0
    %1625 = vmatprep.subr.bf16.mxu0 0
    %1626 = vmatpush1.bf16.msra.mxu0 %v1614
    %1627 = vmatprep.subr.bf16.mxu0 0
    %1628 = vmatpush1.bf16.msra.mxu0 %v1615
    %1629 = vmatprep.subr.bf16.mxu0 0
    %1630 = vmatpush1.bf16.msra.mxu0 0
    %1631 = vmatprep.subr.bf16.mxu0 0
    %1632 = vmatpush1.bf16.msra.mxu0 0
    %1633 = vmatprep.subr.bf16.mxu0 0
    %1634 = vmatpush1.bf16.msra.mxu0 0
    %1635 = vmatprep.subr.bf16.mxu0 0
    %1636 = vmatpush1.bf16.msra.mxu0 0
    %1637 = vmatprep.subr.bf16.mxu0 0
    %1638 = vmatpush1.bf16.msra.mxu0 0
    %1639 = vmatprep.subr.bf16.mxu0 0
    %1640 = vmatpush1.bf16.msra.mxu0 0
    %1641 = vmatprep.subr.bf16.mxu0 0
    %1642 = vmatpush1.bf16.msra.mxu0 0
    %1643 = vmatprep.subr.bf16.mxu0 0
    %1644 = vmatpush1.bf16.msra.mxu0 0
    %1645 = vmatprep.subr.bf16.mxu0 0
    %1646 = vmatpush1.bf16.msra.mxu0 0
    %1647 = vmatprep.subr.bf16.mxu0 0
    %1648 = vmatpush1.bf16.msra.mxu0 0
    %1649 = vmatprep.subr.bf16.mxu0 0
    %1650 = vmatpush1.bf16.msra.mxu0 0
    %1651 = vmatprep.subr.bf16.mxu0 0
    %1652 = vmatpush1.bf16.msra.mxu0 0
    %1653 = vmatprep.subr.bf16.mxu0 0
    %1654 = vmatpush1.bf16.msra.mxu0 0
    %1655 = vmatprep.subr.bf16.mxu0 0
    %1656 = vmatpush1.bf16.msra.mxu0 0
    %1657 = vmatprep.mubr.bf16.mxu0 0
    %1658 = vmatmul.mubr.bf16.gmra.mrb[0].mxu0 %v1623
    %v1659 = vpop.f32.mrb[0].mxu0
    %v1660 = vadd.f32 %v1620, %v1659
    %v1661 = vpop.f32.mrb[0].mxu0
    %v1662 = vpop.f32.mrb[0].mxu0
    %v1663 = vadd.f32 %v1620, %v1662
    %v1664 = vpop.f32.mrb[0].mxu0
    %1665 = vdwg.mxu0
    %v1666 = vadd.f32 %v129, %v1660
    %v1667 = vadd.f32 %v130, %v1663
    %v1668 = vld [vmem:[%s14] sm:$0x1]
    %v1669 = vld [vmem:[%s15] sm:$0x1]
    %v1670 = vsel %vm138, %v1666, 0.0
    %1671 = vadd.xlane.f32.xlu0 %v1670
    %v1672 = vpop.xlane.xlu0 %1671
    %v1673 = vsel %vm138, %v1667, 0.0
    %1674 = vadd.xlane.f32.xlu0 %v1673
    %v1675 = vpop.xlane.xlu0 %1674
    %v1676 = vmul.f32 %v1672, %v145
    %v1677 = vmul.f32 %v1675, %v145
    %v1678 = vsub.f32 %v1666, %v1676
    %v1679 = vsub.f32 %v1667, %v1677
    %v1680 = vmul.f32 %v1678, %v1678
    %v1681 = vmul.f32 %v1679, %v1679
    %v1682 = vsel %vm138, %v1680, 0.0
    %1683 = vadd.xlane.f32.xlu0 %v1682
    %v1684 = vpop.xlane.xlu0 %1683
    %v1685 = vsel %vm138, %v1681, 0.0
    %1686 = vadd.xlane.f32.xlu0 %v1685
    %v1687 = vpop.xlane.xlu0 %1686
    %v1688 = vmul.f32 %v1684, %v145
    %v1689 = vmul.f32 %v1687, %v145
    %v1690 = vadd.f32 %v1688, 1e-05
    %v1691 = vadd.f32 %v1689, 1e-05
    %v1692 = vrsqrt.pop %v1690
    %v1693 = vrsqrt.pop %v1691
    %v1694 = vmul.f32 %v1678, %v1692
    %v1695 = vmul.f32 %v1679, %v1693
    %v1697 = vlaneseq
    %v1698 = vshrl.u32 %v1697, 7
    %v1699 = vsub.s32 0, %v1698
    %v1700 = vrot.slane %v1668, %v1699
    %v1702 = vmul.f32 %v1694, %v1700
    %v1703 = vmul.f32 %v1695, %v1700
    %v1705 = vlaneseq
    %v1706 = vshrl.u32 %v1705, 7
    %v1707 = vsub.s32 0, %v1706
    %v1708 = vrot.slane %v1669, %v1707
    %v1710 = vadd.f32 %v1702, %v1708
    %v1711 = vadd.f32 %v1703, %v1708
    %v1712 = vld [vmem:[%s16] sm:$0xff]
    %v1713 = vld [vmem:[%s16 + $0x8] sm:$0xff]
    %v1714 = vld [vmem:[%s16 + $0x10] sm:$0xff]
    %v1715 = vld [vmem:[%s16 + $0x18] sm:$0xff]
    %v1716 = vld [vmem:[%s17] sm:$0x1]
    %v1717 = vpack.c.bf16 %v1711, %v1710
    %v1718 = vpack.c.bf16 %v1713, %v1712
    %v1719 = vpack.c.bf16 %v1715, %v1714
    %v1721 = vlaneseq
    %v1722 = vshrl.u32 %v1721, 7
    %v1723 = vsub.s32 0, %v1722
    %v1724 = vrot.slane %v1716, %v1723
    %v1727 = vsel %vm138, %v1717, 0
    %1729 = vmatprep.subr.bf16.mxu0 0
    %1730 = vmatpush1.bf16.msra.mxu0 %v1718
    %1731 = vmatprep.subr.bf16.mxu0 0
    %1732 = vmatpush1.bf16.msra.mxu0 %v1719
    %1733 = vmatprep.subr.bf16.mxu0 0
    %1734 = vmatpush1.bf16.msra.mxu0 0
    %1735 = vmatprep.subr.bf16.mxu0 0
    %1736 = vmatpush1.bf16.msra.mxu0 0
    %1737 = vmatprep.subr.bf16.mxu0 0
    %1738 = vmatpush1.bf16.msra.mxu0 0
    %1739 = vmatprep.subr.bf16.mxu0 0
    %1740 = vmatpush1.bf16.msra.mxu0 0
    %1741 = vmatprep.subr.bf16.mxu0 0
    %1742 = vmatpush1.bf16.msra.mxu0 0
    %1743 = vmatprep.subr.bf16.mxu0 0
    %1744 = vmatpush1.bf16.msra.mxu0 0
    %1745 = vmatprep.subr.bf16.mxu0 0
    %1746 = vmatpush1.bf16.msra.mxu0 0
    %1747 = vmatprep.subr.bf16.mxu0 0
    %1748 = vmatpush1.bf16.msra.mxu0 0
    %1749 = vmatprep.subr.bf16.mxu0 0
    %1750 = vmatpush1.bf16.msra.mxu0 0
    %1751 = vmatprep.subr.bf16.mxu0 0
    %1752 = vmatpush1.bf16.msra.mxu0 0
    %1753 = vmatprep.subr.bf16.mxu0 0
    %1754 = vmatpush1.bf16.msra.mxu0 0
    %1755 = vmatprep.subr.bf16.mxu0 0
    %1756 = vmatpush1.bf16.msra.mxu0 0
    %1757 = vmatprep.subr.bf16.mxu0 0
    %1758 = vmatpush1.bf16.msra.mxu0 0
    %1759 = vmatprep.subr.bf16.mxu0 0
    %1760 = vmatpush1.bf16.msra.mxu0 0
    %1761 = vmatprep.mubr.bf16.mxu0 0
    %1762 = vmatmul.mubr.bf16.gmra.mrb[0].mxu0 %v1727
    %v1763 = vpop.f32.mrb[0].mxu0
    %v1764 = vadd.f32 %v1724, %v1763
    %v1765 = vpop.f32.mrb[0].mxu0
    %v1766 = vpop.f32.mrb[0].mxu0
    %v1767 = vadd.f32 %v1724, %v1766
    %v1768 = vpop.f32.mrb[0].mxu0
    %1769 = vdwg.mxu0
    %v1770 = vmul.f32 %v1764, 0.5
    %v1771 = vmul.f32 %v1767, 0.5
    %v1772 = vmul.f32 %v1764, 0.044715
    %v1773 = vmul.f32 %v1767, 0.044715
    %v1774 = vmul.f32 %v1772, %v1764
    %v1775 = vmul.f32 %v1773, %v1767
    %v1776 = vmul.f32 %v1774, %v1764
    %v1777 = vmul.f32 %v1775, %v1767
    %v1778 = vadd.f32 %v1764, %v1776
    %v1779 = vadd.f32 %v1767, %v1777
    %v1780 = vmul.f32 %v1778, 0.7978846
    %v1781 = vmul.f32 %v1779, 0.7978846
    %v1782 = vtanh.pop %v1780
    %v1783 = vtanh.pop %v1781
    %v1784 = vadd.f32 %v1782, 1.0
    %v1785 = vadd.f32 %v1783, 1.0
    %v1786 = vmul.f32 %v1770, %v1784
    %v1787 = vmul.f32 %v1771, %v1785
    %v1788 = vld [vmem:[%s18] sm:$0xff]
    %v1789 = vld [vmem:[%s18 + $0x8] sm:$0xff]
    %v1790 = vld [vmem:[%s18 + $0x10] sm:$0xff]
    %v1791 = vld [vmem:[%s18 + $0x18] sm:$0xff]
    %v1792 = vld [vmem:[%s18 + $0x20] sm:$0xff]
    %v1793 = vld [vmem:[%s18 + $0x28] sm:$0xff]
    %v1794 = vld [vmem:[%s18 + $0x30] sm:$0xff]
    %v1795 = vld [vmem:[%s18 + $0x38] sm:$0xff]
    %v1796 = vld [vmem:[%s18 + $0x40] sm:$0xff]
    %v1797 = vld [vmem:[%s18 + $0x48] sm:$0xff]
    %v1798 = vld [vmem:[%s18 + $0x50] sm:$0xff]
    %v1799 = vld [vmem:[%s18 + $0x58] sm:$0xff]
    %v1800 = vld [vmem:[%s18 + $0x60] sm:$0xff]
    %v1801 = vld [vmem:[%s18 + $0x68] sm:$0xff]
    %v1802 = vld [vmem:[%s18 + $0x70] sm:$0xff]
    %v1803 = vld [vmem:[%s18 + $0x78] sm:$0xff]
    %v1804 = vld [vmem:[%s19] sm:$0x1]
    %v1805 = vpack.c.bf16 %v1787, %v1786
    %v1806 = vpack.c.bf16 %v1789, %v1788
    %v1807 = vpack.c.bf16 %v1791, %v1790
    %v1808 = vpack.c.bf16 %v1793, %v1792
    %v1809 = vpack.c.bf16 %v1795, %v1794
    %v1810 = vpack.c.bf16 %v1797, %v1796
    %v1811 = vpack.c.bf16 %v1799, %v1798
    %v1812 = vpack.c.bf16 %v1801, %v1800
    %v1813 = vpack.c.bf16 %v1803, %v1802
    %v1815 = vlaneseq
    %v1816 = vshrl.u32 %v1815, 7
    %v1817 = vsub.s32 0, %v1816
    %v1818 = vrot.slane %v1804, %v1817
    %1820 = vmatprep.subr.bf16.mxu0 0
    %1821 = vmatpush1.bf16.msra.mxu0 %v1806
    %1822 = vmatprep.subr.bf16.mxu0 0
    %1823 = vmatpush1.bf16.msra.mxu0 %v1807
    %1824 = vmatprep.subr.bf16.mxu0 0
    %1825 = vmatpush1.bf16.msra.mxu0 %v1808
    %1826 = vmatprep.subr.bf16.mxu0 0
    %1827 = vmatpush1.bf16.msra.mxu0 %v1809
    %1828 = vmatprep.subr.bf16.mxu0 0
    %1829 = vmatpush1.bf16.msra.mxu0 %v1810
    %1830 = vmatprep.subr.bf16.mxu0 0
    %1831 = vmatpush1.bf16.msra.mxu0 %v1811
    %1832 = vmatprep.subr.bf16.mxu0 0
    %1833 = vmatpush1.bf16.msra.mxu0 %v1812
    %1834 = vmatprep.subr.bf16.mxu0 0
    %1835 = vmatpush1.bf16.msra.mxu0 %v1813
    %1836 = vmatprep.subr.bf16.mxu0 0
    %1837 = vmatpush1.bf16.msra.mxu0 0
    %1838 = vmatprep.subr.bf16.mxu0 0
    %1839 = vmatpush1.bf16.msra.mxu0 0
    %1840 = vmatprep.subr.bf16.mxu0 0
    %1841 = vmatpush1.bf16.msra.mxu0 0
    %1842 = vmatprep.subr.bf16.mxu0 0
    %1843 = vmatpush1.bf16.msra.mxu0 0
    %1844 = vmatprep.subr.bf16.mxu0 0
    %1845 = vmatpush1.bf16.msra.mxu0 0
    %1846 = vmatprep.subr.bf16.mxu0 0
    %1847 = vmatpush1.bf16.msra.mxu0 0
    %1848 = vmatprep.subr.bf16.mxu0 0
    %1849 = vmatpush1.bf16.msra.mxu0 0
    %1850 = vmatprep.subr.bf16.mxu0 0
    %1851 = vmatpush1.bf16.msra.mxu0 0
    %1852 = vmatprep.mubr.bf16.mxu0 0
    %1853 = vmatmul.mubr.bf16.gmra.mrb[0].mxu0 %v1805
    %v1854 = vpop.f32.mrb[0].mxu0
    %v1855 = vadd.f32 %v1818, %v1854
    %v1856 = vpop.f32.mrb[0].mxu0
    %v1857 = vpop.f32.mrb[0].mxu0
    %v1858 = vadd.f32 %v1818, %v1857
    %v1859 = vpop.f32.mrb[0].mxu0
    %1860 = vdwg.mxu0
    %v1861 = vadd.f32 %v1666, %v1855
    %v1862 = vadd.f32 %v1667, %v1858
    %s1863 = scalar_lea.vmem %s8, 1
    %v1864 = vld [vmem:[%s1863] sm:$0x1]
    %s1865 = scalar_lea.vmem %s9, 1
    %v1866 = vld [vmem:[%s1865] sm:$0x1]
    %v1867 = vsel %vm138, %v1861, 0.0
    %1868 = vadd.xlane.f32.xlu0 %v1867
    %v1869 = vpop.xlane.xlu0 %1868
    %v1870 = vsel %vm138, %v1862, 0.0
    %1871 = vadd.xlane.f32.xlu0 %v1870
    %v1872 = vpop.xlane.xlu0 %1871
    %v1873 = vmul.f32 %v1869, %v145
    %v1874 = vmul.f32 %v1872, %v145
    %v1875 = vsub.f32 %v1861, %v1873
    %v1876 = vsub.f32 %v1862, %v1874
    %v1877 = vmul.f32 %v1875, %v1875
    %v1878 = vmul.f32 %v1876, %v1876
    %v1879 = vsel %vm138, %v1877, 0.0
    %1880 = vadd.xlane.f32.xlu0 %v1879
    %v1881 = vpop.xlane.xlu0 %1880
    %v1882 = vsel %vm138, %v1878, 0.0
    %1883 = vadd.xlane.f32.xlu0 %v1882
    %v1884 = vpop.xlane.xlu0 %1883
    %v1885 = vmul.f32 %v1881, %v145
    %v1886 = vmul.f32 %v1884, %v145
    %v1887 = vadd.f32 %v1885, 1e-05
    %v1888 = vadd.f32 %v1886, 1e-05
    %v1889 = vrsqrt.pop %v1887
    %v1890 = vrsqrt.pop %v1888
    %v1891 = vmul.f32 %v1875, %v1889
    %v1892 = vmul.f32 %v1876, %v1890
    %v1894 = vlaneseq
    %v1895 = vshrl.u32 %v1894, 7
    %v1896 = vsub.s32 0, %v1895
    %v1897 = vrot.slane %v1864, %v1896
    %v1899 = vmul.f32 %v1891, %v1897
    %v1900 = vmul.f32 %v1892, %v1897
    %v1902 = vlaneseq
    %v1903 = vshrl.u32 %v1902, 7
    %v1904 = vsub.s32 0, %v1903
    %v1905 = vrot.slane %v1866, %v1904
    %v1907 = vadd.f32 %v1899, %v1905
    %v1908 = vadd.f32 %v1900, %v1905
    %s1909 = scalar_lea.vmem %s10, 32
    %v1910 = vld [vmem:[%s1909] sm:$0xff]
    %v1911 = vld [vmem:[%s1909 + $0x8] sm:$0xff]
    %v1912 = vld [vmem:[%s1909 + $0x10] sm:$0xff]
    %v1913 = vld [vmem:[%s1909 + $0x18] sm:$0xff]
    %s1914 = scalar_lea.vmem %s11, 1
    %v1915 = vld [vmem:[%s1914] sm:$0x1]
    %v1916 = vpack.c.bf16 %v1908, %v1907
    %v1917 = vpack.c.bf16 %v1911, %v1910
    %v1918 = vpack.c.bf16 %v1913, %v1912
    %v1920 = vlaneseq
    %v1921 = vshrl.u32 %v1920, 7
    %v1922 = vsub.s32 0, %v1921
    %v1923 = vrot.slane %v1915, %v1922
    %v1926 = vsel %vm138, %v1916, 0
    %1928 = vmatprep.subr.bf16.mxu0 0
    %1929 = vmatpush1.bf16.msra.mxu0 %v1917
    %1930 = vmatprep.subr.bf16.mxu0 0
    %1931 = vmatpush1.bf16.msra.mxu0 %v1918
    %1932 = vmatprep.subr.bf16.mxu0 0
    %1933 = vmatpush1.bf16.msra.mxu0 0
    %1934 = vmatprep.subr.bf16.mxu0 0
    %1935 = vmatpush1.bf16.msra.mxu0 0
    %1936 = vmatprep.subr.bf16.mxu0 0
    %1937 = vmatpush1.bf16.msra.mxu0 0
    %1938 = vmatprep.subr.bf16.mxu0 0
    %1939 = vmatpush1.bf16.msra.mxu0 0
    %1940 = vmatprep.subr.bf16.mxu0 0
    %1941 = vmatpush1.bf16.msra.mxu0 0
    %1942 = vmatprep.subr.bf16.mxu0 0
    %1943 = vmatpush1.bf16.msra.mxu0 0
    %1944 = vmatprep.subr.bf16.mxu0 0
    %1945 = vmatpush1.bf16.msra.mxu0 0
    %1946 = vmatprep.subr.bf16.mxu0 0
    %1947 = vmatpush1.bf16.msra.mxu0 0
    %1948 = vmatprep.subr.bf16.mxu0 0
    %1949 = vmatpush1.bf16.msra.mxu0 0
    %1950 = vmatprep.subr.bf16.mxu0 0
    %1951 = vmatpush1.bf16.msra.mxu0 0
    %1952 = vmatprep.subr.bf16.mxu0 0
    %1953 = vmatpush1.bf16.msra.mxu0 0
    %1954 = vmatprep.subr.bf16.mxu0 0
    %1955 = vmatpush1.bf16.msra.mxu0 0
    %1956 = vmatprep.subr.bf16.mxu0 0
    %1957 = vmatpush1.bf16.msra.mxu0 0
    %1958 = vmatprep.subr.bf16.mxu0 0
    %1959 = vmatpush1.bf16.msra.mxu0 0
    %1960 = vmatprep.mubr.bf16.mxu0 0
    %1961 = vmatmul.mubr.bf16.gmra.mrb[0].mxu0 %v1926
    %v1962 = vpop.f32.mrb[0].mxu0
    %v1963 = vadd.f32 %v1923, %v1962
    %v1964 = vpop.f32.mrb[0].mxu0
    %v1965 = vpop.f32.mrb[0].mxu0
    %v1966 = vadd.f32 %v1923, %v1965
    %v1967 = vpop.f32.mrb[0].mxu0
    %1968 = vdwg.mxu0
    %1970 = vrot.lane.b32.xlu0 %v1963, 96
    %v1971 = vpop.permute.xlu0 %1970
    %v1972 = vsel %vm243, %v1963, 0
    %v1974 = vsel %vm243, %v1971, 0
    %1976 = vmatprep.subr.mxu0 0.0
    %1977 = vmatpush1.xpose.msra.mxu0 %v1974
    %1978 = vmatprep.subr.mxu0 0.0
    %1979 = vmatpush1.xpose.msra.mxu0 0.0
    %1980 = vmatprep.subr.mxu0 0.0
    %1981 = vmatpush1.xpose.msra.mxu0 0.0
    %1982 = vmatprep.subr.mxu0 0.0
    %1983 = vmatpush1.xpose.msra.mxu0 0.0
    %1984 = vmatprep.subr.mxu0 0.0
    %1985 = vmatpush1.xpose.msra.mxu0 0.0
    %1986 = vmatprep.subr.mxu0 0.0
    %1987 = vmatpush1.xpose.msra.mxu0 0.0
    %1988 = vmatprep.subr.mxu0 0.0
    %1989 = vmatpush1.xpose.msra.mxu0 0.0
    %1990 = vmatprep.subr.mxu0 0.0
    %1991 = vmatpush1.xpose.msra.mxu0 0.0
    %1992 = vmatprep.subr.mxu0 0.0
    %1993 = vmatpush1.xpose.msra.mxu0 0.0
    %1994 = vmatprep.subr.mxu0 0.0
    %1995 = vmatpush1.xpose.msra.mxu0 0.0
    %1996 = vmatprep.subr.mxu0 0.0
    %1997 = vmatpush1.xpose.msra.mxu0 0.0
    %1998 = vmatprep.subr.mxu0 0.0
    %1999 = vmatpush1.xpose.msra.mxu0 0.0
    %2000 = vmatprep.subr.mxu0 0.0
    %2001 = vmatpush1.xpose.msra.mxu0 0.0
    %2002 = vmatprep.subr.mxu0 0.0
    %2003 = vmatpush1.xpose.msra.mxu0 0.0
    %2004 = vmatprep.subr.mxu0 0.0
    %2005 = vmatpush1.xpose.msra.mxu0 0.0
    %2006 = vmatprep.subr.mxu0 0.0
    %2007 = vmatpush1.xpose.msra.mxu0 0.0
    %2008 = vmatprep.subr.mxu0 0.0
    %2009 = vmatpush1.xpose.msra.mxu0 0.0
    %2010 = vmatprep.subr.mxu0 0.0
    %2011 = vmatpush1.xpose.msra.mxu0 0.0
    %2012 = vmatprep.subr.mxu0 0.0
    %2013 = vmatpush1.xpose.msra.mxu0 0.0
    %2014 = vmatprep.subr.mxu0 0.0
    %2015 = vmatpush1.xpose.msra.mxu0 0.0
    %2016 = vmatprep.subr.mxu0 0.0
    %2017 = vmatpush1.xpose.msra.mxu0 0.0
    %2018 = vmatprep.subr.mxu0 0.0
    %2019 = vmatpush1.xpose.msra.mxu0 0.0
    %2020 = vmatprep.subr.mxu0 0.0
    %2021 = vmatpush1.xpose.msra.mxu0 0.0
    %2022 = vmatprep.subr.mxu0 0.0
    %2023 = vmatpush1.xpose.msra.mxu0 0.0
    %2024 = vmatprep.subr.mxu0 0.0
    %2025 = vmatpush1.xpose.msra.mxu0 0.0
    %2026 = vmatprep.subr.mxu0 0.0
    %2027 = vmatpush1.xpose.msra.mxu0 0.0
    %2028 = vmatprep.subr.mxu0 0.0
    %2029 = vmatpush1.xpose.msra.mxu0 0.0
    %2030 = vmatprep.subr.mxu0 0.0
    %2031 = vmatpush1.xpose.msra.mxu0 0.0
    %2032 = vmatprep.subr.mxu0 0.0
    %2033 = vmatpush1.xpose.msra.mxu0 0.0
    %2034 = vmatprep.subr.mxu0 0.0
    %2035 = vmatpush1.xpose.msra.mxu0 0.0
    %2036 = vmatprep.subr.mxu0 0.0
    %2037 = vmatpush1.xpose.msra.mxu0 0.0
    %2038 = vmatprep.subr.mxu0 0.0
    %2039 = vmatpush1.xpose.msra.mxu0 0.0
    %2040 = vmatprep.mubr.f32.mxu0 0.0
    %2041 = vmatmul.mubr.f32.gmra.mrb[0].mxu0 %v1972
    %v2042 = vpop.f32.mrb[0].mxu0
    %v2043 = vadd.f32 0.0, %v2042
    %v2044 = vpop.f32.mrb[0].mxu0
    %2045 = vdwg.mxu0
    %2047 = vrot.lane.b32.xlu0 %v1966, 96
    %v2048 = vpop.permute.xlu0 %2047
    %v2049 = vsel %vm243, %v1966, 0
    %v2051 = vsel %vm243, %v2048, 0
    %2053 = vmatprep.subr.mxu0 0.0
    %2054 = vmatpush1.xpose.msra.mxu0 %v2051
    %2055 = vmatprep.subr.mxu0 0.0
    %2056 = vmatpush1.xpose.msra.mxu0 0.0
    %2057 = vmatprep.subr.mxu0 0.0
    %2058 = vmatpush1.xpose.msra.mxu0 0.0
    %2059 = vmatprep.subr.mxu0 0.0
    %2060 = vmatpush1.xpose.msra.mxu0 0.0
    %2061 = vmatprep.subr.mxu0 0.0
    %2062 = vmatpush1.xpose.msra.mxu0 0.0
    %2063 = vmatprep.subr.mxu0 0.0
    %2064 = vmatpush1.xpose.msra.mxu0 0.0
    %2065 = vmatprep.subr.mxu0 0.0
    %2066 = vmatpush1.xpose.msra.mxu0 0.0
    %2067 = vmatprep.subr.mxu0 0.0
    %2068 = vmatpush1.xpose.msra.mxu0 0.0
    %2069 = vmatprep.subr.mxu0 0.0
    %2070 = vmatpush1.xpose.msra.mxu0 0.0
    %2071 = vmatprep.subr.mxu0 0.0
    %2072 = vmatpush1.xpose.msra.mxu0 0.0
    %2073 = vmatprep.subr.mxu0 0.0
    %2074 = vmatpush1.xpose.msra.mxu0 0.0
    %2075 = vmatprep.subr.mxu0 0.0
    %2076 = vmatpush1.xpose.msra.mxu0 0.0
    %2077 = vmatprep.subr.mxu0 0.0
    %2078 = vmatpush1.xpose.msra.mxu0 0.0
    %2079 = vmatprep.subr.mxu0 0.0
    %2080 = vmatpush1.xpose.msra.mxu0 0.0
    %2081 = vmatprep.subr.mxu0 0.0
    %2082 = vmatpush1.xpose.msra.mxu0 0.0
    %2083 = vmatprep.subr.mxu0 0.0
    %2084 = vmatpush1.xpose.msra.mxu0 0.0
    %2085 = vmatprep.subr.mxu0 0.0
    %2086 = vmatpush1.xpose.msra.mxu0 0.0
    %2087 = vmatprep.subr.mxu0 0.0
    %2088 = vmatpush1.xpose.msra.mxu0 0.0
    %2089 = vmatprep.subr.mxu0 0.0
    %2090 = vmatpush1.xpose.msra.mxu0 0.0
    %2091 = vmatprep.subr.mxu0 0.0
    %2092 = vmatpush1.xpose.msra.mxu0 0.0
    %2093 = vmatprep.subr.mxu0 0.0
    %2094 = vmatpush1.xpose.msra.mxu0 0.0
    %2095 = vmatprep.subr.mxu0 0.0
    %2096 = vmatpush1.xpose.msra.mxu0 0.0
    %2097 = vmatprep.subr.mxu0 0.0
    %2098 = vmatpush1.xpose.msra.mxu0 0.0
    %2099 = vmatprep.subr.mxu0 0.0
    %2100 = vmatpush1.xpose.msra.mxu0 0.0
    %2101 = vmatprep.subr.mxu0 0.0
    %2102 = vmatpush1.xpose.msra.mxu0 0.0
    %2103 = vmatprep.subr.mxu0 0.0
    %2104 = vmatpush1.xpose.msra.mxu0 0.0
    %2105 = vmatprep.subr.mxu0 0.0
    %2106 = vmatpush1.xpose.msra.mxu0 0.0
    %2107 = vmatprep.subr.mxu0 0.0
    %2108 = vmatpush1.xpose.msra.mxu0 0.0
    %2109 = vmatprep.subr.mxu0 0.0
    %2110 = vmatpush1.xpose.msra.mxu0 0.0
    %2111 = vmatprep.subr.mxu0 0.0
    %2112 = vmatpush1.xpose.msra.mxu0 0.0
    %2113 = vmatprep.subr.mxu0 0.0
    %2114 = vmatpush1.xpose.msra.mxu0 0.0
    %2115 = vmatprep.subr.mxu0 0.0
    %2116 = vmatpush1.xpose.msra.mxu0 0.0
    %2117 = vmatprep.mubr.f32.mxu0 0.0
    %2118 = vmatmul.mubr.f32.gmra.mrb[0].mxu0 %v2049
    %v2119 = vpop.f32.mrb[0].mxu0
    %v2120 = vadd.f32 0.0, %v2119
    %v2121 = vpop.f32.mrb[0].mxu0
    %2122 = vdwg.mxu0
    %v2123 = vmul.f32 %v2043, 0.35355338
    %v2124 = vmul.f32 %v2120, 0.35355338
    %v2125 = vsel %vm398, %v2123, -1e+30
    %v2126 = vsel %vm398, %v2124, -1e+30
    %v2127 = vsel %vm243, %v2125, -inf
    %2128 = vmax.xlane.f32.xlu0 %v2127
    %v2129 = vpop.xlane.xlu0 %2128
    %v2130 = vsel %vm243, %v2126, -inf
    %2131 = vmax.xlane.f32.xlu0 %v2130
    %v2132 = vpop.xlane.xlu0 %2131
    %v2133 = vsub.f32 %v2125, %v2129
    %v2134 = vsub.f32 %v2126, %v2132
    %v2135 = vmul.f32 %v2133, 1.442695
    %v2136 = vpow.pop %v2135
    %v2137 = vmul.f32 %v2134, 1.442695
    %v2138 = vpow.pop %v2137
    %v2139 = vsel %vm243, %v2136, 0.0
    %2140 = vadd.xlane.f32.xlu0 %v2139
    %v2141 = vpop.xlane.xlu0 %2140
    %v2142 = vsel %vm243, %v2138, 0.0
    %2143 = vadd.xlane.f32.xlu0 %v2142
    %v2144 = vpop.xlane.xlu0 %2143
    %v2145 = vrcp.pop %v2141
    %v2146 = vrcp.pop %v2144
    %v2147 = vmul.f32 %v2136, %v2145
    %v2148 = vmul.f32 %v2138, %v2146
    %2149 = vrot.lane.b32.xlu0 %v1963, 64
    %v2150 = vpop.permute.xlu0 %2149
    %v2153 = vsel %vm243, %v2147, 0
    %2155 = vmatprep.subr.mxu0 0.0
    %2156 = vmatpush1.msra.mxu0 %v2150
    %2157 = vmatprep.subr.mxu0 0.0
    %2158 = vmatpush1.msra.mxu0 0.0
    %2159 = vmatprep.subr.mxu0 0.0
    %2160 = vmatpush1.msra.mxu0 0.0
    %2161 = vmatprep.subr.mxu0 0.0
    %2162 = vmatpush1.msra.mxu0 0.0
    %2163 = vmatprep.subr.mxu0 0.0
    %2164 = vmatpush1.msra.mxu0 0.0
    %2165 = vmatprep.subr.mxu0 0.0
    %2166 = vmatpush1.msra.mxu0 0.0
    %2167 = vmatprep.subr.mxu0 0.0
    %2168 = vmatpush1.msra.mxu0 0.0
    %2169 = vmatprep.subr.mxu0 0.0
    %2170 = vmatpush1.msra.mxu0 0.0
    %2171 = vmatprep.subr.mxu0 0.0
    %2172 = vmatpush1.msra.mxu0 0.0
    %2173 = vmatprep.subr.mxu0 0.0
    %2174 = vmatpush1.msra.mxu0 0.0
    %2175 = vmatprep.subr.mxu0 0.0
    %2176 = vmatpush1.msra.mxu0 0.0
    %2177 = vmatprep.subr.mxu0 0.0
    %2178 = vmatpush1.msra.mxu0 0.0
    %2179 = vmatprep.subr.mxu0 0.0
    %2180 = vmatpush1.msra.mxu0 0.0
    %2181 = vmatprep.subr.mxu0 0.0
    %2182 = vmatpush1.msra.mxu0 0.0
    %2183 = vmatprep.subr.mxu0 0.0
    %2184 = vmatpush1.msra.mxu0 0.0
    %2185 = vmatprep.subr.mxu0 0.0
    %2186 = vmatpush1.msra.mxu0 0.0
    %2187 = vmatprep.subr.mxu0 0.0
    %2188 = vmatpush1.msra.mxu0 0.0
    %2189 = vmatprep.subr.mxu0 0.0
    %2190 = vmatpush1.msra.mxu0 0.0
    %2191 = vmatprep.subr.mxu0 0.0
    %2192 = vmatpush1.msra.mxu0 0.0
    %2193 = vmatprep.subr.mxu0 0.0
    %2194 = vmatpush1.msra.mxu0 0.0
    %2195 = vmatprep.subr.mxu0 0.0
    %2196 = vmatpush1.msra.mxu0 0.0
    %2197 = vmatprep.subr.mxu0 0.0
    %2198 = vmatpush1.msra.mxu0 0.0
    %2199 = vmatprep.subr.mxu0 0.0
    %2200 = vmatpush1.msra.mxu0 0.0
    %2201 = vmatprep.subr.mxu0 0.0
    %2202 = vmatpush1.msra.mxu0 0.0
    %2203 = vmatprep.subr.mxu0 0.0
    %2204 = vmatpush1.msra.mxu0 0.0
    %2205 = vmatprep.subr.mxu0 0.0
    %2206 = vmatpush1.msra.mxu0 0.0
    %2207 = vmatprep.subr.mxu0 0.0
    %2208 = vmatpush1.msra.mxu0 0.0
    %2209 = vmatprep.subr.mxu0 0.0
    %2210 = vmatpush1.msra.mxu0 0.0
    %2211 = vmatprep.subr.mxu0 0.0
    %2212 = vmatpush1.msra.mxu0 0.0
    %2213 = vmatprep.subr.mxu0 0.0
    %2214 = vmatpush1.msra.mxu0 0.0
    %2215 = vmatprep.subr.mxu0 0.0
    %2216 = vmatpush1.msra.mxu0 0.0
    %2217 = vmatprep.subr.mxu0 0.0
    %2218 = vmatpush1.msra.mxu0 0.0
    %2219 = vmatprep.mubr.f32.mxu0 0.0
    %2220 = vmatmul.mubr.f32.gmra.mrb[0].mxu0 %v2153
    %v2221 = vpop.f32.mrb[0].mxu0
    %v2222 = vadd.f32 0.0, %v2221
    %v2223 = vpop.f32.mrb[0].mxu0
    %2224 = vdwg.mxu0
    %2225 = vrot.lane.b32.xlu0 %v1966, 64
    %v2226 = vpop.permute.xlu0 %2225
    %v2229 = vsel %vm243, %v2148, 0
    %2231 = vmatprep.subr.mxu0 0.0
    %2232 = vmatpush1.msra.mxu0 %v2226
    %2233 = vmatprep.subr.mxu0 0.0
    %2234 = vmatpush1.msra.mxu0 0.0
    %2235 = vmatprep.subr.mxu0 0.0
    %2236 = vmatpush1.msra.mxu0 0.0
    %2237 = vmatprep.subr.mxu0 0.0
    %2238 = vmatpush1.msra.mxu0 0.0
    %2239 = vmatprep.subr.mxu0 0.0
    %2240 = vmatpush1.msra.mxu0 0.0
    %2241 = vmatprep.subr.mxu0 0.0
    %2242 = vmatpush1.msra.mxu0 0.0
    %2243 = vmatprep.subr.mxu0 0.0
    %2244 = vmatpush1.msra.mxu0 0.0
    %2245 = vmatprep.subr.mxu0 0.0
    %2246 = vmatpush1.msra.mxu0 0.0
    %2247 = vmatprep.subr.mxu0 0.0
    %2248 = vmatpush1.msra.mxu0 0.0
    %2249 = vmatprep.subr.mxu0 0.0
    %2250 = vmatpush1.msra.mxu0 0.0
    %2251 = vmatprep.subr.mxu0 0.0
    %2252 = vmatpush1.msra.mxu0 0.0
    %2253 = vmatprep.subr.mxu0 0.0
    %2254 = vmatpush1.msra.mxu0 0.0
    %2255 = vmatprep.subr.mxu0 0.0
    %2256 = vmatpush1.msra.mxu0 0.0
    %2257 = vmatprep.subr.mxu0 0.0
    %2258 = vmatpush1.msra.mxu0 0.0
    %2259 = vmatprep.subr.mxu0 0.0
    %2260 = vmatpush1.msra.mxu0 0.0
    %2261 = vmatprep.subr.mxu0 0.0
    %2262 = vmatpush1.msra.mxu0 0.0
    %2263 = vmatprep.subr.mxu0 0.0
    %2264 = vmatpush1.msra.mxu0 0.0
    %2265 = vmatprep.subr.mxu0 0.0
    %2266 = vmatpush1.msra.mxu0 0.0
    %2267 = vmatprep.subr.mxu0 0.0
    %2268 = vmatpush1.msra.mxu0 0.0
    %2269 = vmatprep.subr.mxu0 0.0
    %2270 = vmatpush1.msra.mxu0 0.0
    %2271 = vmatprep.subr.mxu0 0.0
    %2272 = vmatpush1.msra.mxu0 0.0
    %2273 = vmatprep.subr.mxu0 0.0
    %2274 = vmatpush1.msra.mxu0 0.0
    %2275 = vmatprep.subr.mxu0 0.0
    %2276 = vmatpush1.msra.mxu0 0.0
    %2277 = vmatprep.subr.mxu0 0.0
    %2278 = vmatpush1.msra.mxu0 0.0
    %2279 = vmatprep.subr.mxu0 0.0
    %2280 = vmatpush1.msra.mxu0 0.0
    %2281 = vmatprep.subr.mxu0 0.0
    %2282 = vmatpush1.msra.mxu0 0.0
    %2283 = vmatprep.subr.mxu0 0.0
    %2284 = vmatpush1.msra.mxu0 0.0
    %2285 = vmatprep.subr.mxu0 0.0
    %2286 = vmatpush1.msra.mxu0 0.0
    %2287 = vmatprep.subr.mxu0 0.0
    %2288 = vmatpush1.msra.mxu0 0.0
    %2289 = vmatprep.subr.mxu0 0.0
    %2290 = vmatpush1.msra.mxu0 0.0
    %2291 = vmatprep.subr.mxu0 0.0
    %2292 = vmatpush1.msra.mxu0 0.0
    %2293 = vmatprep.subr.mxu0 0.0
    %2294 = vmatpush1.msra.mxu0 0.0
    %2295 = vmatprep.mubr.f32.mxu0 0.0
    %2296 = vmatmul.mubr.f32.gmra.mrb[0].mxu0 %v2229
    %v2297 = vpop.f32.mrb[0].mxu0
    %v2298 = vadd.f32 0.0, %v2297
    %v2299 = vpop.f32.mrb[0].mxu0
    %2300 = vdwg.mxu0
    %2301 = vrot.lane.b32.xlu0 %v1963, 120
    %v2302 = vpop.permute.xlu0 %2301
    %2303 = vrot.lane.b32.xlu0 %v1963, 88
    %v2304 = vpop.permute.xlu0 %2303
    %v2305 = vsel %vm243, %v2302, 0
    %v2307 = vsel %vm243, %v2304, 0
    %2309 = vmatprep.subr.mxu0 0.0
    %2310 = vmatpush1.xpose.msra.mxu0 %v2307
    %2311 = vmatprep.subr.mxu0 0.0
    %2312 = vmatpush1.xpose.msra.mxu0 0.0
    %2313 = vmatprep.subr.mxu0 0.0
    %2314 = vmatpush1.xpose.msra.mxu0 0.0
    %2315 = vmatprep.subr.mxu0 0.0
    %2316 = vmatpush1.xpose.msra.mxu0 0.0
    %2317 = vmatprep.subr.mxu0 0.0
    %2318 = vmatpush1.xpose.msra.mxu0 0.0
    %2319 = vmatprep.subr.mxu0 0.0
    %2320 = vmatpush1.xpose.msra.mxu0 0.0
    %2321 = vmatprep.subr.mxu0 0.0
    %2322 = vmatpush1.xpose.msra.mxu0 0.0
    %2323 = vmatprep.subr.mxu0 0.0
    %2324 = vmatpush1.xpose.msra.mxu0 0.0
    %2325 = vmatprep.subr.mxu0 0.0
    %2326 = vmatpush1.xpose.msra.mxu0 0.0
    %2327 = vmatprep.subr.mxu0 0.0
    %2328 = vmatpush1.xpose.msra.mxu0 0.0
    %2329 = vmatprep.subr.mxu0 0.0
    %2330 = vmatpush1.xpose.msra.mxu0 0.0
    %2331 = vmatprep.subr.mxu0 0.0
    %2332 = vmatpush1.xpose.msra.mxu0 0.0
    %2333 = vmatprep.subr.mxu0 0.0
    %2334 = vmatpush1.xpose.msra.mxu0 0.0
    %2335 = vmatprep.subr.mxu0 0.0
    %2336 = vmatpush1.xpose.msra.mxu0 0.0
    %2337 = vmatprep.subr.mxu0 0.0
    %2338 = vmatpush1.xpose.msra.mxu0 0.0
    %2339 = vmatprep.subr.mxu0 0.0
    %2340 = vmatpush1.xpose.msra.mxu0 0.0
    %2341 = vmatprep.subr.mxu0 0.0
    %2342 = vmatpush1.xpose.msra.mxu0 0.0
    %2343 = vmatprep.subr.mxu0 0.0
    %2344 = vmatpush1.xpose.msra.mxu0 0.0
    %2345 = vmatprep.subr.mxu0 0.0
    %2346 = vmatpush1.xpose.msra.mxu0 0.0
    %2347 = vmatprep.subr.mxu0 0.0
    %2348 = vmatpush1.xpose.msra.mxu0 0.0
    %2349 = vmatprep.subr.mxu0 0.0
    %2350 = vmatpush1.xpose.msra.mxu0 0.0
    %2351 = vmatprep.subr.mxu0 0.0
    %2352 = vmatpush1.xpose.msra.mxu0 0.0
    %2353 = vmatprep.subr.mxu0 0.0
    %2354 = vmatpush1.xpose.msra.mxu0 0.0
    %2355 = vmatprep.subr.mxu0 0.0
    %2356 = vmatpush1.xpose.msra.mxu0 0.0
    %2357 = vmatprep.subr.mxu0 0.0
    %2358 = vmatpush1.xpose.msra.mxu0 0.0
    %2359 = vmatprep.subr.mxu0 0.0
    %2360 = vmatpush1.xpose.msra.mxu0 0.0
    %2361 = vmatprep.subr.mxu0 0.0
    %2362 = vmatpush1.xpose.msra.mxu0 0.0
    %2363 = vmatprep.subr.mxu0 0.0
    %2364 = vmatpush1.xpose.msra.mxu0 0.0
    %2365 = vmatprep.subr.mxu0 0.0
    %2366 = vmatpush1.xpose.msra.mxu0 0.0
    %2367 = vmatprep.subr.mxu0 0.0
    %2368 = vmatpush1.xpose.msra.mxu0 0.0
    %2369 = vmatprep.subr.mxu0 0.0
    %2370 = vmatpush1.xpose.msra.mxu0 0.0
    %2371 = vmatprep.subr.mxu0 0.0
    %2372 = vmatpush1.xpose.msra.mxu0 0.0
    %2373 = vmatprep.mubr.f32.mxu0 0.0
    %2374 = vmatmul.mubr.f32.gmra.mrb[0].mxu0 %v2305
    %v2375 = vpop.f32.mrb[0].mxu0
    %v2376 = vadd.f32 0.0, %v2375
    %v2377 = vpop.f32.mrb[0].mxu0
    %2378 = vdwg.mxu0
    %2379 = vrot.lane.b32.xlu0 %v1966, 120
    %v2380 = vpop.permute.xlu0 %2379
    %2381 = vrot.lane.b32.xlu0 %v1966, 88
    %v2382 = vpop.permute.xlu0 %2381
    %v2383 = vsel %vm243, %v2380, 0
    %v2385 = vsel %vm243, %v2382, 0
    %2387 = vmatprep.subr.mxu0 0.0
    %2388 = vmatpush1.xpose.msra.mxu0 %v2385
    %2389 = vmatprep.subr.mxu0 0.0
    %2390 = vmatpush1.xpose.msra.mxu0 0.0
    %2391 = vmatprep.subr.mxu0 0.0
    %2392 = vmatpush1.xpose.msra.mxu0 0.0
    %2393 = vmatprep.subr.mxu0 0.0
    %2394 = vmatpush1.xpose.msra.mxu0 0.0
    %2395 = vmatprep.subr.mxu0 0.0
    %2396 = vmatpush1.xpose.msra.mxu0 0.0
    %2397 = vmatprep.subr.mxu0 0.0
    %2398 = vmatpush1.xpose.msra.mxu0 0.0
    %2399 = vmatprep.subr.mxu0 0.0
    %2400 = vmatpush1.xpose.msra.mxu0 0.0
    %2401 = vmatprep.subr.mxu0 0.0
    %2402 = vmatpush1.xpose.msra.mxu0 0.0
    %2403 = vmatprep.subr.mxu0 0.0
    %2404 = vmatpush1.xpose.msra.mxu0 0.0
    %2405 = vmatprep.subr.mxu0 0.0
    %2406 = vmatpush1.xpose.msra.mxu0 0.0
    %2407 = vmatprep.subr.mxu0 0.0
    %2408 = vmatpush1.xpose.msra.mxu0 0.0
    %2409 = vmatprep.subr.mxu0 0.0
    %2410 = vmatpush1.xpose.msra.mxu0 0.0
    %2411 = vmatprep.subr.mxu0 0.0
    %2412 = vmatpush1.xpose.msra.mxu0 0.0
    %2413 = vmatprep.subr.mxu0 0.0
    %2414 = vmatpush1.xpose.msra.mxu0 0.0
    %2415 = vmatprep.subr.mxu0 0.0
    %2416 = vmatpush1.xpose.msra.mxu0 0.0
    %2417 = vmatprep.subr.mxu0 0.0
    %2418 = vmatpush1.xpose.msra.mxu0 0.0
    %2419 = vmatprep.subr.mxu0 0.0
    %2420 = vmatpush1.xpose.msra.mxu0 0.0
    %2421 = vmatprep.subr.mxu0 0.0
    %2422 = vmatpush1.xpose.msra.mxu0 0.0
    %2423 = vmatprep.subr.mxu0 0.0
    %2424 = vmatpush1.xpose.msra.mxu0 0.0
    %2425 = vmatprep.subr.mxu0 0.0
    %2426 = vmatpush1.xpose.msra.mxu0 0.0
    %2427 = vmatprep.subr.mxu0 0.0
    %2428 = vmatpush1.xpose.msra.mxu0 0.0
    %2429 = vmatprep.subr.mxu0 0.0
    %2430 = vmatpush1.xpose.msra.mxu0 0.0
    %2431 = vmatprep.subr.mxu0 0.0
    %2432 = vmatpush1.xpose.msra.mxu0 0.0
    %2433 = vmatprep.subr.mxu0 0.0
    %2434 = vmatpush1.xpose.msra.mxu0 0.0
    %2435 = vmatprep.subr.mxu0 0.0
    %2436 = vmatpush1.xpose.msra.mxu0 0.0
    %2437 = vmatprep.subr.mxu0 0.0
    %2438 = vmatpush1.xpose.msra.mxu0 0.0
    %2439 = vmatprep.subr.mxu0 0.0
    %2440 = vmatpush1.xpose.msra.mxu0 0.0
    %2441 = vmatprep.subr.mxu0 0.0
    %2442 = vmatpush1.xpose.msra.mxu0 0.0
    %2443 = vmatprep.subr.mxu0 0.0
    %2444 = vmatpush1.xpose.msra.mxu0 0.0
    %2445 = vmatprep.subr.mxu0 0.0
    %2446 = vmatpush1.xpose.msra.mxu0 0.0
    %2447 = vmatprep.subr.mxu0 0.0
    %2448 = vmatpush1.xpose.msra.mxu0 0.0
    %2449 = vmatprep.subr.mxu0 0.0
    %2450 = vmatpush1.xpose.msra.mxu0 0.0
    %2451 = vmatprep.mubr.f32.mxu0 0.0
    %2452 = vmatmul.mubr.f32.gmra.mrb[0].mxu0 %v2383
    %v2453 = vpop.f32.mrb[0].mxu0
    %v2454 = vadd.f32 0.0, %v2453
    %v2455 = vpop.f32.mrb[0].mxu0
    %2456 = vdwg.mxu0
    %v2457 = vmul.f32 %v2376, 0.35355338
    %v2458 = vmul.f32 %v2454, 0.35355338
    %v2459 = vsel %vm398, %v2457, -1e+30
    %v2460 = vsel %vm398, %v2458, -1e+30
    %v2461 = vsel %vm243, %v2459, -inf
    %2462 = vmax.xlane.f32.xlu0 %v2461
    %v2463 = vpop.xlane.xlu0 %2462
    %v2464 = vsel %vm243, %v2460, -inf
    %2465 = vmax.xlane.f32.xlu0 %v2464
    %v2466 = vpop.xlane.xlu0 %2465
    %v2467 = vsub.f32 %v2459, %v2463
    %v2468 = vsub.f32 %v2460, %v2466
    %v2469 = vmul.f32 %v2467, 1.442695
    %v2470 = vpow.pop %v2469
    %v2471 = vmul.f32 %v2468, 1.442695
    %v2472 = vpow.pop %v2471
    %v2473 = vsel %vm243, %v2470, 0.0
    %2474 = vadd.xlane.f32.xlu0 %v2473
    %v2475 = vpop.xlane.xlu0 %2474
    %v2476 = vsel %vm243, %v2472, 0.0
    %2477 = vadd.xlane.f32.xlu0 %v2476
    %v2478 = vpop.xlane.xlu0 %2477
    %v2479 = vrcp.pop %v2475
    %v2480 = vrcp.pop %v2478
    %v2481 = vmul.f32 %v2470, %v2479
    %v2482 = vmul.f32 %v2472, %v2480
    %2483 = vrot.lane.b32.xlu0 %v1963, 56
    %v2484 = vpop.permute.xlu0 %2483
    %v2487 = vsel %vm243, %v2481, 0
    %2489 = vmatprep.subr.mxu0 0.0
    %2490 = vmatpush1.msra.mxu0 %v2484
    %2491 = vmatprep.subr.mxu0 0.0
    %2492 = vmatpush1.msra.mxu0 0.0
    %2493 = vmatprep.subr.mxu0 0.0
    %2494 = vmatpush1.msra.mxu0 0.0
    %2495 = vmatprep.subr.mxu0 0.0
    %2496 = vmatpush1.msra.mxu0 0.0
    %2497 = vmatprep.subr.mxu0 0.0
    %2498 = vmatpush1.msra.mxu0 0.0
    %2499 = vmatprep.subr.mxu0 0.0
    %2500 = vmatpush1.msra.mxu0 0.0
    %2501 = vmatprep.subr.mxu0 0.0
    %2502 = vmatpush1.msra.mxu0 0.0
    %2503 = vmatprep.subr.mxu0 0.0
    %2504 = vmatpush1.msra.mxu0 0.0
    %2505 = vmatprep.subr.mxu0 0.0
    %2506 = vmatpush1.msra.mxu0 0.0
    %2507 = vmatprep.subr.mxu0 0.0
    %2508 = vmatpush1.msra.mxu0 0.0
    %2509 = vmatprep.subr.mxu0 0.0
    %2510 = vmatpush1.msra.mxu0 0.0
    %2511 = vmatprep.subr.mxu0 0.0
    %2512 = vmatpush1.msra.mxu0 0.0
    %2513 = vmatprep.subr.mxu0 0.0
    %2514 = vmatpush1.msra.mxu0 0.0
    %2515 = vmatprep.subr.mxu0 0.0
    %2516 = vmatpush1.msra.mxu0 0.0
    %2517 = vmatprep.subr.mxu0 0.0
    %2518 = vmatpush1.msra.mxu0 0.0
    %2519 = vmatprep.subr.mxu0 0.0
    %2520 = vmatpush1.msra.mxu0 0.0
    %2521 = vmatprep.subr.mxu0 0.0
    %2522 = vmatpush1.msra.mxu0 0.0
    %2523 = vmatprep.subr.mxu0 0.0
    %2524 = vmatpush1.msra.mxu0 0.0
    %2525 = vmatprep.subr.mxu0 0.0
    %2526 = vmatpush1.msra.mxu0 0.0
    %2527 = vmatprep.subr.mxu0 0.0
    %2528 = vmatpush1.msra.mxu0 0.0
    %2529 = vmatprep.subr.mxu0 0.0
    %2530 = vmatpush1.msra.mxu0 0.0
    %2531 = vmatprep.subr.mxu0 0.0
    %2532 = vmatpush1.msra.mxu0 0.0
    %2533 = vmatprep.subr.mxu0 0.0
    %2534 = vmatpush1.msra.mxu0 0.0
    %2535 = vmatprep.subr.mxu0 0.0
    %2536 = vmatpush1.msra.mxu0 0.0
    %2537 = vmatprep.subr.mxu0 0.0
    %2538 = vmatpush1.msra.mxu0 0.0
    %2539 = vmatprep.subr.mxu0 0.0
    %2540 = vmatpush1.msra.mxu0 0.0
    %2541 = vmatprep.subr.mxu0 0.0
    %2542 = vmatpush1.msra.mxu0 0.0
    %2543 = vmatprep.subr.mxu0 0.0
    %2544 = vmatpush1.msra.mxu0 0.0
    %2545 = vmatprep.subr.mxu0 0.0
    %2546 = vmatpush1.msra.mxu0 0.0
    %2547 = vmatprep.subr.mxu0 0.0
    %2548 = vmatpush1.msra.mxu0 0.0
    %2549 = vmatprep.subr.mxu0 0.0
    %2550 = vmatpush1.msra.mxu0 0.0
    %2551 = vmatprep.subr.mxu0 0.0
    %2552 = vmatpush1.msra.mxu0 0.0
    %2553 = vmatprep.mubr.f32.mxu0 0.0
    %2554 = vmatmul.mubr.f32.gmra.mrb[0].mxu0 %v2487
    %v2555 = vpop.f32.mrb[0].mxu0
    %v2556 = vadd.f32 0.0, %v2555
    %v2557 = vpop.f32.mrb[0].mxu0
    %2558 = vdwg.mxu0
    %2559 = vrot.lane.b32.xlu0 %v1966, 56
    %v2560 = vpop.permute.xlu0 %2559
    %v2563 = vsel %vm243, %v2482, 0
    %2565 = vmatprep.subr.mxu0 0.0
    %2566 = vmatpush1.msra.mxu0 %v2560
    %2567 = vmatprep.subr.mxu0 0.0
    %2568 = vmatpush1.msra.mxu0 0.0
    %2569 = vmatprep.subr.mxu0 0.0
    %2570 = vmatpush1.msra.mxu0 0.0
    %2571 = vmatprep.subr.mxu0 0.0
    %2572 = vmatpush1.msra.mxu0 0.0
    %2573 = vmatprep.subr.mxu0 0.0
    %2574 = vmatpush1.msra.mxu0 0.0
    %2575 = vmatprep.subr.mxu0 0.0
    %2576 = vmatpush1.msra.mxu0 0.0
    %2577 = vmatprep.subr.mxu0 0.0
    %2578 = vmatpush1.msra.mxu0 0.0
    %2579 = vmatprep.subr.mxu0 0.0
    %2580 = vmatpush1.msra.mxu0 0.0
    %2581 = vmatprep.subr.mxu0 0.0
    %2582 = vmatpush1.msra.mxu0 0.0
    %2583 = vmatprep.subr.mxu0 0.0
    %2584 = vmatpush1.msra.mxu0 0.0
    %2585 = vmatprep.subr.mxu0 0.0
    %2586 = vmatpush1.msra.mxu0 0.0
    %2587 = vmatprep.subr.mxu0 0.0
    %2588 = vmatpush1.msra.mxu0 0.0
    %2589 = vmatprep.subr.mxu0 0.0
    %2590 = vmatpush1.msra.mxu0 0.0
    %2591 = vmatprep.subr.mxu0 0.0
    %2592 = vmatpush1.msra.mxu0 0.0
    %2593 = vmatprep.subr.mxu0 0.0
    %2594 = vmatpush1.msra.mxu0 0.0
    %2595 = vmatprep.subr.mxu0 0.0
    %2596 = vmatpush1.msra.mxu0 0.0
    %2597 = vmatprep.subr.mxu0 0.0
    %2598 = vmatpush1.msra.mxu0 0.0
    %2599 = vmatprep.subr.mxu0 0.0
    %2600 = vmatpush1.msra.mxu0 0.0
    %2601 = vmatprep.subr.mxu0 0.0
    %2602 = vmatpush1.msra.mxu0 0.0
    %2603 = vmatprep.subr.mxu0 0.0
    %2604 = vmatpush1.msra.mxu0 0.0
    %2605 = vmatprep.subr.mxu0 0.0
    %2606 = vmatpush1.msra.mxu0 0.0
    %2607 = vmatprep.subr.mxu0 0.0
    %2608 = vmatpush1.msra.mxu0 0.0
    %2609 = vmatprep.subr.mxu0 0.0
    %2610 = vmatpush1.msra.mxu0 0.0
    %2611 = vmatprep.subr.mxu0 0.0
    %2612 = vmatpush1.msra.mxu0 0.0
    %2613 = vmatprep.subr.mxu0 0.0
    %2614 = vmatpush1.msra.mxu0 0.0
    %2615 = vmatprep.subr.mxu0 0.0
    %2616 = vmatpush1.msra.mxu0 0.0
    %2617 = vmatprep.subr.mxu0 0.0
    %2618 = vmatpush1.msra.mxu0 0.0
    %2619 = vmatprep.subr.mxu0 0.0
    %2620 = vmatpush1.msra.mxu0 0.0
    %2621 = vmatprep.subr.mxu0 0.0
    %2622 = vmatpush1.msra.mxu0 0.0
    %2623 = vmatprep.subr.mxu0 0.0
    %2624 = vmatpush1.msra.mxu0 0.0
    %2625 = vmatprep.subr.mxu0 0.0
    %2626 = vmatpush1.msra.mxu0 0.0
    %2627 = vmatprep.subr.mxu0 0.0
    %2628 = vmatpush1.msra.mxu0 0.0
    %2629 = vmatprep.mubr.f32.mxu0 0.0
    %2630 = vmatmul.mubr.f32.gmra.mrb[0].mxu0 %v2563
    %v2631 = vpop.f32.mrb[0].mxu0
    %v2632 = vadd.f32 0.0, %v2631
    %v2633 = vpop.f32.mrb[0].mxu0
    %2634 = vdwg.mxu0
    %2635 = vrot.lane.b32.xlu0 %v1963, 112
    %v2636 = vpop.permute.xlu0 %2635
    %2637 = vrot.lane.b32.xlu0 %v1963, 80
    %v2638 = vpop.permute.xlu0 %2637
    %v2639 = vsel %vm243, %v2636, 0
    %v2641 = vsel %vm243, %v2638, 0
    %2643 = vmatprep.subr.mxu0 0.0
    %2644 = vmatpush1.xpose.msra.mxu0 %v2641
    %2645 = vmatprep.subr.mxu0 0.0
    %2646 = vmatpush1.xpose.msra.mxu0 0.0
    %2647 = vmatprep.subr.mxu0 0.0
    %2648 = vmatpush1.xpose.msra.mxu0 0.0
    %2649 = vmatprep.subr.mxu0 0.0
    %2650 = vmatpush1.xpose.msra.mxu0 0.0
    %2651 = vmatprep.subr.mxu0 0.0
    %2652 = vmatpush1.xpose.msra.mxu0 0.0
    %2653 = vmatprep.subr.mxu0 0.0
    %2654 = vmatpush1.xpose.msra.mxu0 0.0
    %2655 = vmatprep.subr.mxu0 0.0
    %2656 = vmatpush1.xpose.msra.mxu0 0.0
    %2657 = vmatprep.subr.mxu0 0.0
    %2658 = vmatpush1.xpose.msra.mxu0 0.0
    %2659 = vmatprep.subr.mxu0 0.0
    %2660 = vmatpush1.xpose.msra.mxu0 0.0
    %2661 = vmatprep.subr.mxu0 0.0
    %2662 = vmatpush1.xpose.msra.mxu0 0.0
    %2663 = vmatprep.subr.mxu0 0.0
    %2664 = vmatpush1.xpose.msra.mxu0 0.0
    %2665 = vmatprep.subr.mxu0 0.0
    %2666 = vmatpush1.xpose.msra.mxu0 0.0
    %2667 = vmatprep.subr.mxu0 0.0
    %2668 = vmatpush1.xpose.msra.mxu0 0.0
    %2669 = vmatprep.subr.mxu0 0.0
    %2670 = vmatpush1.xpose.msra.mxu0 0.0
    %2671 = vmatprep.subr.mxu0 0.0
    %2672 = vmatpush1.xpose.msra.mxu0 0.0
    %2673 = vmatprep.subr.mxu0 0.0
    %2674 = vmatpush1.xpose.msra.mxu0 0.0
    %2675 = vmatprep.subr.mxu0 0.0
    %2676 = vmatpush1.xpose.msra.mxu0 0.0
    %2677 = vmatprep.subr.mxu0 0.0
    %2678 = vmatpush1.xpose.msra.mxu0 0.0
    %2679 = vmatprep.subr.mxu0 0.0
    %2680 = vmatpush1.xpose.msra.mxu0 0.0
    %2681 = vmatprep.subr.mxu0 0.0
    %2682 = vmatpush1.xpose.msra.mxu0 0.0
    %2683 = vmatprep.subr.mxu0 0.0
    %2684 = vmatpush1.xpose.msra.mxu0 0.0
    %2685 = vmatprep.subr.mxu0 0.0
    %2686 = vmatpush1.xpose.msra.mxu0 0.0
    %2687 = vmatprep.subr.mxu0 0.0
    %2688 = vmatpush1.xpose.msra.mxu0 0.0
    %2689 = vmatprep.subr.mxu0 0.0
    %2690 = vmatpush1.xpose.msra.mxu0 0.0
    %2691 = vmatprep.subr.mxu0 0.0
    %2692 = vmatpush1.xpose.msra.mxu0 0.0
    %2693 = vmatprep.subr.mxu0 0.0
    %2694 = vmatpush1.xpose.msra.mxu0 0.0
    %2695 = vmatprep.subr.mxu0 0.0
    %2696 = vmatpush1.xpose.msra.mxu0 0.0
    %2697 = vmatprep.subr.mxu0 0.0
    %2698 = vmatpush1.xpose.msra.mxu0 0.0
    %2699 = vmatprep.subr.mxu0 0.0
    %2700 = vmatpush1.xpose.msra.mxu0 0.0
    %2701 = vmatprep.subr.mxu0 0.0
    %2702 = vmatpush1.xpose.msra.mxu0 0.0
    %2703 = vmatprep.subr.mxu0 0.0
    %2704 = vmatpush1.xpose.msra.mxu0 0.0
    %2705 = vmatprep.subr.mxu0 0.0
    %2706 = vmatpush1.xpose.msra.mxu0 0.0
    %2707 = vmatprep.mubr.f32.mxu0 0.0
    %2708 = vmatmul.mubr.f32.gmra.mrb[0].mxu0 %v2639
    %v2709 = vpop.f32.mrb[0].mxu0
    %v2710 = vadd.f32 0.0, %v2709
    %v2711 = vpop.f32.mrb[0].mxu0
    %2712 = vdwg.mxu0
    %2713 = vrot.lane.b32.xlu0 %v1966, 112
    %v2714 = vpop.permute.xlu0 %2713
    %2715 = vrot.lane.b32.xlu0 %v1966, 80
    %v2716 = vpop.permute.xlu0 %2715
    %v2717 = vsel %vm243, %v2714, 0
    %v2719 = vsel %vm243, %v2716, 0
    %2721 = vmatprep.subr.mxu0 0.0
    %2722 = vmatpush1.xpose.msra.mxu0 %v2719
    %2723 = vmatprep.subr.mxu0 0.0
    %2724 = vmatpush1.xpose.msra.mxu0 0.0
    %2725 = vmatprep.subr.mxu0 0.0
    %2726 = vmatpush1.xpose.msra.mxu0 0.0
    %2727 = vmatprep.subr.mxu0 0.0
    %2728 = vmatpush1.xpose.msra.mxu0 0.0
    %2729 = vmatprep.subr.mxu0 0.0
    %2730 = vmatpush1.xpose.msra.mxu0 0.0
    %2731 = vmatprep.subr.mxu0 0.0
    %2732 = vmatpush1.xpose.msra.mxu0 0.0
    %2733 = vmatprep.subr.mxu0 0.0
    %2734 = vmatpush1.xpose.msra.mxu0 0.0
    %2735 = vmatprep.subr.mxu0 0.0
    %2736 = vmatpush1.xpose.msra.mxu0 0.0
    %2737 = vmatprep.subr.mxu0 0.0
    %2738 = vmatpush1.xpose.msra.mxu0 0.0
    %2739 = vmatprep.subr.mxu0 0.0
    %2740 = vmatpush1.xpose.msra.mxu0 0.0
    %2741 = vmatprep.subr.mxu0 0.0
    %2742 = vmatpush1.xpose.msra.mxu0 0.0
    %2743 = vmatprep.subr.mxu0 0.0
    %2744 = vmatpush1.xpose.msra.mxu0 0.0
    %2745 = vmatprep.subr.mxu0 0.0
    %2746 = vmatpush1.xpose.msra.mxu0 0.0
    %2747 = vmatprep.subr.mxu0 0.0
    %2748 = vmatpush1.xpose.msra.mxu0 0.0
    %2749 = vmatprep.subr.mxu0 0.0
    %2750 = vmatpush1.xpose.msra.mxu0 0.0
    %2751 = vmatprep.subr.mxu0 0.0
    %2752 = vmatpush1.xpose.msra.mxu0 0.0
    %2753 = vmatprep.subr.mxu0 0.0
    %2754 = vmatpush1.xpose.msra.mxu0 0.0
    %2755 = vmatprep.subr.mxu0 0.0
    %2756 = vmatpush1.xpose.msra.mxu0 0.0
    %2757 = vmatprep.subr.mxu0 0.0
    %2758 = vmatpush1.xpose.msra.mxu0 0.0
    %2759 = vmatprep.subr.mxu0 0.0
    %2760 = vmatpush1.xpose.msra.mxu0 0.0
    %2761 = vmatprep.subr.mxu0 0.0
    %2762 = vmatpush1.xpose.msra.mxu0 0.0
    %2763 = vmatprep.subr.mxu0 0.0
    %2764 = vmatpush1.xpose.msra.mxu0 0.0
    %2765 = vmatprep.subr.mxu0 0.0
    %2766 = vmatpush1.xpose.msra.mxu0 0.0
    %2767 = vmatprep.subr.mxu0 0.0
    %2768 = vmatpush1.xpose.msra.mxu0 0.0
    %2769 = vmatprep.subr.mxu0 0.0
    %2770 = vmatpush1.xpose.msra.mxu0 0.0
    %2771 = vmatprep.subr.mxu0 0.0
    %2772 = vmatpush1.xpose.msra.mxu0 0.0
    %2773 = vmatprep.subr.mxu0 0.0
    %2774 = vmatpush1.xpose.msra.mxu0 0.0
    %2775 = vmatprep.subr.mxu0 0.0
    %2776 = vmatpush1.xpose.msra.mxu0 0.0
    %2777 = vmatprep.subr.mxu0 0.0
    %2778 = vmatpush1.xpose.msra.mxu0 0.0
    %2779 = vmatprep.subr.mxu0 0.0
    %2780 = vmatpush1.xpose.msra.mxu0 0.0
    %2781 = vmatprep.subr.mxu0 0.0
    %2782 = vmatpush1.xpose.msra.mxu0 0.0
    %2783 = vmatprep.subr.mxu0 0.0
    %2784 = vmatpush1.xpose.msra.mxu0 0.0
    %2785 = vmatprep.mubr.f32.mxu0 0.0
    %2786 = vmatmul.mubr.f32.gmra.mrb[0].mxu0 %v2717
    %v2787 = vpop.f32.mrb[0].mxu0
    %v2788 = vadd.f32 0.0, %v2787
    %v2789 = vpop.f32.mrb[0].mxu0
    %2790 = vdwg.mxu0
    %v2791 = vmul.f32 %v2710, 0.35355338
    %v2792 = vmul.f32 %v2788, 0.35355338
    %v2793 = vsel %vm398, %v2791, -1e+30
    %v2794 = vsel %vm398, %v2792, -1e+30
    %v2795 = vsel %vm243, %v2793, -inf
    %2796 = vmax.xlane.f32.xlu0 %v2795
    %v2797 = vpop.xlane.xlu0 %2796
    %v2798 = vsel %vm243, %v2794, -inf
    %2799 = vmax.xlane.f32.xlu0 %v2798
    %v2800 = vpop.xlane.xlu0 %2799
    %v2801 = vsub.f32 %v2793, %v2797
    %v2802 = vsub.f32 %v2794, %v2800
    %v2803 = vmul.f32 %v2801, 1.442695
    %v2804 = vpow.pop %v2803
    %v2805 = vmul.f32 %v2802, 1.442695
    %v2806 = vpow.pop %v2805
    %v2807 = vsel %vm243, %v2804, 0.0
    %2808 = vadd.xlane.f32.xlu0 %v2807
    %v2809 = vpop.xlane.xlu0 %2808
    %v2810 = vsel %vm243, %v2806, 0.0
    %2811 = vadd.xlane.f32.xlu0 %v2810
    %v2812 = vpop.xlane.xlu0 %2811
    %v2813 = vrcp.pop %v2809
    %v2814 = vrcp.pop %v2812
    %v2815 = vmul.f32 %v2804, %v2813
    %v2816 = vmul.f32 %v2806, %v2814
    %2817 = vrot.lane.b32.xlu0 %v1963, 48
    %v2818 = vpop.permute.xlu0 %2817
    %v2821 = vsel %vm243, %v2815, 0
    %2823 = vmatprep.subr.mxu0 0.0
    %2824 = vmatpush1.msra.mxu0 %v2818
    %2825 = vmatprep.subr.mxu0 0.0
    %2826 = vmatpush1.msra.mxu0 0.0
    %2827 = vmatprep.subr.mxu0 0.0
    %2828 = vmatpush1.msra.mxu0 0.0
    %2829 = vmatprep.subr.mxu0 0.0
    %2830 = vmatpush1.msra.mxu0 0.0
    %2831 = vmatprep.subr.mxu0 0.0
    %2832 = vmatpush1.msra.mxu0 0.0
    %2833 = vmatprep.subr.mxu0 0.0
    %2834 = vmatpush1.msra.mxu0 0.0
    %2835 = vmatprep.subr.mxu0 0.0
    %2836 = vmatpush1.msra.mxu0 0.0
    %2837 = vmatprep.subr.mxu0 0.0
    %2838 = vmatpush1.msra.mxu0 0.0
    %2839 = vmatprep.subr.mxu0 0.0
    %2840 = vmatpush1.msra.mxu0 0.0
    %2841 = vmatprep.subr.mxu0 0.0
    %2842 = vmatpush1.msra.mxu0 0.0
    %2843 = vmatprep.subr.mxu0 0.0
    %2844 = vmatpush1.msra.mxu0 0.0
    %2845 = vmatprep.subr.mxu0 0.0
    %2846 = vmatpush1.msra.mxu0 0.0
    %2847 = vmatprep.subr.mxu0 0.0
    %2848 = vmatpush1.msra.mxu0 0.0
    %2849 = vmatprep.subr.mxu0 0.0
    %2850 = vmatpush1.msra.mxu0 0.0
    %2851 = vmatprep.subr.mxu0 0.0
    %2852 = vmatpush1.msra.mxu0 0.0
    %2853 = vmatprep.subr.mxu0 0.0
    %2854 = vmatpush1.msra.mxu0 0.0
    %2855 = vmatprep.subr.mxu0 0.0
    %2856 = vmatpush1.msra.mxu0 0.0
    %2857 = vmatprep.subr.mxu0 0.0
    %2858 = vmatpush1.msra.mxu0 0.0
    %2859 = vmatprep.subr.mxu0 0.0
    %2860 = vmatpush1.msra.mxu0 0.0
    %2861 = vmatprep.subr.mxu0 0.0
    %2862 = vmatpush1.msra.mxu0 0.0
    %2863 = vmatprep.subr.mxu0 0.0
    %2864 = vmatpush1.msra.mxu0 0.0
    %2865 = vmatprep.subr.mxu0 0.0
    %2866 = vmatpush1.msra.mxu0 0.0
    %2867 = vmatprep.subr.mxu0 0.0
    %2868 = vmatpush1.msra.mxu0 0.0
    %2869 = vmatprep.subr.mxu0 0.0
    %2870 = vmatpush1.msra.mxu0 0.0
    %2871 = vmatprep.subr.mxu0 0.0
    %2872 = vmatpush1.msra.mxu0 0.0
    %2873 = vmatprep.subr.mxu0 0.0
    %2874 = vmatpush1.msra.mxu0 0.0
    %2875 = vmatprep.subr.mxu0 0.0
    %2876 = vmatpush1.msra.mxu0 0.0
    %2877 = vmatprep.subr.mxu0 0.0
    %2878 = vmatpush1.msra.mxu0 0.0
    %2879 = vmatprep.subr.mxu0 0.0
    %2880 = vmatpush1.msra.mxu0 0.0
    %2881 = vmatprep.subr.mxu0 0.0
    %2882 = vmatpush1.msra.mxu0 0.0
    %2883 = vmatprep.subr.mxu0 0.0
    %2884 = vmatpush1.msra.mxu0 0.0
    %2885 = vmatprep.subr.mxu0 0.0
    %2886 = vmatpush1.msra.mxu0 0.0
    %2887 = vmatprep.mubr.f32.mxu0 0.0
    %2888 = vmatmul.mubr.f32.gmra.mrb[0].mxu0 %v2821
    %v2889 = vpop.f32.mrb[0].mxu0
    %v2890 = vadd.f32 0.0, %v2889
    %v2891 = vpop.f32.mrb[0].mxu0
    %2892 = vdwg.mxu0
    %2893 = vrot.lane.b32.xlu0 %v1966, 48
    %v2894 = vpop.permute.xlu0 %2893
    %v2897 = vsel %vm243, %v2816, 0
    %2899 = vmatprep.subr.mxu0 0.0
    %2900 = vmatpush1.msra.mxu0 %v2894
    %2901 = vmatprep.subr.mxu0 0.0
    %2902 = vmatpush1.msra.mxu0 0.0
    %2903 = vmatprep.subr.mxu0 0.0
    %2904 = vmatpush1.msra.mxu0 0.0
    %2905 = vmatprep.subr.mxu0 0.0
    %2906 = vmatpush1.msra.mxu0 0.0
    %2907 = vmatprep.subr.mxu0 0.0
    %2908 = vmatpush1.msra.mxu0 0.0
    %2909 = vmatprep.subr.mxu0 0.0
    %2910 = vmatpush1.msra.mxu0 0.0
    %2911 = vmatprep.subr.mxu0 0.0
    %2912 = vmatpush1.msra.mxu0 0.0
    %2913 = vmatprep.subr.mxu0 0.0
    %2914 = vmatpush1.msra.mxu0 0.0
    %2915 = vmatprep.subr.mxu0 0.0
    %2916 = vmatpush1.msra.mxu0 0.0
    %2917 = vmatprep.subr.mxu0 0.0
    %2918 = vmatpush1.msra.mxu0 0.0
    %2919 = vmatprep.subr.mxu0 0.0
    %2920 = vmatpush1.msra.mxu0 0.0
    %2921 = vmatprep.subr.mxu0 0.0
    %2922 = vmatpush1.msra.mxu0 0.0
    %2923 = vmatprep.subr.mxu0 0.0
    %2924 = vmatpush1.msra.mxu0 0.0
    %2925 = vmatprep.subr.mxu0 0.0
    %2926 = vmatpush1.msra.mxu0 0.0
    %2927 = vmatprep.subr.mxu0 0.0
    %2928 = vmatpush1.msra.mxu0 0.0
    %2929 = vmatprep.subr.mxu0 0.0
    %2930 = vmatpush1.msra.mxu0 0.0
    %2931 = vmatprep.subr.mxu0 0.0
    %2932 = vmatpush1.msra.mxu0 0.0
    %2933 = vmatprep.subr.mxu0 0.0
    %2934 = vmatpush1.msra.mxu0 0.0
    %2935 = vmatprep.subr.mxu0 0.0
    %2936 = vmatpush1.msra.mxu0 0.0
    %2937 = vmatprep.subr.mxu0 0.0
    %2938 = vmatpush1.msra.mxu0 0.0
    %2939 = vmatprep.subr.mxu0 0.0
    %2940 = vmatpush1.msra.mxu0 0.0
    %2941 = vmatprep.subr.mxu0 0.0
    %2942 = vmatpush1.msra.mxu0 0.0
    %2943 = vmatprep.subr.mxu0 0.0
    %2944 = vmatpush1.msra.mxu0 0.0
    %2945 = vmatprep.subr.mxu0 0.0
    %2946 = vmatpush1.msra.mxu0 0.0
    %2947 = vmatprep.subr.mxu0 0.0
    %2948 = vmatpush1.msra.mxu0 0.0
    %2949 = vmatprep.subr.mxu0 0.0
    %2950 = vmatpush1.msra.mxu0 0.0
    %2951 = vmatprep.subr.mxu0 0.0
    %2952 = vmatpush1.msra.mxu0 0.0
    %2953 = vmatprep.subr.mxu0 0.0
    %2954 = vmatpush1.msra.mxu0 0.0
    %2955 = vmatprep.subr.mxu0 0.0
    %2956 = vmatpush1.msra.mxu0 0.0
    %2957 = vmatprep.subr.mxu0 0.0
    %2958 = vmatpush1.msra.mxu0 0.0
    %2959 = vmatprep.subr.mxu0 0.0
    %2960 = vmatpush1.msra.mxu0 0.0
    %2961 = vmatprep.subr.mxu0 0.0
    %2962 = vmatpush1.msra.mxu0 0.0
    %2963 = vmatprep.mubr.f32.mxu0 0.0
    %2964 = vmatmul.mubr.f32.gmra.mrb[0].mxu0 %v2897
    %v2965 = vpop.f32.mrb[0].mxu0
    %v2966 = vadd.f32 0.0, %v2965
    %v2967 = vpop.f32.mrb[0].mxu0
    %2968 = vdwg.mxu0
    %2969 = vrot.lane.b32.xlu0 %v1963, 104
    %v2970 = vpop.permute.xlu0 %2969
    %2971 = vrot.lane.b32.xlu0 %v1963, 72
    %v2972 = vpop.permute.xlu0 %2971
    %v2973 = vsel %vm243, %v2970, 0
    %v2975 = vsel %vm243, %v2972, 0
    %2977 = vmatprep.subr.mxu0 0.0
    %2978 = vmatpush1.xpose.msra.mxu0 %v2975
    %2979 = vmatprep.subr.mxu0 0.0
    %2980 = vmatpush1.xpose.msra.mxu0 0.0
    %2981 = vmatprep.subr.mxu0 0.0
    %2982 = vmatpush1.xpose.msra.mxu0 0.0
    %2983 = vmatprep.subr.mxu0 0.0
    %2984 = vmatpush1.xpose.msra.mxu0 0.0
    %2985 = vmatprep.subr.mxu0 0.0
    %2986 = vmatpush1.xpose.msra.mxu0 0.0
    %2987 = vmatprep.subr.mxu0 0.0
    %2988 = vmatpush1.xpose.msra.mxu0 0.0
    %2989 = vmatprep.subr.mxu0 0.0
    %2990 = vmatpush1.xpose.msra.mxu0 0.0
    %2991 = vmatprep.subr.mxu0 0.0
    %2992 = vmatpush1.xpose.msra.mxu0 0.0
    %2993 = vmatprep.subr.mxu0 0.0
    %2994 = vmatpush1.xpose.msra.mxu0 0.0
    %2995 = vmatprep.subr.mxu0 0.0
    %2996 = vmatpush1.xpose.msra.mxu0 0.0
    %2997 = vmatprep.subr.mxu0 0.0
    %2998 = vmatpush1.xpose.msra.mxu0 0.0
    %2999 = vmatprep.subr.mxu0 0.0
    %3000 = vmatpush1.xpose.msra.mxu0 0.0
    %3001 = vmatprep.subr.mxu0 0.0
    %3002 = vmatpush1.xpose.msra.mxu0 0.0
    %3003 = vmatprep.subr.mxu0 0.0
    %3004 = vmatpush1.xpose.msra.mxu0 0.0
    %3005 = vmatprep.subr.mxu0 0.0
    %3006 = vmatpush1.xpose.msra.mxu0 0.0
    %3007 = vmatprep.subr.mxu0 0.0
    %3008 = vmatpush1.xpose.msra.mxu0 0.0
    %3009 = vmatprep.subr.mxu0 0.0
    %3010 = vmatpush1.xpose.msra.mxu0 0.0
    %3011 = vmatprep.subr.mxu0 0.0
    %3012 = vmatpush1.xpose.msra.mxu0 0.0
    %3013 = vmatprep.subr.mxu0 0.0
    %3014 = vmatpush1.xpose.msra.mxu0 0.0
    %3015 = vmatprep.subr.mxu0 0.0
    %3016 = vmatpush1.xpose.msra.mxu0 0.0
    %3017 = vmatprep.subr.mxu0 0.0
    %3018 = vmatpush1.xpose.msra.mxu0 0.0
    %3019 = vmatprep.subr.mxu0 0.0
    %3020 = vmatpush1.xpose.msra.mxu0 0.0
    %3021 = vmatprep.subr.mxu0 0.0
    %3022 = vmatpush1.xpose.msra.mxu0 0.0
    %3023 = vmatprep.subr.mxu0 0.0
    %3024 = vmatpush1.xpose.msra.mxu0 0.0
    %3025 = vmatprep.subr.mxu0 0.0
    %3026 = vmatpush1.xpose.msra.mxu0 0.0
    %3027 = vmatprep.subr.mxu0 0.0
    %3028 = vmatpush1.xpose.msra.mxu0 0.0
    %3029 = vmatprep.subr.mxu0 0.0
    %3030 = vmatpush1.xpose.msra.mxu0 0.0
    %3031 = vmatprep.subr.mxu0 0.0
    %3032 = vmatpush1.xpose.msra.mxu0 0.0
    %3033 = vmatprep.subr.mxu0 0.0
    %3034 = vmatpush1.xpose.msra.mxu0 0.0
    %3035 = vmatprep.subr.mxu0 0.0
    %3036 = vmatpush1.xpose.msra.mxu0 0.0
    %3037 = vmatprep.subr.mxu0 0.0
    %3038 = vmatpush1.xpose.msra.mxu0 0.0
    %3039 = vmatprep.subr.mxu0 0.0
    %3040 = vmatpush1.xpose.msra.mxu0 0.0
    %3041 = vmatprep.mubr.f32.mxu0 0.0
    %3042 = vmatmul.mubr.f32.gmra.mrb[0].mxu0 %v2973
    %v3043 = vpop.f32.mrb[0].mxu0
    %v3044 = vadd.f32 0.0, %v3043
    %v3045 = vpop.f32.mrb[0].mxu0
    %3046 = vdwg.mxu0
    %3047 = vrot.lane.b32.xlu0 %v1966, 104
    %v3048 = vpop.permute.xlu0 %3047
    %3049 = vrot.lane.b32.xlu0 %v1966, 72
    %v3050 = vpop.permute.xlu0 %3049
    %v3051 = vsel %vm243, %v3048, 0
    %v3053 = vsel %vm243, %v3050, 0
    %3055 = vmatprep.subr.mxu0 0.0
    %3056 = vmatpush1.xpose.msra.mxu0 %v3053
    %3057 = vmatprep.subr.mxu0 0.0
    %3058 = vmatpush1.xpose.msra.mxu0 0.0
    %3059 = vmatprep.subr.mxu0 0.0
    %3060 = vmatpush1.xpose.msra.mxu0 0.0
    %3061 = vmatprep.subr.mxu0 0.0
    %3062 = vmatpush1.xpose.msra.mxu0 0.0
    %3063 = vmatprep.subr.mxu0 0.0
    %3064 = vmatpush1.xpose.msra.mxu0 0.0
    %3065 = vmatprep.subr.mxu0 0.0
    %3066 = vmatpush1.xpose.msra.mxu0 0.0
    %3067 = vmatprep.subr.mxu0 0.0
    %3068 = vmatpush1.xpose.msra.mxu0 0.0
    %3069 = vmatprep.subr.mxu0 0.0
    %3070 = vmatpush1.xpose.msra.mxu0 0.0
    %3071 = vmatprep.subr.mxu0 0.0
    %3072 = vmatpush1.xpose.msra.mxu0 0.0
    %3073 = vmatprep.subr.mxu0 0.0
    %3074 = vmatpush1.xpose.msra.mxu0 0.0
    %3075 = vmatprep.subr.mxu0 0.0
    %3076 = vmatpush1.xpose.msra.mxu0 0.0
    %3077 = vmatprep.subr.mxu0 0.0
    %3078 = vmatpush1.xpose.msra.mxu0 0.0
    %3079 = vmatprep.subr.mxu0 0.0
    %3080 = vmatpush1.xpose.msra.mxu0 0.0
    %3081 = vmatprep.subr.mxu0 0.0
    %3082 = vmatpush1.xpose.msra.mxu0 0.0
    %3083 = vmatprep.subr.mxu0 0.0
    %3084 = vmatpush1.xpose.msra.mxu0 0.0
    %3085 = vmatprep.subr.mxu0 0.0
    %3086 = vmatpush1.xpose.msra.mxu0 0.0
    %3087 = vmatprep.subr.mxu0 0.0
    %3088 = vmatpush1.xpose.msra.mxu0 0.0
    %3089 = vmatprep.subr.mxu0 0.0
    %3090 = vmatpush1.xpose.msra.mxu0 0.0
    %3091 = vmatprep.subr.mxu0 0.0
    %3092 = vmatpush1.xpose.msra.mxu0 0.0
    %3093 = vmatprep.subr.mxu0 0.0
    %3094 = vmatpush1.xpose.msra.mxu0 0.0
    %3095 = vmatprep.subr.mxu0 0.0
    %3096 = vmatpush1.xpose.msra.mxu0 0.0
    %3097 = vmatprep.subr.mxu0 0.0
    %3098 = vmatpush1.xpose.msra.mxu0 0.0
    %3099 = vmatprep.subr.mxu0 0.0
    %3100 = vmatpush1.xpose.msra.mxu0 0.0
    %3101 = vmatprep.subr.mxu0 0.0
    %3102 = vmatpush1.xpose.msra.mxu0 0.0
    %3103 = vmatprep.subr.mxu0 0.0
    %3104 = vmatpush1.xpose.msra.mxu0 0.0
    %3105 = vmatprep.subr.mxu0 0.0
    %3106 = vmatpush1.xpose.msra.mxu0 0.0
    %3107 = vmatprep.subr.mxu0 0.0
    %3108 = vmatpush1.xpose.msra.mxu0 0.0
    %3109 = vmatprep.subr.mxu0 0.0
    %3110 = vmatpush1.xpose.msra.mxu0 0.0
    %3111 = vmatprep.subr.mxu0 0.0
    %3112 = vmatpush1.xpose.msra.mxu0 0.0
    %3113 = vmatprep.subr.mxu0 0.0
    %3114 = vmatpush1.xpose.msra.mxu0 0.0
    %3115 = vmatprep.subr.mxu0 0.0
    %3116 = vmatpush1.xpose.msra.mxu0 0.0
    %3117 = vmatprep.subr.mxu0 0.0
    %3118 = vmatpush1.xpose.msra.mxu0 0.0
    %3119 = vmatprep.mubr.f32.mxu0 0.0
    %3120 = vmatmul.mubr.f32.gmra.mrb[0].mxu0 %v3051
    %v3121 = vpop.f32.mrb[0].mxu0
    %v3122 = vadd.f32 0.0, %v3121
    %v3123 = vpop.f32.mrb[0].mxu0
    %3124 = vdwg.mxu0
    %v3125 = vmul.f32 %v3044, 0.35355338
    %v3126 = vmul.f32 %v3122, 0.35355338
    %v3127 = vsel %vm398, %v3125, -1e+30
    %v3128 = vsel %vm398, %v3126, -1e+30
    %v3129 = vsel %vm243, %v3127, -inf
    %3130 = vmax.xlane.f32.xlu0 %v3129
    %v3131 = vpop.xlane.xlu0 %3130
    %v3132 = vsel %vm243, %v3128, -inf
    %3133 = vmax.xlane.f32.xlu0 %v3132
    %v3134 = vpop.xlane.xlu0 %3133
    %v3135 = vsub.f32 %v3127, %v3131
    %v3136 = vsub.f32 %v3128, %v3134
    %v3137 = vmul.f32 %v3135, 1.442695
    %v3138 = vpow.pop %v3137
    %v3139 = vmul.f32 %v3136, 1.442695
    %v3140 = vpow.pop %v3139
    %v3141 = vsel %vm243, %v3138, 0.0
    %3142 = vadd.xlane.f32.xlu0 %v3141
    %v3143 = vpop.xlane.xlu0 %3142
    %v3144 = vsel %vm243, %v3140, 0.0
    %3145 = vadd.xlane.f32.xlu0 %v3144
    %v3146 = vpop.xlane.xlu0 %3145
    %v3147 = vrcp.pop %v3143
    %v3148 = vrcp.pop %v3146
    %v3149 = vmul.f32 %v3138, %v3147
    %v3150 = vmul.f32 %v3140, %v3148
    %3151 = vrot.lane.b32.xlu0 %v1963, 40
    %v3152 = vpop.permute.xlu0 %3151
    %v3155 = vsel %vm243, %v3149, 0
    %3157 = vmatprep.subr.mxu0 0.0
    %3158 = vmatpush1.msra.mxu0 %v3152
    %3159 = vmatprep.subr.mxu0 0.0
    %3160 = vmatpush1.msra.mxu0 0.0
    %3161 = vmatprep.subr.mxu0 0.0
    %3162 = vmatpush1.msra.mxu0 0.0
    %3163 = vmatprep.subr.mxu0 0.0
    %3164 = vmatpush1.msra.mxu0 0.0
    %3165 = vmatprep.subr.mxu0 0.0
    %3166 = vmatpush1.msra.mxu0 0.0
    %3167 = vmatprep.subr.mxu0 0.0
    %3168 = vmatpush1.msra.mxu0 0.0
    %3169 = vmatprep.subr.mxu0 0.0
    %3170 = vmatpush1.msra.mxu0 0.0
    %3171 = vmatprep.subr.mxu0 0.0
    %3172 = vmatpush1.msra.mxu0 0.0
    %3173 = vmatprep.subr.mxu0 0.0
    %3174 = vmatpush1.msra.mxu0 0.0
    %3175 = vmatprep.subr.mxu0 0.0
    %3176 = vmatpush1.msra.mxu0 0.0
    %3177 = vmatprep.subr.mxu0 0.0
    %3178 = vmatpush1.msra.mxu0 0.0
    %3179 = vmatprep.subr.mxu0 0.0
    %3180 = vmatpush1.msra.mxu0 0.0
    %3181 = vmatprep.subr.mxu0 0.0
    %3182 = vmatpush1.msra.mxu0 0.0
    %3183 = vmatprep.subr.mxu0 0.0
    %3184 = vmatpush1.msra.mxu0 0.0
    %3185 = vmatprep.subr.mxu0 0.0
    %3186 = vmatpush1.msra.mxu0 0.0
    %3187 = vmatprep.subr.mxu0 0.0
    %3188 = vmatpush1.msra.mxu0 0.0
    %3189 = vmatprep.subr.mxu0 0.0
    %3190 = vmatpush1.msra.mxu0 0.0
    %3191 = vmatprep.subr.mxu0 0.0
    %3192 = vmatpush1.msra.mxu0 0.0
    %3193 = vmatprep.subr.mxu0 0.0
    %3194 = vmatpush1.msra.mxu0 0.0
    %3195 = vmatprep.subr.mxu0 0.0
    %3196 = vmatpush1.msra.mxu0 0.0
    %3197 = vmatprep.subr.mxu0 0.0
    %3198 = vmatpush1.msra.mxu0 0.0
    %3199 = vmatprep.subr.mxu0 0.0
    %3200 = vmatpush1.msra.mxu0 0.0
    %3201 = vmatprep.subr.mxu0 0.0
    %3202 = vmatpush1.msra.mxu0 0.0
    %3203 = vmatprep.subr.mxu0 0.0
    %3204 = vmatpush1.msra.mxu0 0.0
    %3205 = vmatprep.subr.mxu0 0.0
    %3206 = vmatpush1.msra.mxu0 0.0
    %3207 = vmatprep.subr.mxu0 0.0
    %3208 = vmatpush1.msra.mxu0 0.0
    %3209 = vmatprep.subr.mxu0 0.0
    %3210 = vmatpush1.msra.mxu0 0.0
    %3211 = vmatprep.subr.mxu0 0.0
    %3212 = vmatpush1.msra.mxu0 0.0
    %3213 = vmatprep.subr.mxu0 0.0
    %3214 = vmatpush1.msra.mxu0 0.0
    %3215 = vmatprep.subr.mxu0 0.0
    %3216 = vmatpush1.msra.mxu0 0.0
    %3217 = vmatprep.subr.mxu0 0.0
    %3218 = vmatpush1.msra.mxu0 0.0
    %3219 = vmatprep.subr.mxu0 0.0
    %3220 = vmatpush1.msra.mxu0 0.0
    %3221 = vmatprep.mubr.f32.mxu0 0.0
    %3222 = vmatmul.mubr.f32.gmra.mrb[0].mxu0 %v3155
    %v3223 = vpop.f32.mrb[0].mxu0
    %v3224 = vadd.f32 0.0, %v3223
    %v3225 = vpop.f32.mrb[0].mxu0
    %3226 = vdwg.mxu0
    %3227 = vrot.lane.b32.xlu0 %v1966, 40
    %v3228 = vpop.permute.xlu0 %3227
    %v3231 = vsel %vm243, %v3150, 0
    %3233 = vmatprep.subr.mxu0 0.0
    %3234 = vmatpush1.msra.mxu0 %v3228
    %3235 = vmatprep.subr.mxu0 0.0
    %3236 = vmatpush1.msra.mxu0 0.0
    %3237 = vmatprep.subr.mxu0 0.0
    %3238 = vmatpush1.msra.mxu0 0.0
    %3239 = vmatprep.subr.mxu0 0.0
    %3240 = vmatpush1.msra.mxu0 0.0
    %3241 = vmatprep.subr.mxu0 0.0
    %3242 = vmatpush1.msra.mxu0 0.0
    %3243 = vmatprep.subr.mxu0 0.0
    %3244 = vmatpush1.msra.mxu0 0.0
    %3245 = vmatprep.subr.mxu0 0.0
    %3246 = vmatpush1.msra.mxu0 0.0
    %3247 = vmatprep.subr.mxu0 0.0
    %3248 = vmatpush1.msra.mxu0 0.0
    %3249 = vmatprep.subr.mxu0 0.0
    %3250 = vmatpush1.msra.mxu0 0.0
    %3251 = vmatprep.subr.mxu0 0.0
    %3252 = vmatpush1.msra.mxu0 0.0
    %3253 = vmatprep.subr.mxu0 0.0
    %3254 = vmatpush1.msra.mxu0 0.0
    %3255 = vmatprep.subr.mxu0 0.0
    %3256 = vmatpush1.msra.mxu0 0.0
    %3257 = vmatprep.subr.mxu0 0.0
    %3258 = vmatpush1.msra.mxu0 0.0
    %3259 = vmatprep.subr.mxu0 0.0
    %3260 = vmatpush1.msra.mxu0 0.0
    %3261 = vmatprep.subr.mxu0 0.0
    %3262 = vmatpush1.msra.mxu0 0.0
    %3263 = vmatprep.subr.mxu0 0.0
    %3264 = vmatpush1.msra.mxu0 0.0
    %3265 = vmatprep.subr.mxu0 0.0
    %3266 = vmatpush1.msra.mxu0 0.0
    %3267 = vmatprep.subr.mxu0 0.0
    %3268 = vmatpush1.msra.mxu0 0.0
    %3269 = vmatprep.subr.mxu0 0.0
    %3270 = vmatpush1.msra.mxu0 0.0
    %3271 = vmatprep.subr.mxu0 0.0
    %3272 = vmatpush1.msra.mxu0 0.0
    %3273 = vmatprep.subr.mxu0 0.0
    %3274 = vmatpush1.msra.mxu0 0.0
    %3275 = vmatprep.subr.mxu0 0.0
    %3276 = vmatpush1.msra.mxu0 0.0
    %3277 = vmatprep.subr.mxu0 0.0
    %3278 = vmatpush1.msra.mxu0 0.0
    %3279 = vmatprep.subr.mxu0 0.0
    %3280 = vmatpush1.msra.mxu0 0.0
    %3281 = vmatprep.subr.mxu0 0.0
    %3282 = vmatpush1.msra.mxu0 0.0
    %3283 = vmatprep.subr.mxu0 0.0
    %3284 = vmatpush1.msra.mxu0 0.0
    %3285 = vmatprep.subr.mxu0 0.0
    %3286 = vmatpush1.msra.mxu0 0.0
    %3287 = vmatprep.subr.mxu0 0.0
    %3288 = vmatpush1.msra.mxu0 0.0
    %3289 = vmatprep.subr.mxu0 0.0
    %3290 = vmatpush1.msra.mxu0 0.0
    %3291 = vmatprep.subr.mxu0 0.0
    %3292 = vmatpush1.msra.mxu0 0.0
    %3293 = vmatprep.subr.mxu0 0.0
    %3294 = vmatpush1.msra.mxu0 0.0
    %3295 = vmatprep.subr.mxu0 0.0
    %3296 = vmatpush1.msra.mxu0 0.0
    %3297 = vmatprep.mubr.f32.mxu0 0.0
    %3298 = vmatmul.mubr.f32.gmra.mrb[0].mxu0 %v3231
    %v3299 = vpop.f32.mrb[0].mxu0
    %v3300 = vadd.f32 0.0, %v3299
    %v3301 = vpop.f32.mrb[0].mxu0
    %3302 = vdwg.mxu0
    %3305 = vrot.lane.b32.xlu0 %v2556, 8
    %v3306 = vpop.permute.xlu0 %3305
    %3307 = vrot.lane.b32.xlu0 %v2632, 8
    %v3308 = vpop.permute.xlu0 %3307
    %3313 = vrot.lane.b32.xlu0 %v2890, 16
    %v3314 = vpop.permute.xlu0 %3313
    %3315 = vrot.lane.b32.xlu0 %v2966, 16
    %v3316 = vpop.permute.xlu0 %3315
    %3321 = vrot.lane.b32.xlu0 %v3224, 24
    %v3322 = vpop.permute.xlu0 %3321
    %3323 = vrot.lane.b32.xlu0 %v3300, 24
    %v3324 = vpop.permute.xlu0 %3323
    %v3327 = vsel %vm243, %v2222, %v3306
    %v3328 = vsel %vm243, %v2298, %v3308
    %v3329 = vsel %vm83, %v3327, %v3314
    %v3330 = vsel %vm83, %v3328, %v3316
    %v3331 = vsel %vm1605, %v3329, %v3322
    %v3332 = vsel %vm1605, %v3330, %v3324
    %s3333 = scalar_lea.vmem %s12, 32
    %v3334 = vld [vmem:[%s3333] sm:$0xff]
    %v3335 = vld [vmem:[%s3333 + $0x8] sm:$0xff]
    %v3336 = vld [vmem:[%s3333 + $0x10] sm:$0xff]
    %v3337 = vld [vmem:[%s3333 + $0x18] sm:$0xff]
    %s3338 = scalar_lea.vmem %s13, 1
    %v3339 = vld [vmem:[%s3338] sm:$0x1]
    %v3340 = vpack.c.bf16 %v3332, %v3331
    %v3341 = vpack.c.bf16 %v3335, %v3334
    %v3342 = vpack.c.bf16 %v3337, %v3336
    %v3344 = vlaneseq
    %v3345 = vshrl.u32 %v3344, 7
    %v3346 = vsub.s32 0, %v3345
    %v3347 = vrot.slane %v3339, %v3346
    %v3350 = vsel %vm138, %v3340, 0
    %3352 = vmatprep.subr.bf16.mxu0 0
    %3353 = vmatpush1.bf16.msra.mxu0 %v3341
    %3354 = vmatprep.subr.bf16.mxu0 0
    %3355 = vmatpush1.bf16.msra.mxu0 %v3342
    %3356 = vmatprep.subr.bf16.mxu0 0
    %3357 = vmatpush1.bf16.msra.mxu0 0
    %3358 = vmatprep.subr.bf16.mxu0 0
    %3359 = vmatpush1.bf16.msra.mxu0 0
    %3360 = vmatprep.subr.bf16.mxu0 0
    %3361 = vmatpush1.bf16.msra.mxu0 0
    %3362 = vmatprep.subr.bf16.mxu0 0
    %3363 = vmatpush1.bf16.msra.mxu0 0
    %3364 = vmatprep.subr.bf16.mxu0 0
    %3365 = vmatpush1.bf16.msra.mxu0 0
    %3366 = vmatprep.subr.bf16.mxu0 0
    %3367 = vmatpush1.bf16.msra.mxu0 0
    %3368 = vmatprep.subr.bf16.mxu0 0
    %3369 = vmatpush1.bf16.msra.mxu0 0
    %3370 = vmatprep.subr.bf16.mxu0 0
    %3371 = vmatpush1.bf16.msra.mxu0 0
    %3372 = vmatprep.subr.bf16.mxu0 0
    %3373 = vmatpush1.bf16.msra.mxu0 0
    %3374 = vmatprep.subr.bf16.mxu0 0
    %3375 = vmatpush1.bf16.msra.mxu0 0
    %3376 = vmatprep.subr.bf16.mxu0 0
    %3377 = vmatpush1.bf16.msra.mxu0 0
    %3378 = vmatprep.subr.bf16.mxu0 0
    %3379 = vmatpush1.bf16.msra.mxu0 0
    %3380 = vmatprep.subr.bf16.mxu0 0
    %3381 = vmatpush1.bf16.msra.mxu0 0
    %3382 = vmatprep.subr.bf16.mxu0 0
    %3383 = vmatpush1.bf16.msra.mxu0 0
    %3384 = vmatprep.mubr.bf16.mxu0 0
    %3385 = vmatmul.mubr.bf16.gmra.mrb[0].mxu0 %v3350
    %v3386 = vpop.f32.mrb[0].mxu0
    %v3387 = vadd.f32 %v3347, %v3386
    %v3388 = vpop.f32.mrb[0].mxu0
    %v3389 = vpop.f32.mrb[0].mxu0
    %v3390 = vadd.f32 %v3347, %v3389
    %v3391 = vpop.f32.mrb[0].mxu0
    %3392 = vdwg.mxu0
    %v3393 = vadd.f32 %v1861, %v3387
    %v3394 = vadd.f32 %v1862, %v3390
    %s3395 = scalar_lea.vmem %s14, 1
    %v3396 = vld [vmem:[%s3395] sm:$0x1]
    %s3397 = scalar_lea.vmem %s15, 1
    %v3398 = vld [vmem:[%s3397] sm:$0x1]
    %v3399 = vsel %vm138, %v3393, 0.0
    %3400 = vadd.xlane.f32.xlu0 %v3399
    %v3401 = vpop.xlane.xlu0 %3400
    %v3402 = vsel %vm138, %v3394, 0.0
    %3403 = vadd.xlane.f32.xlu0 %v3402
    %v3404 = vpop.xlane.xlu0 %3403
    %v3405 = vmul.f32 %v3401, %v145
    %v3406 = vmul.f32 %v3404, %v145
    %v3407 = vsub.f32 %v3393, %v3405
    %v3408 = vsub.f32 %v3394, %v3406
    %v3409 = vmul.f32 %v3407, %v3407
    %v3410 = vmul.f32 %v3408, %v3408
    %v3411 = vsel %vm138, %v3409, 0.0
    %3412 = vadd.xlane.f32.xlu0 %v3411
    %v3413 = vpop.xlane.xlu0 %3412
    %v3414 = vsel %vm138, %v3410, 0.0
    %3415 = vadd.xlane.f32.xlu0 %v3414
    %v3416 = vpop.xlane.xlu0 %3415
    %v3417 = vmul.f32 %v3413, %v145
    %v3418 = vmul.f32 %v3416, %v145
    %v3419 = vadd.f32 %v3417, 1e-05
    %v3420 = vadd.f32 %v3418, 1e-05
    %v3421 = vrsqrt.pop %v3419
    %v3422 = vrsqrt.pop %v3420
    %v3423 = vmul.f32 %v3407, %v3421
    %v3424 = vmul.f32 %v3408, %v3422
    %v3426 = vlaneseq
    %v3427 = vshrl.u32 %v3426, 7
    %v3428 = vsub.s32 0, %v3427
    %v3429 = vrot.slane %v3396, %v3428
    %v3431 = vmul.f32 %v3423, %v3429
    %v3432 = vmul.f32 %v3424, %v3429
    %v3434 = vlaneseq
    %v3435 = vshrl.u32 %v3434, 7
    %v3436 = vsub.s32 0, %v3435
    %v3437 = vrot.slane %v3398, %v3436
    %v3439 = vadd.f32 %v3431, %v3437
    %v3440 = vadd.f32 %v3432, %v3437
    %s3441 = scalar_lea.vmem %s16, 32
    %v3442 = vld [vmem:[%s3441] sm:$0xff]
    %v3443 = vld [vmem:[%s3441 + $0x8] sm:$0xff]
    %v3444 = vld [vmem:[%s3441 + $0x10] sm:$0xff]
    %v3445 = vld [vmem:[%s3441 + $0x18] sm:$0xff]
    %s3446 = scalar_lea.vmem %s17, 1
    %v3447 = vld [vmem:[%s3446] sm:$0x1]
    %v3448 = vpack.c.bf16 %v3440, %v3439
    %v3449 = vpack.c.bf16 %v3443, %v3442
    %v3450 = vpack.c.bf16 %v3445, %v3444
    %v3452 = vlaneseq
    %v3453 = vshrl.u32 %v3452, 7
    %v3454 = vsub.s32 0, %v3453
    %v3455 = vrot.slane %v3447, %v3454
    %v3458 = vsel %vm138, %v3448, 0
    %3460 = vmatprep.subr.bf16.mxu0 0
    %3461 = vmatpush1.bf16.msra.mxu0 %v3449
    %3462 = vmatprep.subr.bf16.mxu0 0
    %3463 = vmatpush1.bf16.msra.mxu0 %v3450
    %3464 = vmatprep.subr.bf16.mxu0 0
    %3465 = vmatpush1.bf16.msra.mxu0 0
    %3466 = vmatprep.subr.bf16.mxu0 0
    %3467 = vmatpush1.bf16.msra.mxu0 0
    %3468 = vmatprep.subr.bf16.mxu0 0
    %3469 = vmatpush1.bf16.msra.mxu0 0
    %3470 = vmatprep.subr.bf16.mxu0 0
    %3471 = vmatpush1.bf16.msra.mxu0 0
    %3472 = vmatprep.subr.bf16.mxu0 0
    %3473 = vmatpush1.bf16.msra.mxu0 0
    %3474 = vmatprep.subr.bf16.mxu0 0
    %3475 = vmatpush1.bf16.msra.mxu0 0
    %3476 = vmatprep.subr.bf16.mxu0 0
    %3477 = vmatpush1.bf16.msra.mxu0 0
    %3478 = vmatprep.subr.bf16.mxu0 0
    %3479 = vmatpush1.bf16.msra.mxu0 0
    %3480 = vmatprep.subr.bf16.mxu0 0
    %3481 = vmatpush1.bf16.msra.mxu0 0
    %3482 = vmatprep.subr.bf16.mxu0 0
    %3483 = vmatpush1.bf16.msra.mxu0 0
    %3484 = vmatprep.subr.bf16.mxu0 0
    %3485 = vmatpush1.bf16.msra.mxu0 0
    %3486 = vmatprep.subr.bf16.mxu0 0
    %3487 = vmatpush1.bf16.msra.mxu0 0
    %3488 = vmatprep.subr.bf16.mxu0 0
    %3489 = vmatpush1.bf16.msra.mxu0 0
    %3490 = vmatprep.subr.bf16.mxu0 0
    %3491 = vmatpush1.bf16.msra.mxu0 0
    %3492 = vmatprep.mubr.bf16.mxu0 0
    %3493 = vmatmul.mubr.bf16.gmra.mrb[0].mxu0 %v3458
    %v3494 = vpop.f32.mrb[0].mxu0
    %v3495 = vadd.f32 %v3455, %v3494
    %v3496 = vpop.f32.mrb[0].mxu0
    %v3497 = vpop.f32.mrb[0].mxu0
    %v3498 = vadd.f32 %v3455, %v3497
    %v3499 = vpop.f32.mrb[0].mxu0
    %3500 = vdwg.mxu0
    %v3501 = vmul.f32 %v3495, 0.5
    %v3502 = vmul.f32 %v3498, 0.5
    %v3503 = vmul.f32 %v3495, 0.044715
    %v3504 = vmul.f32 %v3498, 0.044715
    %v3505 = vmul.f32 %v3503, %v3495
    %v3506 = vmul.f32 %v3504, %v3498
    %v3507 = vmul.f32 %v3505, %v3495
    %v3508 = vmul.f32 %v3506, %v3498
    %v3509 = vadd.f32 %v3495, %v3507
    %v3510 = vadd.f32 %v3498, %v3508
    %v3511 = vmul.f32 %v3509, 0.7978846
    %v3512 = vmul.f32 %v3510, 0.7978846
    %v3513 = vtanh.pop %v3511
    %v3514 = vtanh.pop %v3512
    %v3515 = vadd.f32 %v3513, 1.0
    %v3516 = vadd.f32 %v3514, 1.0
    %v3517 = vmul.f32 %v3501, %v3515
    %v3518 = vmul.f32 %v3502, %v3516
    %s3519 = scalar_lea.vmem %s18, 128
    %v3520 = vld [vmem:[%s3519] sm:$0xff]
    %v3521 = vld [vmem:[%s3519 + $0x8] sm:$0xff]
    %v3522 = vld [vmem:[%s3519 + $0x10] sm:$0xff]
    %v3523 = vld [vmem:[%s3519 + $0x18] sm:$0xff]
    %v3524 = vld [vmem:[%s3519 + $0x20] sm:$0xff]
    %v3525 = vld [vmem:[%s3519 + $0x28] sm:$0xff]
    %v3526 = vld [vmem:[%s3519 + $0x30] sm:$0xff]
    %v3527 = vld [vmem:[%s3519 + $0x38] sm:$0xff]
    %v3528 = vld [vmem:[%s3519 + $0x40] sm:$0xff]
    %v3529 = vld [vmem:[%s3519 + $0x48] sm:$0xff]
    %v3530 = vld [vmem:[%s3519 + $0x50] sm:$0xff]
    %v3531 = vld [vmem:[%s3519 + $0x58] sm:$0xff]
    %v3532 = vld [vmem:[%s3519 + $0x60] sm:$0xff]
    %v3533 = vld [vmem:[%s3519 + $0x68] sm:$0xff]
    %v3534 = vld [vmem:[%s3519 + $0x70] sm:$0xff]
    %v3535 = vld [vmem:[%s3519 + $0x78] sm:$0xff]
    %s3536 = scalar_lea.vmem %s19, 1
    %v3537 = vld [vmem:[%s3536] sm:$0x1]
    %v3538 = vpack.c.bf16 %v3518, %v3517
    %v3539 = vpack.c.bf16 %v3521, %v3520
    %v3540 = vpack.c.bf16 %v3523, %v3522
    %v3541 = vpack.c.bf16 %v3525, %v3524
    %v3542 = vpack.c.bf16 %v3527, %v3526
    %v3543 = vpack.c.bf16 %v3529, %v3528
    %v3544 = vpack.c.bf16 %v3531, %v3530
    %v3545 = vpack.c.bf16 %v3533, %v3532
    %v3546 = vpack.c.bf16 %v3535, %v3534
    %v3548 = vlaneseq
    %v3549 = vshrl.u32 %v3548, 7
    %v3550 = vsub.s32 0, %v3549
    %v3551 = vrot.slane %v3537, %v3550
    %3553 = vmatprep.subr.bf16.mxu0 0
    %3554 = vmatpush1.bf16.msra.mxu0 %v3539
    %3555 = vmatprep.subr.bf16.mxu0 0
    %3556 = vmatpush1.bf16.msra.mxu0 %v3540
    %3557 = vmatprep.subr.bf16.mxu0 0
    %3558 = vmatpush1.bf16.msra.mxu0 %v3541
    %3559 = vmatprep.subr.bf16.mxu0 0
    %3560 = vmatpush1.bf16.msra.mxu0 %v3542
    %3561 = vmatprep.subr.bf16.mxu0 0
    %3562 = vmatpush1.bf16.msra.mxu0 %v3543
    %3563 = vmatprep.subr.bf16.mxu0 0
    %3564 = vmatpush1.bf16.msra.mxu0 %v3544
    %3565 = vmatprep.subr.bf16.mxu0 0
    %3566 = vmatpush1.bf16.msra.mxu0 %v3545
    %3567 = vmatprep.subr.bf16.mxu0 0
    %3568 = vmatpush1.bf16.msra.mxu0 %v3546
    %3569 = vmatprep.subr.bf16.mxu0 0
    %3570 = vmatpush1.bf16.msra.mxu0 0
    %3571 = vmatprep.subr.bf16.mxu0 0
    %3572 = vmatpush1.bf16.msra.mxu0 0
    %3573 = vmatprep.subr.bf16.mxu0 0
    %3574 = vmatpush1.bf16.msra.mxu0 0
    %3575 = vmatprep.subr.bf16.mxu0 0
    %3576 = vmatpush1.bf16.msra.mxu0 0
    %3577 = vmatprep.subr.bf16.mxu0 0
    %3578 = vmatpush1.bf16.msra.mxu0 0
    %3579 = vmatprep.subr.bf16.mxu0 0
    %3580 = vmatpush1.bf16.msra.mxu0 0
    %3581 = vmatprep.subr.bf16.mxu0 0
    %3582 = vmatpush1.bf16.msra.mxu0 0
    %3583 = vmatprep.subr.bf16.mxu0 0
    %3584 = vmatpush1.bf16.msra.mxu0 0
    %3585 = vmatprep.mubr.bf16.mxu0 0
    %3586 = vmatmul.mubr.bf16.gmra.mrb[0].mxu0 %v3538
    %v3587 = vpop.f32.mrb[0].mxu0
    %v3588 = vadd.f32 %v3551, %v3587
    %v3589 = vpop.f32.mrb[0].mxu0
    %v3590 = vpop.f32.mrb[0].mxu0
    %v3591 = vadd.f32 %v3551, %v3590
    %v3592 = vpop.f32.mrb[0].mxu0
    %3593 = vdwg.mxu0
    %v3594 = vadd.f32 %v3393, %v3588
    %v3595 = vadd.f32 %v3394, %v3591
    %v3596 = vld [vmem:[%s6] sm:$0x1]
    %v3597 = vld [vmem:[%s7] sm:$0x1]
    %v3598 = vsel %vm138, %v3594, 0.0
    %3599 = vadd.xlane.f32.xlu0 %v3598
    %v3600 = vpop.xlane.xlu0 %3599
    %v3601 = vsel %vm138, %v3595, 0.0
    %3602 = vadd.xlane.f32.xlu0 %v3601
    %v3603 = vpop.xlane.xlu0 %3602
    %v3604 = vmul.f32 %v3600, %v145
    %v3605 = vmul.f32 %v3603, %v145
    %v3606 = vsub.f32 %v3594, %v3604
    %v3607 = vsub.f32 %v3595, %v3605
    %v3608 = vmul.f32 %v3606, %v3606
    %v3609 = vmul.f32 %v3607, %v3607
    %v3610 = vsel %vm138, %v3608, 0.0
    %3611 = vadd.xlane.f32.xlu0 %v3610
    %v3612 = vpop.xlane.xlu0 %3611
    %v3613 = vsel %vm138, %v3609, 0.0
    %3614 = vadd.xlane.f32.xlu0 %v3613
    %v3615 = vpop.xlane.xlu0 %3614
    %v3616 = vmul.f32 %v3612, %v145
    %v3617 = vmul.f32 %v3615, %v145
    %v3618 = vadd.f32 %v3616, 1e-05
    %v3619 = vadd.f32 %v3617, 1e-05
    %v3620 = vrsqrt.pop %v3618
    %v3621 = vrsqrt.pop %v3619
    %v3622 = vmul.f32 %v3606, %v3620
    %v3623 = vmul.f32 %v3607, %v3621
    %v3625 = vlaneseq
    %v3626 = vshrl.u32 %v3625, 7
    %v3627 = vsub.s32 0, %v3626
    %v3628 = vrot.slane %v3596, %v3627
    %v3630 = vmul.f32 %v3622, %v3628
    %v3631 = vmul.f32 %v3623, %v3628
    %v3633 = vlaneseq
    %v3634 = vshrl.u32 %v3633, 7
    %v3635 = vsub.s32 0, %v3634
    %v3636 = vrot.slane %v3597, %v3635
    %v3638 = vadd.f32 %v3630, %v3636
    %v3639 = vadd.f32 %v3631, %v3636
    %v3640 = vpack.c.bf16 %v3639, %v3638
    %v3641 = vld [vmem:[%s5] sm:$0xff]
    %v3642 = vld [vmem:[%s5 + $0x8] sm:$0xff]
    %v3643 = vld [vmem:[%s5 + $0x10] sm:$0xff]
    %v3644 = vld [vmem:[%s5 + $0x18] sm:$0xff]
    %v3645 = vld [vmem:[%s5 + $0x20] sm:$0xff]
    %v3646 = vld [vmem:[%s5 + $0x28] sm:$0xff]
    %v3647 = vld [vmem:[%s5 + $0x30] sm:$0xff]
    %v3648 = vld [vmem:[%s5 + $0x38] sm:$0xff]
    %v3649 = vpack.c.bf16 %v3642, %v3641
    %v3650 = vpack.c.bf16 %v3644, %v3643
    %v3651 = vpack.c.bf16 %v3646, %v3645
    %v3652 = vpack.c.bf16 %v3648, %v3647
    %v3654 = vsel %vm138, %v3640, 0
    %v3657 = vsel %vm138, %v3649, 0
    %v3660 = vsel %vm138, %v3650, 0
    %v3663 = vsel %vm138, %v3651, 0
    %v3666 = vsel %vm138, %v3652, 0
    %3668 = vmatprep.subr.bf16.mxu0 0
    %3669 = vmatpush1.bf16.xpose.msra.mxu0 %v3657
    %3670 = vmatprep.subr.bf16.mxu0 0
    %3671 = vmatpush1.bf16.xpose.msra.mxu0 %v3660
    %3672 = vmatprep.subr.bf16.mxu0 0
    %3673 = vmatpush1.bf16.xpose.msra.mxu0 %v3663
    %3674 = vmatprep.subr.bf16.mxu0 0
    %3675 = vmatpush1.bf16.xpose.msra.mxu0 %v3666
    %3676 = vmatprep.subr.bf16.mxu0 0
    %3677 = vmatpush1.bf16.xpose.msra.mxu0 0
    %3678 = vmatprep.subr.bf16.mxu0 0
    %3679 = vmatpush1.bf16.xpose.msra.mxu0 0
    %3680 = vmatprep.subr.bf16.mxu0 0
    %3681 = vmatpush1.bf16.xpose.msra.mxu0 0
    %3682 = vmatprep.subr.bf16.mxu0 0
    %3683 = vmatpush1.bf16.xpose.msra.mxu0 0
    %3684 = vmatprep.subr.bf16.mxu0 0
    %3685 = vmatpush1.bf16.xpose.msra.mxu0 0
    %3686 = vmatprep.subr.bf16.mxu0 0
    %3687 = vmatpush1.bf16.xpose.msra.mxu0 0
    %3688 = vmatprep.subr.bf16.mxu0 0
    %3689 = vmatpush1.bf16.xpose.msra.mxu0 0
    %3690 = vmatprep.subr.bf16.mxu0 0
    %3691 = vmatpush1.bf16.xpose.msra.mxu0 0
    %3692 = vmatprep.subr.bf16.mxu0 0
    %3693 = vmatpush1.bf16.xpose.msra.mxu0 0
    %3694 = vmatprep.subr.bf16.mxu0 0
    %3695 = vmatpush1.bf16.xpose.msra.mxu0 0
    %3696 = vmatprep.subr.bf16.mxu0 0
    %3697 = vmatpush1.bf16.xpose.msra.mxu0 0
    %3698 = vmatprep.subr.bf16.mxu0 0
    %3699 = vmatpush1.bf16.xpose.msra.mxu0 0
    %3700 = vmatprep.mubr.bf16.mxu0 0
    %3701 = vmatmul.mubr.bf16.gmra.mrb[0].mxu0 %v3654
    %v3702 = vpop.f32.mrb[0].mxu0
    %v3703 = vadd.f32 0.0, %v3702
    %v3704 = vpop.f32.mrb[0].mxu0
    %v3705 = vpop.f32.mrb[0].mxu0
    %v3706 = vadd.f32 0.0, %v3705
    %v3707 = vpop.f32.mrb[0].mxu0
    %3708 = vdwg.mxu0
    %vm3709 = vcmask 523264
    %3710 = vst.msk [vmem:[#allocation2] sm:$0xff] %vm3709, %v3703
    %3711 = vst.msk [vmem:[#allocation2 + $0x8] sm:$0xff] %vm3709, %v3706
    %v3712 = vld [vmem:[%s1] sm:$0xff]
    %v3713 = vld [vmem:[%s1 + $0x8] sm:$0xff]
    %vm3714 = vcmask 522240
    %v3715 = vsel %vm3714, %v3703, -inf
    %3716 = vmax.xlane.f32.xlu0 %v3715
    %v3717 = vpop.xlane.xlu0 %3716
    %v3718 = vsel %vm3714, %v3706, -inf
    %3719 = vmax.xlane.f32.xlu0 %v3718
    %v3720 = vpop.xlane.xlu0 %3719
    %v3721 = vsub.f32 %v3703, %v3717
    %v3722 = vsub.f32 %v3706, %v3720
    %v3723 = vmul.f32 %v3721, 1.442695
    %v3724 = vpow.pop %v3723
    %v3725 = vmul.f32 %v3722, 1.442695
    %v3726 = vpow.pop %v3725
    %v3727 = vsel %vm3714, %v3724, 0.0
    %3728 = vadd.xlane.f32.xlu0 %v3727
    %v3729 = vpop.xlane.xlu0 %3728
    %v3730 = vsel %vm3714, %v3726, 0.0
    %3731 = vadd.xlane.f32.xlu0 %v3730
    %v3732 = vpop.xlane.xlu0 %3731
    %v3733 = vlog2.pop %v3729
    %v3734 = vmul.f32 %v3733, 0.6931472
    %v3735 = vlog2.pop %v3732
    %v3736 = vmul.f32 %v3735, 0.6931472
    %v3737 = vadd.f32 %v3734, %v3717
    %v3738 = vadd.f32 %v3736, %v3720
    %3739 = vset.pattern.permute.xlu0 0
    %3740 = vperm.xlu0 %3739, %v3712
    %v3741 = vpop.permute.xlu0 %3740
    %3742 = vset.pattern.permute.xlu0 0
    %3743 = vperm.xlu0 %3742, %v3713
    %v3744 = vpop.permute.xlu0 %3743
    %vm3745 = vcmp.eq.s32.totalorder %v134, %v3741
    %vm3746 = vcmp.eq.s32.totalorder %v134, %v3744
    %v3749 = vrot.slane %v3703, 7
    %v3750 = vrot.slane %v3706, 7
    %v3753 = vsel %vm3745, %v3749, 0.0
    %v3754 = vsel %vm3746, %v3750, 0.0
    %vm3755 = vcmask 523265
    %v3756 = vsel %vm3755, %v3753, 0.0
    %3757 = vadd.xlane.f32.xlu0 %v3756
    %v3758 = vpop.xlane.xlu0 %3757
    %v3759 = vsel %vm3755, %v3754, 0.0
    %3760 = vadd.xlane.f32.xlu0 %v3759
    %v3761 = vpop.xlane.xlu0 %3760
    %v3764 = vrot.slane %v3758, 1
    %v3765 = vrot.slane %v3761, 1
    %v3768 = vsub.f32 %v3737, %v3764
    %v3769 = vsub.f32 %v3738, %v3765
    %vm3770 = vcmask 6144
    %v3771 = vsel %vm3770, %v3768, 0.0
    %v3772 = vrot.slane %v3771, 4
    %v3773 = vadd.f32 %v3771, %v3772
    %v3774 = vrot.slane %v3773, 2
    %v3775 = vadd.f32 %v3773, %v3774
    %v3776 = vrot.slane %v3775, 1
    %v3777 = vadd.f32 %v3775, %v3776
    %v3778 = vsel %vm3770, %v3769, 0.0
    %v3779 = vrot.slane %v3778, 4
    %v3780 = vadd.f32 %v3778, %v3779
    %v3781 = vrot.slane %v3780, 2
    %v3782 = vadd.f32 %v3780, %v3781
    %v3783 = vrot.slane %v3782, 1
    %v3784 = vadd.f32 %v3782, %v3783
    %vm3785 = vcmask 7168
    %v3786 = vsel %vm3785, %v3777, 0.0
    %v3787 = vsel %vm3785, %v3784, 0.0
    %v3788 = vadd.f32 %v3786, %v3787
    %v3789 = vmul.f32 %v3788, 0.071428575
    %vm3790 = vcmask 0
    %3791 = vst.msk [vmem:[#allocation4] sm:$0x1] %vm3790, %v3789
    // Predicated region
    $region82: #{eeg2text_forward.1} parent=1 // pred_check
      _
    $region83: #{eeg2text_forward.1} parent=1 // pred_check_branch
      %3793 = sbr.rel (0) target = $region85
    $region84: #{eeg2text_forward.1} parent=1 // pred_region
      %s3795 = ssub.s32 256, 256
      %3796 = vsyncadd [#allocation3], %s3795
      %s3797 = sshll.u32 [#allocation2], 4
      %s3798 = int_to_ptr.vmem [resolvable:$true] %s3797
      %3803 = dma.vmem_to_hbm [thread:$0]  %s3798, 256, %s20, [#allocation3], 128, 128, 8
    $region85: #{eeg2text_forward.1} parent=1 // pred_fallthru
      _
    // Predicated region
    $region86: #{eeg2text_forward.1} parent=1 // pred_check
      _
    $region87: #{eeg2text_forward.1} parent=1 // pred_check_branch
      %3805 = sbr.rel (0) target = $region89
    $region88: #{eeg2text_forward.1} parent=1 // pred_region
      %s3807 = ssub.s32 16, 16
      %3808 = vsyncadd [#allocation5], %s3807
      %s3810 = sshll.u32 [#allocation4], 4
      %s3811 = int_to_ptr.vmem [resolvable:$true] %s3810
      %3813 = dma.vmem_to_hbm [thread:$0]  %s3811, 16, %s21, [#allocation5]
    $region89: #{eeg2text_forward.1} parent=1 // pred_fallthru
      _
    // Predicated region
    $region90: #{eeg2text_forward.1} parent=1 // pred_check
      _
    $region91: #{eeg2text_forward.1} parent=1 // pred_check_branch
      %3815 = sbr.rel (0) target = $region93
    $region92: #{eeg2text_forward.1} parent=1 // pred_region
      %3816 = dma.done [#allocation3], 256
    $region93: #{eeg2text_forward.1} parent=1 // pred_fallthru
      _
    // Predicated region
    $region94: #{eeg2text_forward.1} parent=1 // pred_check
      _
    $region95: #{eeg2text_forward.1} parent=1 // pred_check_branch
      %3818 = sbr.rel (0) target = $region97
    $region96: #{eeg2text_forward.1} parent=1 // pred_region
      %3819 = dma.done [#allocation5], 16
    $region97: #{eeg2text_forward.1} parent=1 // pred_fallthru
      _
    %3820 = vsyncpa [#allocation3], 1
    %3821 = vsyncpa [#allocation5], 1

</llo_original>
